<compile_context>
chip_gen: v5e
topology: v5e:2x2
jax: 0.10.0
libtpu: 0.0.40
codegen_flags: <defaults>
</compile_context>

<pallas_src>
import functools

import jax
import jax.numpy as jnp
from jax.experimental import pallas as pl
from jax.experimental.pallas import tpu as pltpu

# ---------------- hyperparameters (the module-level `params` dict) ----------------
D_MODEL = 32
N_HEAD = 4
HEAD_SIZE = D_MODEL // N_HEAD
BLOCK_SIZE = 8
N_LAYERS = 2
NORM_EPS = 1e-5          # norm1 / norm2
FINAL_NORM_EPS = 1e-5    # nn.LayerNorm default for norm_final
VOCAB_SIZE = 64
NEG_INF = -1e30
SQRT_HS = float(HEAD_SIZE) ** 0.5

FP = jnp.float32

# ---------------- packed-slab layout constants -------------------------------------
FF_HID = 10 * D_MODEL            # 320
FF_PAD = 384                     # FFN hidden padded to a 128-multiple
LOGIT_PAD = 128                  # vocab (64) padded to a lane-dense store width

# W slab: (32, W_COLS) — every matrix whose input dim is d_model, 128-aligned slots.
W_E_QKV = 0                      # encoder fused qkv   (96 used of 128)
W_D_QKV = 128                    # decoder fused qkv   (96 used of 128)
W_E_PROJ = 256                   # encoder out-proj    (32 used of 128)
W_D_PROJ = 384                   # decoder out-proj    (32 used of 128)
W_E_W1 = 512                     # encoder FFN w1      (320 used of 384)
W_D_W1 = 896                     # decoder FFN w1      (320 used of 384)
W_LIN = 1280                     # final vocab proj    (64 used of 128)
W_COLS = 1408

# V slab: (N_VEC_ROWS, VEC_W) — one row per bias/gain vector (+ qexp mask rows).
VEC_W = 384
R_BQKV = 0                       # fused [e_bqkv(96) | pad | d_bqkv(96) | pad]  (256 lanes)
R_EPROJB = 1
R_EN1G, R_EN1B, R_EN2G, R_EN2B = 2, 3, 4, 5
R_EB1, R_EB2 = 6, 7
R_DPROJB = 8
R_DN1G, R_DN1B, R_DN2G, R_DN2B = 9, 10, 11, 12
R_DB1, R_DB2 = 13, 14
R_FNG, R_FNB = 15, 16
R_LINB = 17
R_QMASK = 18                     # T rows of the block-diagonal Q-expansion mask
N_VEC_ROWS = R_QMASK + BLOCK_SIZE   # 26


# ============================ in-kernel math helpers ================================

def _erf(x):
    # Abramowitz & Stegun 7.1.26 (|err| < 1.5e-7); matches nn.GELU() to ~f32 resolution.
    a1, a2, a3, a4, a5 = 0.254829592, -0.284496736, 1.421413741, -1.453152027, 1.061405429
    p = 0.3275911
    sgn = jnp.where(x >= 0.0, 1.0, -1.0)
    ax = jnp.abs(x)
    t = 1.0 / (1.0 + p * ax)
    poly = ((((a5 * t + a4) * t + a3) * t + a2) * t + a1) * t
    return sgn * (1.0 - poly * jnp.exp(-ax * ax))


def _gelu(x):
    return 0.5 * x * (1.0 + _erf(x * 0.7071067811865476))


# =============================== fused forward kernel ===============================

def _transformer_kernel(x_ref, w_ref, w2_ref, rel_ref, vec_ref, o_ref, *, T):
    """One grid step == one sequence (T, d_model); all weights resident in VMEM."""
    H, hs, C = N_HEAD, HEAD_SIZE, D_MODEL
    x = x_ref[...]                                             # (T, C)

    # causal keep-mask built in-kernel (no DMA)
    r_iota = jax.lax.broadcasted_iota(jnp.int32, (T, T), 0)
    c_iota = jax.lax.broadcasted_iota(jnp.int32, (T, T), 1)
    causal = c_iota <= r_iota

    # block-diagonal Q-expansion mask for the rel-position matmul (packed in V slab)
    qmask = vec_ref[R_QMASK:R_QMASK + T, 0:T * C]              # (T, T*C) of {0,1}

    def vrow(i, w):
        return vec_ref[i:i + 1, 0:w]                           # (1, w)

    def layer_norm(v, g, b, eps):
        mean = jnp.mean(v, axis=-1, keepdims=True)
        var = jnp.mean(jnp.square(v - mean), axis=-1, keepdims=True)   # biased, like PyTorch
        return (v - mean) * jax.lax.rsqrt(var + eps) * g + b

    def ffn(v, w1, b1, w2, b2):
        # hidden padded 320->384 with zero cols/bias: extra lanes are exactly 0 and inert
        h1 = jnp.dot(v, w1, preferred_element_type=jnp.float32) + b1
        return jnp.dot(_gelu(h1), w2, preferred_element_type=jnp.float32) + b2

    def attention(qkv, rel_R, proj_w, proj_b, keep_mask):
        # qkv: (T, 128) columns [q_h0..q_h3 | k_h0..k_h3 | v_h0..v_h3 | pad]
        q_all = qkv[:, 0:C]
        k_all = qkv[:, C:2 * C]
        v_all = qkv[:, 2 * C:3 * C]

        # relative-position scores for ALL heads in one lane-dense MXU matmul:
        #   rs[t, h*T + v] = sum_c q_h[t, c] * rel_h[t, v, c]
        q_tiled = jnp.concatenate([q_all] * T, axis=1)          # (T, T*C)
        qexp = q_tiled * qmask
        rs = jnp.dot(qexp, rel_R, preferred_element_type=jnp.float32)   # (T, H*T)

        outs = []
        for h in range(H):                                      # unrolled, in-vreg work
            q = q_all[:, h * hs:(h + 1) * hs]
            k = k_all[:, h * hs:(h + 1) * hs]
            v = v_all[:, h * hs:(h + 1) * hs]
            # scores = Q K^T / hs^(-0.5) == Q K^T * sqrt(hs)  (module's inverted scaling)
            s = jax.lax.dot_general(q, k, (((1,), (1,)), ((), ())),
                                    preferred_element_type=jnp.float32) * SQRT_HS
            s = s + rs[:, h * T:(h + 1) * T]
            if keep_mask is not None:
                s = jnp.where(keep_mask, s, jnp.float32(NEG_INF))       # masked_fill
            s = s - jnp.max(s, axis=-1, keepdims=True)
            p = jnp.exp(s)
            p = p / jnp.sum(p, axis=-1, keepdims=True)
            outs.append(jnp.dot(p, v, preferred_element_type=jnp.float32))
        o = jnp.concatenate(outs, axis=-1)                      # torch.cat(heads) -> (T, C)
        return jnp.dot(o, proj_w, preferred_element_type=jnp.float32) + proj_b

    # fused QKV projection: encoder-attn(x) and decoder-masked-attn(x) share input x
    qkv_ed = (jnp.dot(x, w_ref[:, 0:256], preferred_element_type=jnp.float32)
              + vrow(R_BQKV, 256))                              # (T, 256)

    # ------------------------------ EncoderNetwork ------------------------------
    src = x + attention(qkv_ed[:, 0:128], rel_ref[0],
                        w_ref[:, W_E_PROJ:W_E_PROJ + C], vrow(R_EPROJB, C), None)
    src = layer_norm(src, vrow(R_EN1G, C), vrow(R_EN1B, C), NORM_EPS)
    src = src + ffn(src, w_ref[:, W_E_W1:W_E_W1 + FF_PAD], vrow(R_EB1, FF_PAD),
                    w2_ref[0:FF_PAD, :], vrow(R_EB2, C))
    x_out = layer_norm(src, vrow(R_EN2G, C), vrow(R_EN2B, C), NORM_EPS)

    # ------------------------------ DecoderNetwork ------------------------------
    src = x
    src = src + attention(qkv_ed[:, 128:256], rel_ref[1],
                          w_ref[:, W_D_PROJ:W_D_PROJ + C], vrow(R_DPROJB, C), causal)
    src = src + layer_norm(src, vrow(R_DN1G, C), vrow(R_DN1B, C), NORM_EPS)
    att = src + x_out
    qkv_att = (jnp.dot(att, w_ref[:, W_D_QKV:W_D_QKV + 128],
                       preferred_element_type=jnp.float32)
               + vec_ref[R_BQKV:R_BQKV + 1, 128:256])           # (T, 128)
    att2 = attention(qkv_att, rel_ref[1],
                     w_ref[:, W_D_PROJ:W_D_PROJ + C], vrow(R_DPROJB, C), None)
    att2 = att + att2
    trg = att2 + layer_norm(att2, vrow(R_DN1G, C), vrow(R_DN1B, C), NORM_EPS)
    src_f2 = ffn(layer_norm(trg, vrow(R_DN2G, C), vrow(R_DN2B, C), NORM_EPS),
                 w_ref[:, W_D_W1:W_D_W1 + FF_PAD], vrow(R_DB1, FF_PAD),
                 w2_ref[FF_PAD:2 * FF_PAD, :], vrow(R_DB2, C))
    # TODO(synk): DecoderNetwork.forward reads undefined `src_f`; interpreted as `trg`.
    src_f = trg + src_f2
    src_f = layer_norm(src_f, vrow(R_DN2G, C), vrow(R_DN2B, C), NORM_EPS)

    # --------------------------- final norm + projection ------------------------
    xf = layer_norm(src_f, vrow(R_FNG, C), vrow(R_FNB, C), FINAL_NORM_EPS)
    # lane-dense (T, 128) store; pad lanes are exactly 0 (zero weight cols + zero bias)
    o_ref[...] = (jnp.dot(xf, w_ref[:, W_LIN:W_LIN + LOGIT_PAD],
                          preferred_element_type=jnp.float32) + vrow(R_LINB, LOGIT_PAD))


# =============================== wrapper / forward ===================================

def transformer_forward(packed, idx):
    B, T = idx.shape
    assert T == BLOCK_SIZE, "packed rel-position layout assumes T == block_size"
    tok = packed['tok_emb'][idx]                 # embedding gather glue (plain JAX)
    pos = packed['pos_emb'][:T]
    x2 = (tok + pos).reshape(B * T, D_MODEL)     # flatten once outside the kernel

    out_pad = pl.pallas_call(
        functools.partial(_transformer_kernel, T=T),
        out_shape=jax.ShapeDtypeStruct((B * T, LOGIT_PAD), FP),
        grid=(B,),
        in_specs=[
            pl.BlockSpec((T, D_MODEL), lambda b: (b, 0)),               # one sequence / step
            pl.BlockSpec((D_MODEL, W_COLS), lambda b: (0, 0)),          # matrix slab (resident)
            pl.BlockSpec((2 * FF_PAD, D_MODEL), lambda b: (0, 0)),      # FFN w2 slab
            pl.BlockSpec((2, T * D_MODEL, N_HEAD * T), lambda b: (0, 0, 0)),  # rel-pos slabs
            pl.BlockSpec((N_VEC_ROWS, VEC_W), lambda b: (0, 0)),        # bias/gain/mask slab
        ],
        out_specs=pl.BlockSpec((T, LOGIT_PAD), lambda b: (b, 0)),
        compiler_params=pltpu.CompilerParams(
            dimension_semantics=("parallel",)),   # shards the batch over both TCs on v7x
    )(x2, packed['W'], packed['W2'], packed['R'], packed['V'])

    return out_pad[:, :VOCAB_SIZE].reshape(B, T, VOCAB_SIZE)


# =============================== parameter packing ===================================

def pack_params(p):
    """Layout plumbing: pack the per-module parameters into a few 128-aligned slabs."""
    T, C, H, hs = BLOCK_SIZE, D_MODEL, N_HEAD, HEAD_SIZE
    enc, dec = p['enc'][-1], p['dec'][-1]        # only the LAST layers affect the output
    em, ef = enc['mha'], enc['ffn']
    dm, df = dec['mha'], dec['ffn']

    def pad_cols(a, width):
        return jnp.pad(a, ((0, 0), (0, width - a.shape[1])))

    def pad_rows(a, rows):
        return jnp.pad(a, ((0, rows - a.shape[0]), (0, 0)))

    def row(v, width=VEC_W):
        v = v.reshape(1, -1)
        return jnp.pad(v, ((0, 0), (0, width - v.shape[1])))

    # ---- matrix slab (32, 1408) ----
    W = jnp.concatenate([
        pad_cols(em['wqkv'], 128),               # [   0:128)  enc qkv (96)
        pad_cols(dm['wqkv'], 128),               # [ 128:256)  dec qkv (96)
        pad_cols(em['proj_w'], 128),             # [ 256:384)  enc proj (32)
        pad_cols(dm['proj_w'], 128),             # [ 384:512)  dec proj (32)
        pad_cols(ef['w1'], FF_PAD),              # [ 512:896)  enc FFN w1 (320)
        pad_cols(df['w1'], FF_PAD),              # [ 896:1280) dec FFN w1 (320)
        pad_cols(p['lin_w'], LOGIT_PAD),         # [1280:1408) vocab proj (64)
    ], axis=1)

    # ---- FFN second layer slab (768, 32) ----
    W2 = jnp.concatenate([pad_rows(ef['w2'], FF_PAD), pad_rows(df['w2'], FF_PAD)], axis=0)

    # ---- rel-position matmul slabs (2, T*C, H*T) ----
    # R[t'*C + h*hs + c, h''*T + v] = rel_h[t', v, c] * (h == h'')  so that
    # (block-diag-expanded Q) @ R gives rel scores for all heads in one matmul.
    def rel_R(rel):                              # rel: (H, Tmax, Tmax, hs)
        r = rel[:, :T, :T, :]
        rt = jnp.transpose(r, (1, 0, 3, 2))      # (t', h, c, v)
        eye = jnp.eye(H, dtype=FP)
        A = rt[:, :, :, None, :] * eye[None, :, None, :, None]   # (t', h, c, h'', v)
        return A.reshape(T * C, H * T)
    R = jnp.stack([rel_R(em['rel']), rel_R(dm['rel'])])

    # ---- bias / gain / mask slab (26, 384) ----
    bqkv_ed = jnp.concatenate([pad_cols(em['bqkv'], 128), pad_cols(dm['bqkv'], 128)], axis=1)
    qmask = jnp.repeat(jnp.eye(T, dtype=FP), C, axis=1)          # (T, T*C) block-diag selector
    V = jnp.concatenate([
        row(bqkv_ed),                                            # 0
        row(em['proj_b']),                                       # 1
        row(enc['n1_g']), row(enc['n1_b']), row(enc['n2_g']), row(enc['n2_b']),  # 2-5
        row(ef['b1']), row(ef['b2']),                            # 6, 7
        row(dm['proj_b']),                                       # 8
        row(dec['n1_g']), row(dec['n1_b']), row(dec['n2_g']), row(dec['n2_b']),  # 9-12
        row(df['b1']), row(df['b2']),                            # 13, 14
        row(p['fn_g']), row(p['fn_b']),                          # 15, 16
        row(p['lin_b']),                                         # 17
        jnp.pad(qmask, ((0, 0), (0, VEC_W - T * C))),            # 18..25
    ], axis=0)

    return dict(tok_emb=p['tok_emb'], pos_emb=p['pos_emb'], W=W, W2=W2, R=R, V=V)


# =============================== Parameter init =====================================

def init_params(key):
    keys = iter(jax.random.split(key, 512))

    def nrm(shape, std=0.02):
        return jax.random.normal(next(keys), shape, FP) * std

    def init_mha():
        # Per-head q/k/v projections fused along the lane axis:
        #   columns [q_h0..q_h3 | k_h0..k_h3 | v_h0..v_h3], each block (C, hs).
        wq = [nrm((D_MODEL, HEAD_SIZE)) for _ in range(N_HEAD)]
        wk = [nrm((D_MODEL, HEAD_SIZE)) for _ in range(N_HEAD)]
        wv = [nrm((D_MODEL, HEAD_SIZE)) for _ in range(N_HEAD)]
        wqkv = jnp.concatenate(wq + wk + wv, axis=1)               # (C, 3*H*hs)
        # q/k biases are zero-initialised by _init_weights; value proj has no bias,
        # so its bias slot must stay structurally zero.
        bqkv = jnp.zeros((1, 3 * N_HEAD * HEAD_SIZE), FP)
        # rel_pos_emb is a raw nn.Parameter(torch.randn(...)) -> N(0, 1)
        rel = jnp.stack([jax.random.normal(next(keys),
                                           (BLOCK_SIZE, BLOCK_SIZE, HEAD_SIZE), FP)
                         for _ in range(N_HEAD)])                   # (H, Tmax, Tmax, hs)
        return dict(wqkv=wqkv, bqkv=bqkv, rel=rel,
                    proj_w=nrm((N_HEAD * HEAD_SIZE, D_MODEL)),
                    proj_b=jnp.zeros((1, D_MODEL), FP))

    def init_ffn():
        return dict(w1=nrm((D_MODEL, FF_HID)), b1=jnp.zeros((1, FF_HID), FP),
                    w2=nrm((FF_HID, D_MODEL)), b2=jnp.zeros((1, D_MODEL), FP))

    def init_block():
        return dict(mha=init_mha(), ffn=init_ffn(),
                    n1_g=jnp.ones((1, D_MODEL), FP), n1_b=jnp.zeros((1, D_MODEL), FP),
                    n2_g=jnp.ones((1, D_MODEL), FP), n2_b=jnp.zeros((1, D_MODEL), FP))

    return dict(
        tok_emb=nrm((VOCAB_SIZE, D_MODEL)),
        pos_emb=nrm((BLOCK_SIZE, D_MODEL)),
        enc=[init_block() for _ in range(N_LAYERS)],
        dec=[init_block() for _ in range(N_LAYERS)],
        fn_g=jnp.ones((1, D_MODEL), FP), fn_b=jnp.zeros((1, D_MODEL), FP),
        lin_w=nrm((D_MODEL, VOCAB_SIZE)), lin_b=jnp.zeros((1, VOCAB_SIZE), FP),
    )


# =========================== pure-JAX reference (for checking) ======================

def _reference_forward(params, idx):
    B, T = idx.shape
    hp = jax.lax.Precision.HIGHEST
    x = params['tok_emb'][idx] + params['pos_emb'][:T]

    def mha(lp, h_in, mask):
        m = lp['mha']
        qkv = jnp.einsum('btc,cd->btd', h_in, m['wqkv'], precision=hp) + m['bqkv'][0]
        H, hs = N_HEAD, HEAD_SIZE
        outs = []
        for h in range(H):
            q = qkv[..., h * hs:(h + 1) * hs]
            k = qkv[..., (H + h) * hs:(H + h + 1) * hs]
            v = qkv[..., (2 * H + h) * hs:(2 * H + h + 1) * hs]
            s = jnp.einsum('bth,bsh->bts', q, k, precision=hp) * (HEAD_SIZE ** 0.5)
            s = s + jnp.einsum('btc,tvc->btv', q, m['rel'][h, :T, :T], precision=hp)
            if mask:
                keep = jnp.tril(jnp.ones((T, T), FP)) > 0
                s = jnp.where(keep[None], s, -jnp.inf)
            p = jax.nn.softmax(s, axis=-1)
            outs.append(jnp.einsum('bts,bsh->bth', p, v, precision=hp))
        o = jnp.concatenate(outs, axis=-1)
        return jnp.einsum('btc,cd->btd', o, m['proj_w'], precision=hp) + m['proj_b'][0]

    def ln(v, g, b, eps):
        mu = v.mean(-1, keepdims=True)
        var = ((v - mu) ** 2).mean(-1, keepdims=True)
        return (v - mu) * jax.lax.rsqrt(var + eps) * g[0] + b[0]

    def ffn(lp, v):
        f = lp['ffn']
        h1 = jnp.einsum('btc,cd->btd', v, f['w1'], precision=hp) + f['b1'][0]
        g = 0.5 * h1 * (1.0 + jax.scipy.special.erf(h1 * (2 ** -0.5)))
        return jnp.einsum('btd,dc->btc', g, f['w2'], precision=hp) + f['b2'][0]

    def encoder(lp, src):
        src = src + mha(lp, src, False)
        src = ln(src, lp['n1_g'], lp['n1_b'], NORM_EPS)
        src = src + ffn(lp, src)
        return ln(src, lp['n2_g'], lp['n2_b'], NORM_EPS)

    def decoder(lp, src, att):
        src = src + mha(lp, src, True)
        src = src + ln(src, lp['n1_g'], lp['n1_b'], NORM_EPS)
        att = src + att
        att2 = mha(lp, att, False)
        att2 = att + att2
        trg = att2 + ln(att2, lp['n1_g'], lp['n1_b'], NORM_EPS)
        src_f2 = ffn(lp, ln(trg, lp['n2_g'], lp['n2_b'], NORM_EPS))
        src_f = trg + src_f2     # interpretation of the reference's undefined `src_f`
        return ln(src_f, lp['n2_g'], lp['n2_b'], NORM_EPS)

    x_out = encoder(params['enc'][-1], x)
    x_fin = decoder(params['dec'][-1], x, x_out)
    x_fin = ln(x_fin, params['fn_g'], params['fn_b'], FINAL_NORM_EPS)
    return jnp.einsum('btc,cv->btv', x_fin, params['lin_w'], precision=hp) + params['lin_b'][0]


# ===================================== main =========================================

if __name__ == "__main__":
    key = jax.random.PRNGKey(0)
    pkey, ikey = jax.random.split(key)
    params = init_params(pkey)
    packed = pack_params(params)          # one-time layout plumbing, outside jit

    B, T = 2, BLOCK_SIZE
    idx = jax.random.randint(ikey, (B, T), 0, VOCAB_SIZE, dtype=jnp.int32)

    logits = jax.jit(transformer_forward)(packed, idx)
    logits = jax.block_until_ready(logits)

    assert logits.shape == (B, T, VOCAB_SIZE), logits.shape
    assert logits.dtype == jnp.float32
    assert bool(jnp.all(jnp.isfinite(logits)))

    ref = _reference_forward(params, idx)
    max_err = float(jnp.max(jnp.abs(logits - ref)))
    assert max_err < 2e-3, f"mismatch vs pure-JAX reference: {max_err}"

    print("KERNEL_OK")
</pallas_src>

<mosaic_0001>
module attributes {stable_mosaic.version = 11 : i64} {
  func.func @_transformer_kernel(%arg0: i32, %arg1: memref<8x32xf32, #tpu.memory_space<vmem>>, %arg2: memref<32x1408xf32, #tpu.memory_space<vmem>>, %arg3: memref<768x32xf32, #tpu.memory_space<vmem>>, %arg4: memref<2x256x32xf32, #tpu.memory_space<vmem>>, %arg5: memref<26x384xf32, #tpu.memory_space<vmem>>, %arg6: memref<8x128xf32, #tpu.memory_space<vmem>>) attributes {dimension_semantics = [#tpu.dimension_semantics<parallel>], iteration_bounds = array<i64: 2>, scalar_prefetch = 0 : i64, scratch_operands = 0 : i64, tpu.core_type = #tpu.core_type<tc>, window_params = [{transform_indices = @transform_0, window_bounds = array<i64: 8, 32>}, {pipeline_mode = #tpu.pipeline_mode<synchronous>, transform_indices = @transform_1, window_bounds = array<i64: 32, 1408>}, {pipeline_mode = #tpu.pipeline_mode<synchronous>, transform_indices = @transform_2, window_bounds = array<i64: 768, 32>}, {pipeline_mode = #tpu.pipeline_mode<synchronous>, transform_indices = @transform_3, window_bounds = array<i64: 2, 256, 32>}, {pipeline_mode = #tpu.pipeline_mode<synchronous>, transform_indices = @transform_4, window_bounds = array<i64: 26, 384>}, {transform_indices = @transform_5, window_bounds = array<i64: 8, 128>}]} {
    %c0 = arith.constant 0 : index
    %c0_0 = arith.constant 0 : index
    %0 = vector.load %arg1[%c0, %c0_0] : memref<8x32xf32, #tpu.memory_space<vmem>>, vector<8x32xf32>
    %1 = tpu.iota {dimensions = array<i32: 0>} : vector<8x8xi32>
    %2 = tpu.iota {dimensions = array<i32: 1>} : vector<8x8xi32>
    %3 = arith.cmpi sle, %2, %1 : vector<8x8xi32>
    %c18 = arith.constant 18 : index
    %c0_1 = arith.constant 0 : index
    %4 = vector.load %arg5[%c18, %c0_1] : memref<26x384xf32, #tpu.memory_space<vmem>>, vector<8x256xf32>
    %c0_2 = arith.constant 0 : index
    %c0_3 = arith.constant 0 : index
    %5 = vector.load %arg2[%c0_2, %c0_3] : memref<32x1408xf32, #tpu.memory_space<vmem>>, vector<32x256xf32>
    %cst = arith.constant dense<0.000000e+00> : vector<8x256xf32>
    %6 = tpu.matmul %0, %5, %cst {dimension_numbers = #tpu.dot_dimension_numbers<[1], [0], [0], [1], [0, 0, 1, 1], [], []>} : vector<8x32xf32>, vector<32x256xf32>, vector<8x256xf32> -> vector<8x256xf32>
    %c0_4 = arith.constant 0 : index
    %c0_5 = arith.constant 0 : index
    %7 = vector.load %arg5[%c0_4, %c0_5] : memref<26x384xf32, #tpu.memory_space<vmem>>, vector<1x256xf32>
    %8 = vector.broadcast %7 : vector<1x256xf32> to vector<8x256xf32>
    %9 = arith.addf %6, %8 : vector<8x256xf32>
    %10 = vector.extract_strided_slice %9 {offsets = [0, 0], sizes = [8, 128], strides = [1, 1]} : vector<8x256xf32> to vector<8x128xf32>
    %c0_6 = arith.constant 0 : index
    %c0_7 = arith.constant 0 : index
    %c0_8 = arith.constant 0 : index
    %11 = vector.load %arg4[%c0_6, %c0_7, %c0_8] : memref<2x256x32xf32, #tpu.memory_space<vmem>>, vector<1x256x32xf32>
    %12 = vector.shape_cast %11 : vector<1x256x32xf32> to vector<256x32xf32>
    %c0_9 = arith.constant 0 : index
    %c256 = arith.constant 256 : index
    %13 = vector.load %arg2[%c0_9, %c256] : memref<32x1408xf32, #tpu.memory_space<vmem>>, vector<32x32xf32>
    %c1 = arith.constant 1 : index
    %c0_10 = arith.constant 0 : index
    %14 = vector.load %arg5[%c1, %c0_10] : memref<26x384xf32, #tpu.memory_space<vmem>>, vector<1x32xf32>
    %15 = vector.extract_strided_slice %10 {offsets = [0, 0], sizes = [8, 32], strides = [1, 1]} : vector<8x128xf32> to vector<8x32xf32>
    %16 = vector.extract_strided_slice %10 {offsets = [0, 32], sizes = [8, 32], strides = [1, 1]} : vector<8x128xf32> to vector<8x32xf32>
    %17 = vector.extract_strided_slice %10 {offsets = [0, 64], sizes = [8, 32], strides = [1, 1]} : vector<8x128xf32> to vector<8x32xf32>
    %18 = tpu.concatenate %15, %15, %15, %15, %15, %15, %15, %15 in 1 : vector<8x32xf32>, vector<8x32xf32>, vector<8x32xf32>, vector<8x32xf32>, vector<8x32xf32>, vector<8x32xf32>, vector<8x32xf32>, vector<8x32xf32> -> vector<8x256xf32>
    %19 = arith.mulf %18, %4 : vector<8x256xf32>
    %cst_11 = arith.constant dense<0.000000e+00> : vector<8x32xf32>
    %20 = tpu.matmul %19, %12, %cst_11 {dimension_numbers = #tpu.dot_dimension_numbers<[1], [0], [0], [1], [0, 0, 1, 1], [], []>} : vector<8x256xf32>, vector<256x32xf32>, vector<8x32xf32> -> vector<8x32xf32>
    %21 = vector.extract_strided_slice %15 {offsets = [0, 0], sizes = [8, 8], strides = [1, 1]} : vector<8x32xf32> to vector<8x8xf32>
    %22 = vector.extract_strided_slice %16 {offsets = [0, 0], sizes = [8, 8], strides = [1, 1]} : vector<8x32xf32> to vector<8x8xf32>
    %23 = vector.extract_strided_slice %17 {offsets = [0, 0], sizes = [8, 8], strides = [1, 1]} : vector<8x32xf32> to vector<8x8xf32>
    %cst_12 = arith.constant dense<0.000000e+00> : vector<8x8xf32>
    %24 = tpu.matmul %21, %22, %cst_12 {dimension_numbers = #tpu.dot_dimension_numbers<[1], [1], [0], [0], [0, 0, 1, 0], [], []>} : vector<8x8xf32>, vector<8x8xf32>, vector<8x8xf32> -> vector<8x8xf32>
    %cst_13 = arith.constant 2.82842708 : f32
    %25 = vector.broadcast %cst_13 : f32 to vector<8x8xf32>
    %26 = arith.mulf %24, %25 : vector<8x8xf32>
    %27 = vector.extract_strided_slice %20 {offsets = [0, 0], sizes = [8, 8], strides = [1, 1]} : vector<8x32xf32> to vector<8x8xf32>
    %28 = arith.addf %26, %27 : vector<8x8xf32>
    %cst_14 = arith.constant dense<0xFF800000> : vector<8xf32>
    %29 = vector.multi_reduction <maximumf>, %28, %cst_14 [1] : vector<8x8xf32> to vector<8xf32>
    %30 = vector.shape_cast %29 : vector<8xf32> to vector<8x1xf32>
    %31 = vector.broadcast %30 : vector<8x1xf32> to vector<8x8xf32>
    %32 = arith.subf %28, %31 : vector<8x8xf32>
    %33 = math.exp %32 : vector<8x8xf32>
    %cst_15 = arith.constant dense<0.000000e+00> : vector<8xf32>
    %34 = vector.multi_reduction <add>, %33, %cst_15 [1] : vector<8x8xf32> to vector<8xf32>
    %35 = vector.shape_cast %34 : vector<8xf32> to vector<8x1xf32>
    %36 = vector.broadcast %35 : vector<8x1xf32> to vector<8x8xf32>
    %37 = arith.divf %33, %36 : vector<8x8xf32>
    %cst_16 = arith.constant dense<0.000000e+00> : vector<8x8xf32>
    %38 = tpu.matmul %37, %23, %cst_16 {dimension_numbers = #tpu.dot_dimension_numbers<[1], [0], [0], [1], [0, 0, 1, 1], [], []>} : vector<8x8xf32>, vector<8x8xf32>, vector<8x8xf32> -> vector<8x8xf32>
    %39 = vector.extract_strided_slice %15 {offsets = [0, 8], sizes = [8, 8], strides = [1, 1]} : vector<8x32xf32> to vector<8x8xf32>
    %40 = vector.extract_strided_slice %16 {offsets = [0, 8], sizes = [8, 8], strides = [1, 1]} : vector<8x32xf32> to vector<8x8xf32>
    %41 = vector.extract_strided_slice %17 {offsets = [0, 8], sizes = [8, 8], strides = [1, 1]} : vector<8x32xf32> to vector<8x8xf32>
    %cst_17 = arith.constant dense<0.000000e+00> : vector<8x8xf32>
    %42 = tpu.matmul %39, %40, %cst_17 {dimension_numbers = #tpu.dot_dimension_numbers<[1], [1], [0], [0], [0, 0, 1, 0], [], []>} : vector<8x8xf32>, vector<8x8xf32>, vector<8x8xf32> -> vector<8x8xf32>
    %cst_18 = arith.constant 2.82842708 : f32
    %43 = vector.broadcast %cst_18 : f32 to vector<8x8xf32>
    %44 = arith.mulf %42, %43 : vector<8x8xf32>
    %45 = vector.extract_strided_slice %20 {offsets = [0, 8], sizes = [8, 8], strides = [1, 1]} : vector<8x32xf32> to vector<8x8xf32>
    %46 = arith.addf %44, %45 : vector<8x8xf32>
    %cst_19 = arith.constant dense<0xFF800000> : vector<8xf32>
    %47 = vector.multi_reduction <maximumf>, %46, %cst_19 [1] : vector<8x8xf32> to vector<8xf32>
    %48 = vector.shape_cast %47 : vector<8xf32> to vector<8x1xf32>
    %49 = vector.broadcast %48 : vector<8x1xf32> to vector<8x8xf32>
    %50 = arith.subf %46, %49 : vector<8x8xf32>
    %51 = math.exp %50 : vector<8x8xf32>
    %cst_20 = arith.constant dense<0.000000e+00> : vector<8xf32>
    %52 = vector.multi_reduction <add>, %51, %cst_20 [1] : vector<8x8xf32> to vector<8xf32>
    %53 = vector.shape_cast %52 : vector<8xf32> to vector<8x1xf32>
    %54 = vector.broadcast %53 : vector<8x1xf32> to vector<8x8xf32>
    %55 = arith.divf %51, %54 : vector<8x8xf32>
    %cst_21 = arith.constant dense<0.000000e+00> : vector<8x8xf32>
    %56 = tpu.matmul %55, %41, %cst_21 {dimension_numbers = #tpu.dot_dimension_numbers<[1], [0], [0], [1], [0, 0, 1, 1], [], []>} : vector<8x8xf32>, vector<8x8xf32>, vector<8x8xf32> -> vector<8x8xf32>
    %57 = vector.extract_strided_slice %15 {offsets = [0, 16], sizes = [8, 8], strides = [1, 1]} : vector<8x32xf32> to vector<8x8xf32>
    %58 = vector.extract_strided_slice %16 {offsets = [0, 16], sizes = [8, 8], strides = [1, 1]} : vector<8x32xf32> to vector<8x8xf32>
    %59 = vector.extract_strided_slice %17 {offsets = [0, 16], sizes = [8, 8], strides = [1, 1]} : vector<8x32xf32> to vector<8x8xf32>
    %cst_22 = arith.constant dense<0.000000e+00> : vector<8x8xf32>
    %60 = tpu.matmul %57, %58, %cst_22 {dimension_numbers = #tpu.dot_dimension_numbers<[1], [1], [0], [0], [0, 0, 1, 0], [], []>} : vector<8x8xf32>, vector<8x8xf32>, vector<8x8xf32> -> vector<8x8xf32>
    %cst_23 = arith.constant 2.82842708 : f32
    %61 = vector.broadcast %cst_23 : f32 to vector<8x8xf32>
    %62 = arith.mulf %60, %61 : vector<8x8xf32>
    %63 = vector.extract_strided_slice %20 {offsets = [0, 16], sizes = [8, 8], strides = [1, 1]} : vector<8x32xf32> to vector<8x8xf32>
    %64 = arith.addf %62, %63 : vector<8x8xf32>
    %cst_24 = arith.constant dense<0xFF800000> : vector<8xf32>
    %65 = vector.multi_reduction <maximumf>, %64, %cst_24 [1] : vector<8x8xf32> to vector<8xf32>
    %66 = vector.shape_cast %65 : vector<8xf32> to vector<8x1xf32>
    %67 = vector.broadcast %66 : vector<8x1xf32> to vector<8x8xf32>
    %68 = arith.subf %64, %67 : vector<8x8xf32>
    %69 = math.exp %68 : vector<8x8xf32>
    %cst_25 = arith.constant dense<0.000000e+00> : vector<8xf32>
    %70 = vector.multi_reduction <add>, %69, %cst_25 [1] : vector<8x8xf32> to vector<8xf32>
    %71 = vector.shape_cast %70 : vector<8xf32> to vector<8x1xf32>
    %72 = vector.broadcast %71 : vector<8x1xf32> to vector<8x8xf32>
    %73 = arith.divf %69, %72 : vector<8x8xf32>
    %cst_26 = arith.constant dense<0.000000e+00> : vector<8x8xf32>
    %74 = tpu.matmul %73, %59, %cst_26 {dimension_numbers = #tpu.dot_dimension_numbers<[1], [0], [0], [1], [0, 0, 1, 1], [], []>} : vector<8x8xf32>, vector<8x8xf32>, vector<8x8xf32> -> vector<8x8xf32>
    %75 = vector.extract_strided_slice %15 {offsets = [0, 24], sizes = [8, 8], strides = [1, 1]} : vector<8x32xf32> to vector<8x8xf32>
    %76 = vector.extract_strided_slice %16 {offsets = [0, 24], sizes = [8, 8], strides = [1, 1]} : vector<8x32xf32> to vector<8x8xf32>
    %77 = vector.extract_strided_slice %17 {offsets = [0, 24], sizes = [8, 8], strides = [1, 1]} : vector<8x32xf32> to vector<8x8xf32>
    %cst_27 = arith.constant dense<0.000000e+00> : vector<8x8xf32>
    %78 = tpu.matmul %75, %76, %cst_27 {dimension_numbers = #tpu.dot_dimension_numbers<[1], [1], [0], [0], [0, 0, 1, 0], [], []>} : vector<8x8xf32>, vector<8x8xf32>, vector<8x8xf32> -> vector<8x8xf32>
    %cst_28 = arith.constant 2.82842708 : f32
    %79 = vector.broadcast %cst_28 : f32 to vector<8x8xf32>
    %80 = arith.mulf %78, %79 : vector<8x8xf32>
    %81 = vector.extract_strided_slice %20 {offsets = [0, 24], sizes = [8, 8], strides = [1, 1]} : vector<8x32xf32> to vector<8x8xf32>
    %82 = arith.addf %80, %81 : vector<8x8xf32>
    %cst_29 = arith.constant dense<0xFF800000> : vector<8xf32>
    %83 = vector.multi_reduction <maximumf>, %82, %cst_29 [1] : vector<8x8xf32> to vector<8xf32>
    %84 = vector.shape_cast %83 : vector<8xf32> to vector<8x1xf32>
    %85 = vector.broadcast %84 : vector<8x1xf32> to vector<8x8xf32>
    %86 = arith.subf %82, %85 : vector<8x8xf32>
    %87 = math.exp %86 : vector<8x8xf32>
    %cst_30 = arith.constant dense<0.000000e+00> : vector<8xf32>
    %88 = vector.multi_reduction <add>, %87, %cst_30 [1] : vector<8x8xf32> to vector<8xf32>
    %89 = vector.shape_cast %88 : vector<8xf32> to vector<8x1xf32>
    %90 = vector.broadcast %89 : vector<8x1xf32> to vector<8x8xf32>
    %91 = arith.divf %87, %90 : vector<8x8xf32>
    %cst_31 = arith.constant dense<0.000000e+00> : vector<8x8xf32>
    %92 = tpu.matmul %91, %77, %cst_31 {dimension_numbers = #tpu.dot_dimension_numbers<[1], [0], [0], [1], [0, 0, 1, 1], [], []>} : vector<8x8xf32>, vector<8x8xf32>, vector<8x8xf32> -> vector<8x8xf32>
    %93 = tpu.concatenate %38, %56, %74, %92 in 1 : vector<8x8xf32>, vector<8x8xf32>, vector<8x8xf32>, vector<8x8xf32> -> vector<8x32xf32>
    %cst_32 = arith.constant dense<0.000000e+00> : vector<8x32xf32>
    %94 = tpu.matmul %93, %13, %cst_32 {dimension_numbers = #tpu.dot_dimension_numbers<[1], [0], [0], [1], [0, 0, 1, 1], [], []>} : vector<8x32xf32>, vector<32x32xf32>, vector<8x32xf32> -> vector<8x32xf32>
    %95 = vector.broadcast %14 : vector<1x32xf32> to vector<8x32xf32>
    %96 = arith.addf %94, %95 : vector<8x32xf32>
    %97 = arith.addf %0, %96 : vector<8x32xf32>
    %c2 = arith.constant 2 : index
    %c0_33 = arith.constant 0 : index
    %98 = vector.load %arg5[%c2, %c0_33] : memref<26x384xf32, #tpu.memory_space<vmem>>, vector<1x32xf32>
    %c3 = arith.constant 3 : index
    %c0_34 = arith.constant 0 : index
    %99 = vector.load %arg5[%c3, %c0_34] : memref<26x384xf32, #tpu.memory_space<vmem>>, vector<1x32xf32>
    %cst_35 = arith.constant dense<0.000000e+00> : vector<8xf32>
    %100 = vector.multi_reduction <add>, %97, %cst_35 [1] : vector<8x32xf32> to vector<8xf32>
    %101 = vector.shape_cast %100 : vector<8xf32> to vector<8x1xf32>
    %cst_36 = arith.constant 3.200000e+01 : f32
    %102 = vector.broadcast %cst_36 : f32 to vector<8x1xf32>
    %103 = arith.divf %101, %102 : vector<8x1xf32>
    %104 = vector.broadcast %103 : vector<8x1xf32> to vector<8x32xf32>
    %105 = arith.subf %97, %104 : vector<8x32xf32>
    %106 = arith.mulf %105, %105 : vector<8x32xf32>
    %cst_37 = arith.constant dense<0.000000e+00> : vector<8xf32>
    %107 = vector.multi_reduction <add>, %106, %cst_37 [1] : vector<8x32xf32> to vector<8xf32>
    %108 = vector.shape_cast %107 : vector<8xf32> to vector<8x1xf32>
    %cst_38 = arith.constant 3.200000e+01 : f32
    %109 = vector.broadcast %cst_38 : f32 to vector<8x1xf32>
    %110 = arith.divf %108, %109 : vector<8x1xf32>
    %111 = vector.broadcast %103 : vector<8x1xf32> to vector<8x32xf32>
    %112 = arith.subf %97, %111 : vector<8x32xf32>
    %cst_39 = arith.constant 9.99999974E-6 : f32
    %113 = vector.broadcast %cst_39 : f32 to vector<8x1xf32>
    %114 = arith.addf %110, %113 : vector<8x1xf32>
    %115 = math.rsqrt %114 : vector<8x1xf32>
    %116 = vector.broadcast %115 : vector<8x1xf32> to vector<8x32xf32>
    %117 = arith.mulf %112, %116 : vector<8x32xf32>
    %118 = vector.broadcast %98 : vector<1x32xf32> to vector<8x32xf32>
    %119 = arith.mulf %117, %118 : vector<8x32xf32>
    %120 = vector.broadcast %99 : vector<1x32xf32> to vector<8x32xf32>
    %121 = arith.addf %119, %120 : vector<8x32xf32>
    %c0_40 = arith.constant 0 : index
    %c512 = arith.constant 512 : index
    %122 = vector.load %arg2[%c0_40, %c512] : memref<32x1408xf32, #tpu.memory_space<vmem>>, vector<32x384xf32>
    %c6 = arith.constant 6 : index
    %c0_41 = arith.constant 0 : index
    %123 = vector.load %arg5[%c6, %c0_41] : memref<26x384xf32, #tpu.memory_space<vmem>>, vector<1x384xf32>
    %c0_42 = arith.constant 0 : index
    %c0_43 = arith.constant 0 : index
    %124 = vector.load %arg3[%c0_42, %c0_43] : memref<768x32xf32, #tpu.memory_space<vmem>>, vector<384x32xf32>
    %c7 = arith.constant 7 : index
    %c0_44 = arith.constant 0 : index
    %125 = vector.load %arg5[%c7, %c0_44] : memref<26x384xf32, #tpu.memory_space<vmem>>, vector<1x32xf32>
    %cst_45 = arith.constant dense<0.000000e+00> : vector<8x384xf32>
    %126 = tpu.matmul %121, %122, %cst_45 {dimension_numbers = #tpu.dot_dimension_numbers<[1], [0], [0], [1], [0, 0, 1, 1], [], []>} : vector<8x32xf32>, vector<32x384xf32>, vector<8x384xf32> -> vector<8x384xf32>
    %127 = vector.broadcast %123 : vector<1x384xf32> to vector<8x384xf32>
    %128 = arith.addf %126, %127 : vector<8x384xf32>
    %cst_46 = arith.constant 5.000000e-01 : f32
    %129 = vector.broadcast %cst_46 : f32 to vector<8x384xf32>
    %130 = arith.mulf %129, %128 : vector<8x384xf32>
    %cst_47 = arith.constant 0.707106769 : f32
    %131 = vector.broadcast %cst_47 : f32 to vector<8x384xf32>
    %132 = arith.mulf %128, %131 : vector<8x384xf32>
    %cst_48 = arith.constant 0.000000e+00 : f32
    %133 = vector.broadcast %cst_48 : f32 to vector<8x384xf32>
    %134 = arith.cmpf oge, %132, %133 : vector<8x384xf32>
    %cst_49 = arith.constant 1.000000e+00 : f32
    %cst_50 = arith.constant -1.000000e+00 : f32
    %135 = vector.broadcast %cst_49 : f32 to vector<8x384xf32>
    %136 = vector.broadcast %cst_50 : f32 to vector<8x384xf32>
    %137 = arith.select %134, %135, %136 : vector<8x384xi1>, vector<8x384xf32>
    %138 = math.absf %132 : vector<8x384xf32>
    %cst_51 = arith.constant 0.327591091 : f32
    %139 = vector.broadcast %cst_51 : f32 to vector<8x384xf32>
    %140 = arith.mulf %139, %138 : vector<8x384xf32>
    %cst_52 = arith.constant 1.000000e+00 : f32
    %141 = vector.broadcast %cst_52 : f32 to vector<8x384xf32>
    %142 = arith.addf %141, %140 : vector<8x384xf32>
    %cst_53 = arith.constant 1.000000e+00 : f32
    %143 = vector.broadcast %cst_53 : f32 to vector<8x384xf32>
    %144 = arith.divf %143, %142 : vector<8x384xf32>
    %cst_54 = arith.constant 1.06140542 : f32
    %145 = vector.broadcast %cst_54 : f32 to vector<8x384xf32>
    %146 = arith.mulf %145, %144 : vector<8x384xf32>
    %cst_55 = arith.constant -1.45315206 : f32
    %147 = vector.broadcast %cst_55 : f32 to vector<8x384xf32>
    %148 = arith.addf %146, %147 : vector<8x384xf32>
    %149 = arith.mulf %148, %144 : vector<8x384xf32>
    %cst_56 = arith.constant 1.42141378 : f32
    %150 = vector.broadcast %cst_56 : f32 to vector<8x384xf32>
    %151 = arith.addf %149, %150 : vector<8x384xf32>
    %152 = arith.mulf %151, %144 : vector<8x384xf32>
    %cst_57 = arith.constant -0.284496725 : f32
    %153 = vector.broadcast %cst_57 : f32 to vector<8x384xf32>
    %154 = arith.addf %152, %153 : vector<8x384xf32>
    %155 = arith.mulf %154, %144 : vector<8x384xf32>
    %cst_58 = arith.constant 0.254829586 : f32
    %156 = vector.broadcast %cst_58 : f32 to vector<8x384xf32>
    %157 = arith.addf %155, %156 : vector<8x384xf32>
    %158 = arith.mulf %157, %144 : vector<8x384xf32>
    %cst_59 = arith.constant 0.000000e+00 : f32
    %159 = vector.broadcast %cst_59 : f32 to vector<8x384xf32>
    %160 = arith.subf %159, %138 : vector<8x384xf32>
    %161 = arith.mulf %160, %138 : vector<8x384xf32>
    %162 = math.exp %161 : vector<8x384xf32>
    %163 = arith.mulf %158, %162 : vector<8x384xf32>
    %cst_60 = arith.constant 1.000000e+00 : f32
    %164 = vector.broadcast %cst_60 : f32 to vector<8x384xf32>
    %165 = arith.subf %164, %163 : vector<8x384xf32>
    %166 = arith.mulf %137, %165 : vector<8x384xf32>
    %cst_61 = arith.constant 1.000000e+00 : f32
    %167 = vector.broadcast %cst_61 : f32 to vector<8x384xf32>
    %168 = arith.addf %167, %166 : vector<8x384xf32>
    %169 = arith.mulf %130, %168 : vector<8x384xf32>
    %cst_62 = arith.constant dense<0.000000e+00> : vector<8x32xf32>
    %170 = tpu.matmul %169, %124, %cst_62 {dimension_numbers = #tpu.dot_dimension_numbers<[1], [0], [0], [1], [0, 0, 1, 1], [], []>} : vector<8x384xf32>, vector<384x32xf32>, vector<8x32xf32> -> vector<8x32xf32>
    %171 = vector.broadcast %125 : vector<1x32xf32> to vector<8x32xf32>
    %172 = arith.addf %170, %171 : vector<8x32xf32>
    %173 = arith.addf %121, %172 : vector<8x32xf32>
    %c4 = arith.constant 4 : index
    %c0_63 = arith.constant 0 : index
    %174 = vector.load %arg5[%c4, %c0_63] : memref<26x384xf32, #tpu.memory_space<vmem>>, vector<1x32xf32>
    %c5 = arith.constant 5 : index
    %c0_64 = arith.constant 0 : index
    %175 = vector.load %arg5[%c5, %c0_64] : memref<26x384xf32, #tpu.memory_space<vmem>>, vector<1x32xf32>
    %cst_65 = arith.constant dense<0.000000e+00> : vector<8xf32>
    %176 = vector.multi_reduction <add>, %173, %cst_65 [1] : vector<8x32xf32> to vector<8xf32>
    %177 = vector.shape_cast %176 : vector<8xf32> to vector<8x1xf32>
    %cst_66 = arith.constant 3.200000e+01 : f32
    %178 = vector.broadcast %cst_66 : f32 to vector<8x1xf32>
    %179 = arith.divf %177, %178 : vector<8x1xf32>
    %180 = vector.broadcast %179 : vector<8x1xf32> to vector<8x32xf32>
    %181 = arith.subf %173, %180 : vector<8x32xf32>
    %182 = arith.mulf %181, %181 : vector<8x32xf32>
    %cst_67 = arith.constant dense<0.000000e+00> : vector<8xf32>
    %183 = vector.multi_reduction <add>, %182, %cst_67 [1] : vector<8x32xf32> to vector<8xf32>
    %184 = vector.shape_cast %183 : vector<8xf32> to vector<8x1xf32>
    %cst_68 = arith.constant 3.200000e+01 : f32
    %185 = vector.broadcast %cst_68 : f32 to vector<8x1xf32>
    %186 = arith.divf %184, %185 : vector<8x1xf32>
    %187 = vector.broadcast %179 : vector<8x1xf32> to vector<8x32xf32>
    %188 = arith.subf %173, %187 : vector<8x32xf32>
    %cst_69 = arith.constant 9.99999974E-6 : f32
    %189 = vector.broadcast %cst_69 : f32 to vector<8x1xf32>
    %190 = arith.addf %186, %189 : vector<8x1xf32>
    %191 = math.rsqrt %190 : vector<8x1xf32>
    %192 = vector.broadcast %191 : vector<8x1xf32> to vector<8x32xf32>
    %193 = arith.mulf %188, %192 : vector<8x32xf32>
    %194 = vector.broadcast %174 : vector<1x32xf32> to vector<8x32xf32>
    %195 = arith.mulf %193, %194 : vector<8x32xf32>
    %196 = vector.broadcast %175 : vector<1x32xf32> to vector<8x32xf32>
    %197 = arith.addf %195, %196 : vector<8x32xf32>
    %198 = vector.extract_strided_slice %9 {offsets = [0, 128], sizes = [8, 128], strides = [1, 1]} : vector<8x256xf32> to vector<8x128xf32>
    %c1_70 = arith.constant 1 : index
    %c0_71 = arith.constant 0 : index
    %c0_72 = arith.constant 0 : index
    %199 = vector.load %arg4[%c1_70, %c0_71, %c0_72] : memref<2x256x32xf32, #tpu.memory_space<vmem>>, vector<1x256x32xf32>
    %200 = vector.shape_cast %199 : vector<1x256x32xf32> to vector<256x32xf32>
    %c0_73 = arith.constant 0 : index
    %c384 = arith.constant 384 : index
    %201 = vector.load %arg2[%c0_73, %c384] : memref<32x1408xf32, #tpu.memory_space<vmem>>, vector<32x32xf32>
    %c8 = arith.constant 8 : index
    %c0_74 = arith.constant 0 : index
    %202 = vector.load %arg5[%c8, %c0_74] : memref<26x384xf32, #tpu.memory_space<vmem>>, vector<1x32xf32>
    %203 = vector.extract_strided_slice %198 {offsets = [0, 0], sizes = [8, 32], strides = [1, 1]} : vector<8x128xf32> to vector<8x32xf32>
    %204 = vector.extract_strided_slice %198 {offsets = [0, 32], sizes = [8, 32], strides = [1, 1]} : vector<8x128xf32> to vector<8x32xf32>
    %205 = vector.extract_strided_slice %198 {offsets = [0, 64], sizes = [8, 32], strides = [1, 1]} : vector<8x128xf32> to vector<8x32xf32>
    %206 = tpu.concatenate %203, %203, %203, %203, %203, %203, %203, %203 in 1 : vector<8x32xf32>, vector<8x32xf32>, vector<8x32xf32>, vector<8x32xf32>, vector<8x32xf32>, vector<8x32xf32>, vector<8x32xf32>, vector<8x32xf32> -> vector<8x256xf32>
    %207 = arith.mulf %206, %4 : vector<8x256xf32>
    %cst_75 = arith.constant dense<0.000000e+00> : vector<8x32xf32>
    %208 = tpu.matmul %207, %200, %cst_75 {dimension_numbers = #tpu.dot_dimension_numbers<[1], [0], [0], [1], [0, 0, 1, 1], [], []>} : vector<8x256xf32>, vector<256x32xf32>, vector<8x32xf32> -> vector<8x32xf32>
    %209 = vector.extract_strided_slice %203 {offsets = [0, 0], sizes = [8, 8], strides = [1, 1]} : vector<8x32xf32> to vector<8x8xf32>
    %210 = vector.extract_strided_slice %204 {offsets = [0, 0], sizes = [8, 8], strides = [1, 1]} : vector<8x32xf32> to vector<8x8xf32>
    %211 = vector.extract_strided_slice %205 {offsets = [0, 0], sizes = [8, 8], strides = [1, 1]} : vector<8x32xf32> to vector<8x8xf32>
    %cst_76 = arith.constant dense<0.000000e+00> : vector<8x8xf32>
    %212 = tpu.matmul %209, %210, %cst_76 {dimension_numbers = #tpu.dot_dimension_numbers<[1], [1], [0], [0], [0, 0, 1, 0], [], []>} : vector<8x8xf32>, vector<8x8xf32>, vector<8x8xf32> -> vector<8x8xf32>
    %cst_77 = arith.constant 2.82842708 : f32
    %213 = vector.broadcast %cst_77 : f32 to vector<8x8xf32>
    %214 = arith.mulf %212, %213 : vector<8x8xf32>
    %215 = vector.extract_strided_slice %208 {offsets = [0, 0], sizes = [8, 8], strides = [1, 1]} : vector<8x32xf32> to vector<8x8xf32>
    %216 = arith.addf %214, %215 : vector<8x8xf32>
    %cst_78 = arith.constant -1.000000e+30 : f32
    %217 = vector.broadcast %cst_78 : f32 to vector<8x8xf32>
    %218 = arith.select %3, %216, %217 : vector<8x8xi1>, vector<8x8xf32>
    %cst_79 = arith.constant dense<0xFF800000> : vector<8xf32>
    %219 = vector.multi_reduction <maximumf>, %218, %cst_79 [1] : vector<8x8xf32> to vector<8xf32>
    %220 = vector.shape_cast %219 : vector<8xf32> to vector<8x1xf32>
    %221 = vector.broadcast %220 : vector<8x1xf32> to vector<8x8xf32>
    %222 = arith.subf %218, %221 : vector<8x8xf32>
    %223 = math.exp %222 : vector<8x8xf32>
    %cst_80 = arith.constant dense<0.000000e+00> : vector<8xf32>
    %224 = vector.multi_reduction <add>, %223, %cst_80 [1] : vector<8x8xf32> to vector<8xf32>
    %225 = vector.shape_cast %224 : vector<8xf32> to vector<8x1xf32>
    %226 = vector.broadcast %225 : vector<8x1xf32> to vector<8x8xf32>
    %227 = arith.divf %223, %226 : vector<8x8xf32>
    %cst_81 = arith.constant dense<0.000000e+00> : vector<8x8xf32>
    %228 = tpu.matmul %227, %211, %cst_81 {dimension_numbers = #tpu.dot_dimension_numbers<[1], [0], [0], [1], [0, 0, 1, 1], [], []>} : vector<8x8xf32>, vector<8x8xf32>, vector<8x8xf32> -> vector<8x8xf32>
    %229 = vector.extract_strided_slice %203 {offsets = [0, 8], sizes = [8, 8], strides = [1, 1]} : vector<8x32xf32> to vector<8x8xf32>
    %230 = vector.extract_strided_slice %204 {offsets = [0, 8], sizes = [8, 8], strides = [1, 1]} : vector<8x32xf32> to vector<8x8xf32>
    %231 = vector.extract_strided_slice %205 {offsets = [0, 8], sizes = [8, 8], strides = [1, 1]} : vector<8x32xf32> to vector<8x8xf32>
    %cst_82 = arith.constant dense<0.000000e+00> : vector<8x8xf32>
    %232 = tpu.matmul %229, %230, %cst_82 {dimension_numbers = #tpu.dot_dimension_numbers<[1], [1], [0], [0], [0, 0, 1, 0], [], []>} : vector<8x8xf32>, vector<8x8xf32>, vector<8x8xf32> -> vector<8x8xf32>
    %cst_83 = arith.constant 2.82842708 : f32
    %233 = vector.broadcast %cst_83 : f32 to vector<8x8xf32>
    %234 = arith.mulf %232, %233 : vector<8x8xf32>
    %235 = vector.extract_strided_slice %208 {offsets = [0, 8], sizes = [8, 8], strides = [1, 1]} : vector<8x32xf32> to vector<8x8xf32>
    %236 = arith.addf %234, %235 : vector<8x8xf32>
    %cst_84 = arith.constant -1.000000e+30 : f32
    %237 = vector.broadcast %cst_84 : f32 to vector<8x8xf32>
    %238 = arith.select %3, %236, %237 : vector<8x8xi1>, vector<8x8xf32>
    %cst_85 = arith.constant dense<0xFF800000> : vector<8xf32>
    %239 = vector.multi_reduction <maximumf>, %238, %cst_85 [1] : vector<8x8xf32> to vector<8xf32>
    %240 = vector.shape_cast %239 : vector<8xf32> to vector<8x1xf32>
    %241 = vector.broadcast %240 : vector<8x1xf32> to vector<8x8xf32>
    %242 = arith.subf %238, %241 : vector<8x8xf32>
    %243 = math.exp %242 : vector<8x8xf32>
    %cst_86 = arith.constant dense<0.000000e+00> : vector<8xf32>
    %244 = vector.multi_reduction <add>, %243, %cst_86 [1] : vector<8x8xf32> to vector<8xf32>
    %245 = vector.shape_cast %244 : vector<8xf32> to vector<8x1xf32>
    %246 = vector.broadcast %245 : vector<8x1xf32> to vector<8x8xf32>
    %247 = arith.divf %243, %246 : vector<8x8xf32>
    %cst_87 = arith.constant dense<0.000000e+00> : vector<8x8xf32>
    %248 = tpu.matmul %247, %231, %cst_87 {dimension_numbers = #tpu.dot_dimension_numbers<[1], [0], [0], [1], [0, 0, 1, 1], [], []>} : vector<8x8xf32>, vector<8x8xf32>, vector<8x8xf32> -> vector<8x8xf32>
    %249 = vector.extract_strided_slice %203 {offsets = [0, 16], sizes = [8, 8], strides = [1, 1]} : vector<8x32xf32> to vector<8x8xf32>
    %250 = vector.extract_strided_slice %204 {offsets = [0, 16], sizes = [8, 8], strides = [1, 1]} : vector<8x32xf32> to vector<8x8xf32>
    %251 = vector.extract_strided_slice %205 {offsets = [0, 16], sizes = [8, 8], strides = [1, 1]} : vector<8x32xf32> to vector<8x8xf32>
    %cst_88 = arith.constant dense<0.000000e+00> : vector<8x8xf32>
    %252 = tpu.matmul %249, %250, %cst_88 {dimension_numbers = #tpu.dot_dimension_numbers<[1], [1], [0], [0], [0, 0, 1, 0], [], []>} : vector<8x8xf32>, vector<8x8xf32>, vector<8x8xf32> -> vector<8x8xf32>
    %cst_89 = arith.constant 2.82842708 : f32
    %253 = vector.broadcast %cst_89 : f32 to vector<8x8xf32>
    %254 = arith.mulf %252, %253 : vector<8x8xf32>
    %255 = vector.extract_strided_slice %208 {offsets = [0, 16], sizes = [8, 8], strides = [1, 1]} : vector<8x32xf32> to vector<8x8xf32>
    %256 = arith.addf %254, %255 : vector<8x8xf32>
    %cst_90 = arith.constant -1.000000e+30 : f32
    %257 = vector.broadcast %cst_90 : f32 to vector<8x8xf32>
    %258 = arith.select %3, %256, %257 : vector<8x8xi1>, vector<8x8xf32>
    %cst_91 = arith.constant dense<0xFF800000> : vector<8xf32>
    %259 = vector.multi_reduction <maximumf>, %258, %cst_91 [1] : vector<8x8xf32> to vector<8xf32>
    %260 = vector.shape_cast %259 : vector<8xf32> to vector<8x1xf32>
    %261 = vector.broadcast %260 : vector<8x1xf32> to vector<8x8xf32>
    %262 = arith.subf %258, %261 : vector<8x8xf32>
    %263 = math.exp %262 : vector<8x8xf32>
    %cst_92 = arith.constant dense<0.000000e+00> : vector<8xf32>
    %264 = vector.multi_reduction <add>, %263, %cst_92 [1] : vector<8x8xf32> to vector<8xf32>
    %265 = vector.shape_cast %264 : vector<8xf32> to vector<8x1xf32>
    %266 = vector.broadcast %265 : vector<8x1xf32> to vector<8x8xf32>
    %267 = arith.divf %263, %266 : vector<8x8xf32>
    %cst_93 = arith.constant dense<0.000000e+00> : vector<8x8xf32>
    %268 = tpu.matmul %267, %251, %cst_93 {dimension_numbers = #tpu.dot_dimension_numbers<[1], [0], [0], [1], [0, 0, 1, 1], [], []>} : vector<8x8xf32>, vector<8x8xf32>, vector<8x8xf32> -> vector<8x8xf32>
    %269 = vector.extract_strided_slice %203 {offsets = [0, 24], sizes = [8, 8], strides = [1, 1]} : vector<8x32xf32> to vector<8x8xf32>
    %270 = vector.extract_strided_slice %204 {offsets = [0, 24], sizes = [8, 8], strides = [1, 1]} : vector<8x32xf32> to vector<8x8xf32>
    %271 = vector.extract_strided_slice %205 {offsets = [0, 24], sizes = [8, 8], strides = [1, 1]} : vector<8x32xf32> to vector<8x8xf32>
    %cst_94 = arith.constant dense<0.000000e+00> : vector<8x8xf32>
    %272 = tpu.matmul %269, %270, %cst_94 {dimension_numbers = #tpu.dot_dimension_numbers<[1], [1], [0], [0], [0, 0, 1, 0], [], []>} : vector<8x8xf32>, vector<8x8xf32>, vector<8x8xf32> -> vector<8x8xf32>
    %cst_95 = arith.constant 2.82842708 : f32
    %273 = vector.broadcast %cst_95 : f32 to vector<8x8xf32>
    %274 = arith.mulf %272, %273 : vector<8x8xf32>
    %275 = vector.extract_strided_slice %208 {offsets = [0, 24], sizes = [8, 8], strides = [1, 1]} : vector<8x32xf32> to vector<8x8xf32>
    %276 = arith.addf %274, %275 : vector<8x8xf32>
    %cst_96 = arith.constant -1.000000e+30 : f32
    %277 = vector.broadcast %cst_96 : f32 to vector<8x8xf32>
    %278 = arith.select %3, %276, %277 : vector<8x8xi1>, vector<8x8xf32>
    %cst_97 = arith.constant dense<0xFF800000> : vector<8xf32>
    %279 = vector.multi_reduction <maximumf>, %278, %cst_97 [1] : vector<8x8xf32> to vector<8xf32>
    %280 = vector.shape_cast %279 : vector<8xf32> to vector<8x1xf32>
    %281 = vector.broadcast %280 : vector<8x1xf32> to vector<8x8xf32>
    %282 = arith.subf %278, %281 : vector<8x8xf32>
    %283 = math.exp %282 : vector<8x8xf32>
    %cst_98 = arith.constant dense<0.000000e+00> : vector<8xf32>
    %284 = vector.multi_reduction <add>, %283, %cst_98 [1] : vector<8x8xf32> to vector<8xf32>
    %285 = vector.shape_cast %284 : vector<8xf32> to vector<8x1xf32>
    %286 = vector.broadcast %285 : vector<8x1xf32> to vector<8x8xf32>
    %287 = arith.divf %283, %286 : vector<8x8xf32>
    %cst_99 = arith.constant dense<0.000000e+00> : vector<8x8xf32>
    %288 = tpu.matmul %287, %271, %cst_99 {dimension_numbers = #tpu.dot_dimension_numbers<[1], [0], [0], [1], [0, 0, 1, 1], [], []>} : vector<8x8xf32>, vector<8x8xf32>, vector<8x8xf32> -> vector<8x8xf32>
    %289 = tpu.concatenate %228, %248, %268, %288 in 1 : vector<8x8xf32>, vector<8x8xf32>, vector<8x8xf32>, vector<8x8xf32> -> vector<8x32xf32>
    %cst_100 = arith.constant dense<0.000000e+00> : vector<8x32xf32>
    %290 = tpu.matmul %289, %201, %cst_100 {dimension_numbers = #tpu.dot_dimension_numbers<[1], [0], [0], [1], [0, 0, 1, 1], [], []>} : vector<8x32xf32>, vector<32x32xf32>, vector<8x32xf32> -> vector<8x32xf32>
    %291 = vector.broadcast %202 : vector<1x32xf32> to vector<8x32xf32>
    %292 = arith.addf %290, %291 : vector<8x32xf32>
    %293 = arith.addf %0, %292 : vector<8x32xf32>
    %c9 = arith.constant 9 : index
    %c0_101 = arith.constant 0 : index
    %294 = vector.load %arg5[%c9, %c0_101] : memref<26x384xf32, #tpu.memory_space<vmem>>, vector<1x32xf32>
    %c10 = arith.constant 10 : index
    %c0_102 = arith.constant 0 : index
    %295 = vector.load %arg5[%c10, %c0_102] : memref<26x384xf32, #tpu.memory_space<vmem>>, vector<1x32xf32>
    %cst_103 = arith.constant dense<0.000000e+00> : vector<8xf32>
    %296 = vector.multi_reduction <add>, %293, %cst_103 [1] : vector<8x32xf32> to vector<8xf32>
    %297 = vector.shape_cast %296 : vector<8xf32> to vector<8x1xf32>
    %cst_104 = arith.constant 3.200000e+01 : f32
    %298 = vector.broadcast %cst_104 : f32 to vector<8x1xf32>
    %299 = arith.divf %297, %298 : vector<8x1xf32>
    %300 = vector.broadcast %299 : vector<8x1xf32> to vector<8x32xf32>
    %301 = arith.subf %293, %300 : vector<8x32xf32>
    %302 = arith.mulf %301, %301 : vector<8x32xf32>
    %cst_105 = arith.constant dense<0.000000e+00> : vector<8xf32>
    %303 = vector.multi_reduction <add>, %302, %cst_105 [1] : vector<8x32xf32> to vector<8xf32>
    %304 = vector.shape_cast %303 : vector<8xf32> to vector<8x1xf32>
    %cst_106 = arith.constant 3.200000e+01 : f32
    %305 = vector.broadcast %cst_106 : f32 to vector<8x1xf32>
    %306 = arith.divf %304, %305 : vector<8x1xf32>
    %307 = vector.broadcast %299 : vector<8x1xf32> to vector<8x32xf32>
    %308 = arith.subf %293, %307 : vector<8x32xf32>
    %cst_107 = arith.constant 9.99999974E-6 : f32
    %309 = vector.broadcast %cst_107 : f32 to vector<8x1xf32>
    %310 = arith.addf %306, %309 : vector<8x1xf32>
    %311 = math.rsqrt %310 : vector<8x1xf32>
    %312 = vector.broadcast %311 : vector<8x1xf32> to vector<8x32xf32>
    %313 = arith.mulf %308, %312 : vector<8x32xf32>
    %314 = vector.broadcast %294 : vector<1x32xf32> to vector<8x32xf32>
    %315 = arith.mulf %313, %314 : vector<8x32xf32>
    %316 = vector.broadcast %295 : vector<1x32xf32> to vector<8x32xf32>
    %317 = arith.addf %315, %316 : vector<8x32xf32>
    %318 = arith.addf %293, %317 : vector<8x32xf32>
    %319 = arith.addf %318, %197 : vector<8x32xf32>
    %c0_108 = arith.constant 0 : index
    %c128 = arith.constant 128 : index
    %320 = vector.load %arg2[%c0_108, %c128] : memref<32x1408xf32, #tpu.memory_space<vmem>>, vector<32x128xf32>
    %cst_109 = arith.constant dense<0.000000e+00> : vector<8x128xf32>
    %321 = tpu.matmul %319, %320, %cst_109 {dimension_numbers = #tpu.dot_dimension_numbers<[1], [0], [0], [1], [0, 0, 1, 1], [], []>} : vector<8x32xf32>, vector<32x128xf32>, vector<8x128xf32> -> vector<8x128xf32>
    %c0_110 = arith.constant 0 : index
    %c128_111 = arith.constant 128 : index
    %322 = vector.load %arg5[%c0_110, %c128_111] : memref<26x384xf32, #tpu.memory_space<vmem>>, vector<1x128xf32>
    %323 = vector.broadcast %322 : vector<1x128xf32> to vector<8x128xf32>
    %324 = arith.addf %321, %323 : vector<8x128xf32>
    %c1_112 = arith.constant 1 : index
    %c0_113 = arith.constant 0 : index
    %c0_114 = arith.constant 0 : index
    %325 = vector.load %arg4[%c1_112, %c0_113, %c0_114] : memref<2x256x32xf32, #tpu.memory_space<vmem>>, vector<1x256x32xf32>
    %326 = vector.shape_cast %325 : vector<1x256x32xf32> to vector<256x32xf32>
    %c0_115 = arith.constant 0 : index
    %c384_116 = arith.constant 384 : index
    %327 = vector.load %arg2[%c0_115, %c384_116] : memref<32x1408xf32, #tpu.memory_space<vmem>>, vector<32x32xf32>
    %c8_117 = arith.constant 8 : index
    %c0_118 = arith.constant 0 : index
    %328 = vector.load %arg5[%c8_117, %c0_118] : memref<26x384xf32, #tpu.memory_space<vmem>>, vector<1x32xf32>
    %329 = vector.extract_strided_slice %324 {offsets = [0, 0], sizes = [8, 32], strides = [1, 1]} : vector<8x128xf32> to vector<8x32xf32>
    %330 = vector.extract_strided_slice %324 {offsets = [0, 32], sizes = [8, 32], strides = [1, 1]} : vector<8x128xf32> to vector<8x32xf32>
    %331 = vector.extract_strided_slice %324 {offsets = [0, 64], sizes = [8, 32], strides = [1, 1]} : vector<8x128xf32> to vector<8x32xf32>
    %332 = tpu.concatenate %329, %329, %329, %329, %329, %329, %329, %329 in 1 : vector<8x32xf32>, vector<8x32xf32>, vector<8x32xf32>, vector<8x32xf32>, vector<8x32xf32>, vector<8x32xf32>, vector<8x32xf32>, vector<8x32xf32> -> vector<8x256xf32>
    %333 = arith.mulf %332, %4 : vector<8x256xf32>
    %cst_119 = arith.constant dense<0.000000e+00> : vector<8x32xf32>
    %334 = tpu.matmul %333, %326, %cst_119 {dimension_numbers = #tpu.dot_dimension_numbers<[1], [0], [0], [1], [0, 0, 1, 1], [], []>} : vector<8x256xf32>, vector<256x32xf32>, vector<8x32xf32> -> vector<8x32xf32>
    %335 = vector.extract_strided_slice %329 {offsets = [0, 0], sizes = [8, 8], strides = [1, 1]} : vector<8x32xf32> to vector<8x8xf32>
    %336 = vector.extract_strided_slice %330 {offsets = [0, 0], sizes = [8, 8], strides = [1, 1]} : vector<8x32xf32> to vector<8x8xf32>
    %337 = vector.extract_strided_slice %331 {offsets = [0, 0], sizes = [8, 8], strides = [1, 1]} : vector<8x32xf32> to vector<8x8xf32>
    %cst_120 = arith.constant dense<0.000000e+00> : vector<8x8xf32>
    %338 = tpu.matmul %335, %336, %cst_120 {dimension_numbers = #tpu.dot_dimension_numbers<[1], [1], [0], [0], [0, 0, 1, 0], [], []>} : vector<8x8xf32>, vector<8x8xf32>, vector<8x8xf32> -> vector<8x8xf32>
    %cst_121 = arith.constant 2.82842708 : f32
    %339 = vector.broadcast %cst_121 : f32 to vector<8x8xf32>
    %340 = arith.mulf %338, %339 : vector<8x8xf32>
    %341 = vector.extract_strided_slice %334 {offsets = [0, 0], sizes = [8, 8], strides = [1, 1]} : vector<8x32xf32> to vector<8x8xf32>
    %342 = arith.addf %340, %341 : vector<8x8xf32>
    %cst_122 = arith.constant dense<0xFF800000> : vector<8xf32>
    %343 = vector.multi_reduction <maximumf>, %342, %cst_122 [1] : vector<8x8xf32> to vector<8xf32>
    %344 = vector.shape_cast %343 : vector<8xf32> to vector<8x1xf32>
    %345 = vector.broadcast %344 : vector<8x1xf32> to vector<8x8xf32>
    %346 = arith.subf %342, %345 : vector<8x8xf32>
    %347 = math.exp %346 : vector<8x8xf32>
    %cst_123 = arith.constant dense<0.000000e+00> : vector<8xf32>
    %348 = vector.multi_reduction <add>, %347, %cst_123 [1] : vector<8x8xf32> to vector<8xf32>
    %349 = vector.shape_cast %348 : vector<8xf32> to vector<8x1xf32>
    %350 = vector.broadcast %349 : vector<8x1xf32> to vector<8x8xf32>
    %351 = arith.divf %347, %350 : vector<8x8xf32>
    %cst_124 = arith.constant dense<0.000000e+00> : vector<8x8xf32>
    %352 = tpu.matmul %351, %337, %cst_124 {dimension_numbers = #tpu.dot_dimension_numbers<[1], [0], [0], [1], [0, 0, 1, 1], [], []>} : vector<8x8xf32>, vector<8x8xf32>, vector<8x8xf32> -> vector<8x8xf32>
    %353 = vector.extract_strided_slice %329 {offsets = [0, 8], sizes = [8, 8], strides = [1, 1]} : vector<8x32xf32> to vector<8x8xf32>
    %354 = vector.extract_strided_slice %330 {offsets = [0, 8], sizes = [8, 8], strides = [1, 1]} : vector<8x32xf32> to vector<8x8xf32>
    %355 = vector.extract_strided_slice %331 {offsets = [0, 8], sizes = [8, 8], strides = [1, 1]} : vector<8x32xf32> to vector<8x8xf32>
    %cst_125 = arith.constant dense<0.000000e+00> : vector<8x8xf32>
    %356 = tpu.matmul %353, %354, %cst_125 {dimension_numbers = #tpu.dot_dimension_numbers<[1], [1], [0], [0], [0, 0, 1, 0], [], []>} : vector<8x8xf32>, vector<8x8xf32>, vector<8x8xf32> -> vector<8x8xf32>
    %cst_126 = arith.constant 2.82842708 : f32
    %357 = vector.broadcast %cst_126 : f32 to vector<8x8xf32>
    %358 = arith.mulf %356, %357 : vector<8x8xf32>
    %359 = vector.extract_strided_slice %334 {offsets = [0, 8], sizes = [8, 8], strides = [1, 1]} : vector<8x32xf32> to vector<8x8xf32>
    %360 = arith.addf %358, %359 : vector<8x8xf32>
    %cst_127 = arith.constant dense<0xFF800000> : vector<8xf32>
    %361 = vector.multi_reduction <maximumf>, %360, %cst_127 [1] : vector<8x8xf32> to vector<8xf32>
    %362 = vector.shape_cast %361 : vector<8xf32> to vector<8x1xf32>
    %363 = vector.broadcast %362 : vector<8x1xf32> to vector<8x8xf32>
    %364 = arith.subf %360, %363 : vector<8x8xf32>
    %365 = math.exp %364 : vector<8x8xf32>
    %cst_128 = arith.constant dense<0.000000e+00> : vector<8xf32>
    %366 = vector.multi_reduction <add>, %365, %cst_128 [1] : vector<8x8xf32> to vector<8xf32>
    %367 = vector.shape_cast %366 : vector<8xf32> to vector<8x1xf32>
    %368 = vector.broadcast %367 : vector<8x1xf32> to vector<8x8xf32>
    %369 = arith.divf %365, %368 : vector<8x8xf32>
    %cst_129 = arith.constant dense<0.000000e+00> : vector<8x8xf32>
    %370 = tpu.matmul %369, %355, %cst_129 {dimension_numbers = #tpu.dot_dimension_numbers<[1], [0], [0], [1], [0, 0, 1, 1], [], []>} : vector<8x8xf32>, vector<8x8xf32>, vector<8x8xf32> -> vector<8x8xf32>
    %371 = vector.extract_strided_slice %329 {offsets = [0, 16], sizes = [8, 8], strides = [1, 1]} : vector<8x32xf32> to vector<8x8xf32>
    %372 = vector.extract_strided_slice %330 {offsets = [0, 16], sizes = [8, 8], strides = [1, 1]} : vector<8x32xf32> to vector<8x8xf32>
    %373 = vector.extract_strided_slice %331 {offsets = [0, 16], sizes = [8, 8], strides = [1, 1]} : vector<8x32xf32> to vector<8x8xf32>
    %cst_130 = arith.constant dense<0.000000e+00> : vector<8x8xf32>
    %374 = tpu.matmul %371, %372, %cst_130 {dimension_numbers = #tpu.dot_dimension_numbers<[1], [1], [0], [0], [0, 0, 1, 0], [], []>} : vector<8x8xf32>, vector<8x8xf32>, vector<8x8xf32> -> vector<8x8xf32>
    %cst_131 = arith.constant 2.82842708 : f32
    %375 = vector.broadcast %cst_131 : f32 to vector<8x8xf32>
    %376 = arith.mulf %374, %375 : vector<8x8xf32>
    %377 = vector.extract_strided_slice %334 {offsets = [0, 16], sizes = [8, 8], strides = [1, 1]} : vector<8x32xf32> to vector<8x8xf32>
    %378 = arith.addf %376, %377 : vector<8x8xf32>
    %cst_132 = arith.constant dense<0xFF800000> : vector<8xf32>
    %379 = vector.multi_reduction <maximumf>, %378, %cst_132 [1] : vector<8x8xf32> to vector<8xf32>
    %380 = vector.shape_cast %379 : vector<8xf32> to vector<8x1xf32>
    %381 = vector.broadcast %380 : vector<8x1xf32> to vector<8x8xf32>
    %382 = arith.subf %378, %381 : vector<8x8xf32>
    %383 = math.exp %382 : vector<8x8xf32>
    %cst_133 = arith.constant dense<0.000000e+00> : vector<8xf32>
    %384 = vector.multi_reduction <add>, %383, %cst_133 [1] : vector<8x8xf32> to vector<8xf32>
    %385 = vector.shape_cast %384 : vector<8xf32> to vector<8x1xf32>
    %386 = vector.broadcast %385 : vector<8x1xf32> to vector<8x8xf32>
    %387 = arith.divf %383, %386 : vector<8x8xf32>
    %cst_134 = arith.constant dense<0.000000e+00> : vector<8x8xf32>
    %388 = tpu.matmul %387, %373, %cst_134 {dimension_numbers = #tpu.dot_dimension_numbers<[1], [0], [0], [1], [0, 0, 1, 1], [], []>} : vector<8x8xf32>, vector<8x8xf32>, vector<8x8xf32> -> vector<8x8xf32>
    %389 = vector.extract_strided_slice %329 {offsets = [0, 24], sizes = [8, 8], strides = [1, 1]} : vector<8x32xf32> to vector<8x8xf32>
    %390 = vector.extract_strided_slice %330 {offsets = [0, 24], sizes = [8, 8], strides = [1, 1]} : vector<8x32xf32> to vector<8x8xf32>
    %391 = vector.extract_strided_slice %331 {offsets = [0, 24], sizes = [8, 8], strides = [1, 1]} : vector<8x32xf32> to vector<8x8xf32>
    %cst_135 = arith.constant dense<0.000000e+00> : vector<8x8xf32>
    %392 = tpu.matmul %389, %390, %cst_135 {dimension_numbers = #tpu.dot_dimension_numbers<[1], [1], [0], [0], [0, 0, 1, 0], [], []>} : vector<8x8xf32>, vector<8x8xf32>, vector<8x8xf32> -> vector<8x8xf32>
    %cst_136 = arith.constant 2.82842708 : f32
    %393 = vector.broadcast %cst_136 : f32 to vector<8x8xf32>
    %394 = arith.mulf %392, %393 : vector<8x8xf32>
    %395 = vector.extract_strided_slice %334 {offsets = [0, 24], sizes = [8, 8], strides = [1, 1]} : vector<8x32xf32> to vector<8x8xf32>
    %396 = arith.addf %394, %395 : vector<8x8xf32>
    %cst_137 = arith.constant dense<0xFF800000> : vector<8xf32>
    %397 = vector.multi_reduction <maximumf>, %396, %cst_137 [1] : vector<8x8xf32> to vector<8xf32>
    %398 = vector.shape_cast %397 : vector<8xf32> to vector<8x1xf32>
    %399 = vector.broadcast %398 : vector<8x1xf32> to vector<8x8xf32>
    %400 = arith.subf %396, %399 : vector<8x8xf32>
    %401 = math.exp %400 : vector<8x8xf32>
    %cst_138 = arith.constant dense<0.000000e+00> : vector<8xf32>
    %402 = vector.multi_reduction <add>, %401, %cst_138 [1] : vector<8x8xf32> to vector<8xf32>
    %403 = vector.shape_cast %402 : vector<8xf32> to vector<8x1xf32>
    %404 = vector.broadcast %403 : vector<8x1xf32> to vector<8x8xf32>
    %405 = arith.divf %401, %404 : vector<8x8xf32>
    %cst_139 = arith.constant dense<0.000000e+00> : vector<8x8xf32>
    %406 = tpu.matmul %405, %391, %cst_139 {dimension_numbers = #tpu.dot_dimension_numbers<[1], [0], [0], [1], [0, 0, 1, 1], [], []>} : vector<8x8xf32>, vector<8x8xf32>, vector<8x8xf32> -> vector<8x8xf32>
    %407 = tpu.concatenate %352, %370, %388, %406 in 1 : vector<8x8xf32>, vector<8x8xf32>, vector<8x8xf32>, vector<8x8xf32> -> vector<8x32xf32>
    %cst_140 = arith.constant dense<0.000000e+00> : vector<8x32xf32>
    %408 = tpu.matmul %407, %327, %cst_140 {dimension_numbers = #tpu.dot_dimension_numbers<[1], [0], [0], [1], [0, 0, 1, 1], [], []>} : vector<8x32xf32>, vector<32x32xf32>, vector<8x32xf32> -> vector<8x32xf32>
    %409 = vector.broadcast %328 : vector<1x32xf32> to vector<8x32xf32>
    %410 = arith.addf %408, %409 : vector<8x32xf32>
    %411 = arith.addf %319, %410 : vector<8x32xf32>
    %c9_141 = arith.constant 9 : index
    %c0_142 = arith.constant 0 : index
    %412 = vector.load %arg5[%c9_141, %c0_142] : memref<26x384xf32, #tpu.memory_space<vmem>>, vector<1x32xf32>
    %c10_143 = arith.constant 10 : index
    %c0_144 = arith.constant 0 : index
    %413 = vector.load %arg5[%c10_143, %c0_144] : memref<26x384xf32, #tpu.memory_space<vmem>>, vector<1x32xf32>
    %cst_145 = arith.constant dense<0.000000e+00> : vector<8xf32>
    %414 = vector.multi_reduction <add>, %411, %cst_145 [1] : vector<8x32xf32> to vector<8xf32>
    %415 = vector.shape_cast %414 : vector<8xf32> to vector<8x1xf32>
    %cst_146 = arith.constant 3.200000e+01 : f32
    %416 = vector.broadcast %cst_146 : f32 to vector<8x1xf32>
    %417 = arith.divf %415, %416 : vector<8x1xf32>
    %418 = vector.broadcast %417 : vector<8x1xf32> to vector<8x32xf32>
    %419 = arith.subf %411, %418 : vector<8x32xf32>
    %420 = arith.mulf %419, %419 : vector<8x32xf32>
    %cst_147 = arith.constant dense<0.000000e+00> : vector<8xf32>
    %421 = vector.multi_reduction <add>, %420, %cst_147 [1] : vector<8x32xf32> to vector<8xf32>
    %422 = vector.shape_cast %421 : vector<8xf32> to vector<8x1xf32>
    %cst_148 = arith.constant 3.200000e+01 : f32
    %423 = vector.broadcast %cst_148 : f32 to vector<8x1xf32>
    %424 = arith.divf %422, %423 : vector<8x1xf32>
    %425 = vector.broadcast %417 : vector<8x1xf32> to vector<8x32xf32>
    %426 = arith.subf %411, %425 : vector<8x32xf32>
    %cst_149 = arith.constant 9.99999974E-6 : f32
    %427 = vector.broadcast %cst_149 : f32 to vector<8x1xf32>
    %428 = arith.addf %424, %427 : vector<8x1xf32>
    %429 = math.rsqrt %428 : vector<8x1xf32>
    %430 = vector.broadcast %429 : vector<8x1xf32> to vector<8x32xf32>
    %431 = arith.mulf %426, %430 : vector<8x32xf32>
    %432 = vector.broadcast %412 : vector<1x32xf32> to vector<8x32xf32>
    %433 = arith.mulf %431, %432 : vector<8x32xf32>
    %434 = vector.broadcast %413 : vector<1x32xf32> to vector<8x32xf32>
    %435 = arith.addf %433, %434 : vector<8x32xf32>
    %436 = arith.addf %411, %435 : vector<8x32xf32>
    %c11 = arith.constant 11 : index
    %c0_150 = arith.constant 0 : index
    %437 = vector.load %arg5[%c11, %c0_150] : memref<26x384xf32, #tpu.memory_space<vmem>>, vector<1x32xf32>
    %c12 = arith.constant 12 : index
    %c0_151 = arith.constant 0 : index
    %438 = vector.load %arg5[%c12, %c0_151] : memref<26x384xf32, #tpu.memory_space<vmem>>, vector<1x32xf32>
    %cst_152 = arith.constant dense<0.000000e+00> : vector<8xf32>
    %439 = vector.multi_reduction <add>, %436, %cst_152 [1] : vector<8x32xf32> to vector<8xf32>
    %440 = vector.shape_cast %439 : vector<8xf32> to vector<8x1xf32>
    %cst_153 = arith.constant 3.200000e+01 : f32
    %441 = vector.broadcast %cst_153 : f32 to vector<8x1xf32>
    %442 = arith.divf %440, %441 : vector<8x1xf32>
    %443 = vector.broadcast %442 : vector<8x1xf32> to vector<8x32xf32>
    %444 = arith.subf %436, %443 : vector<8x32xf32>
    %445 = arith.mulf %444, %444 : vector<8x32xf32>
    %cst_154 = arith.constant dense<0.000000e+00> : vector<8xf32>
    %446 = vector.multi_reduction <add>, %445, %cst_154 [1] : vector<8x32xf32> to vector<8xf32>
    %447 = vector.shape_cast %446 : vector<8xf32> to vector<8x1xf32>
    %cst_155 = arith.constant 3.200000e+01 : f32
    %448 = vector.broadcast %cst_155 : f32 to vector<8x1xf32>
    %449 = arith.divf %447, %448 : vector<8x1xf32>
    %450 = vector.broadcast %442 : vector<8x1xf32> to vector<8x32xf32>
    %451 = arith.subf %436, %450 : vector<8x32xf32>
    %cst_156 = arith.constant 9.99999974E-6 : f32
    %452 = vector.broadcast %cst_156 : f32 to vector<8x1xf32>
    %453 = arith.addf %449, %452 : vector<8x1xf32>
    %454 = math.rsqrt %453 : vector<8x1xf32>
    %455 = vector.broadcast %454 : vector<8x1xf32> to vector<8x32xf32>
    %456 = arith.mulf %451, %455 : vector<8x32xf32>
    %457 = vector.broadcast %437 : vector<1x32xf32> to vector<8x32xf32>
    %458 = arith.mulf %456, %457 : vector<8x32xf32>
    %459 = vector.broadcast %438 : vector<1x32xf32> to vector<8x32xf32>
    %460 = arith.addf %458, %459 : vector<8x32xf32>
    %c0_157 = arith.constant 0 : index
    %c896 = arith.constant 896 : index
    %461 = vector.load %arg2[%c0_157, %c896] : memref<32x1408xf32, #tpu.memory_space<vmem>>, vector<32x384xf32>
    %c13 = arith.constant 13 : index
    %c0_158 = arith.constant 0 : index
    %462 = vector.load %arg5[%c13, %c0_158] : memref<26x384xf32, #tpu.memory_space<vmem>>, vector<1x384xf32>
    %c384_159 = arith.constant 384 : index
    %c0_160 = arith.constant 0 : index
    %463 = vector.load %arg3[%c384_159, %c0_160] : memref<768x32xf32, #tpu.memory_space<vmem>>, vector<384x32xf32>
    %c14 = arith.constant 14 : index
    %c0_161 = arith.constant 0 : index
    %464 = vector.load %arg5[%c14, %c0_161] : memref<26x384xf32, #tpu.memory_space<vmem>>, vector<1x32xf32>
    %cst_162 = arith.constant dense<0.000000e+00> : vector<8x384xf32>
    %465 = tpu.matmul %460, %461, %cst_162 {dimension_numbers = #tpu.dot_dimension_numbers<[1], [0], [0], [1], [0, 0, 1, 1], [], []>} : vector<8x32xf32>, vector<32x384xf32>, vector<8x384xf32> -> vector<8x384xf32>
    %466 = vector.broadcast %462 : vector<1x384xf32> to vector<8x384xf32>
    %467 = arith.addf %465, %466 : vector<8x384xf32>
    %cst_163 = arith.constant 5.000000e-01 : f32
    %468 = vector.broadcast %cst_163 : f32 to vector<8x384xf32>
    %469 = arith.mulf %468, %467 : vector<8x384xf32>
    %cst_164 = arith.constant 0.707106769 : f32
    %470 = vector.broadcast %cst_164 : f32 to vector<8x384xf32>
    %471 = arith.mulf %467, %470 : vector<8x384xf32>
    %cst_165 = arith.constant 0.000000e+00 : f32
    %472 = vector.broadcast %cst_165 : f32 to vector<8x384xf32>
    %473 = arith.cmpf oge, %471, %472 : vector<8x384xf32>
    %cst_166 = arith.constant 1.000000e+00 : f32
    %cst_167 = arith.constant -1.000000e+00 : f32
    %474 = vector.broadcast %cst_166 : f32 to vector<8x384xf32>
    %475 = vector.broadcast %cst_167 : f32 to vector<8x384xf32>
    %476 = arith.select %473, %474, %475 : vector<8x384xi1>, vector<8x384xf32>
    %477 = math.absf %471 : vector<8x384xf32>
    %cst_168 = arith.constant 0.327591091 : f32
    %478 = vector.broadcast %cst_168 : f32 to vector<8x384xf32>
    %479 = arith.mulf %478, %477 : vector<8x384xf32>
    %cst_169 = arith.constant 1.000000e+00 : f32
    %480 = vector.broadcast %cst_169 : f32 to vector<8x384xf32>
    %481 = arith.addf %480, %479 : vector<8x384xf32>
    %cst_170 = arith.constant 1.000000e+00 : f32
    %482 = vector.broadcast %cst_170 : f32 to vector<8x384xf32>
    %483 = arith.divf %482, %481 : vector<8x384xf32>
    %cst_171 = arith.constant 1.06140542 : f32
    %484 = vector.broadcast %cst_171 : f32 to vector<8x384xf32>
    %485 = arith.mulf %484, %483 : vector<8x384xf32>
    %cst_172 = arith.constant -1.45315206 : f32
    %486 = vector.broadcast %cst_172 : f32 to vector<8x384xf32>
    %487 = arith.addf %485, %486 : vector<8x384xf32>
    %488 = arith.mulf %487, %483 : vector<8x384xf32>
    %cst_173 = arith.constant 1.42141378 : f32
    %489 = vector.broadcast %cst_173 : f32 to vector<8x384xf32>
    %490 = arith.addf %488, %489 : vector<8x384xf32>
    %491 = arith.mulf %490, %483 : vector<8x384xf32>
    %cst_174 = arith.constant -0.284496725 : f32
    %492 = vector.broadcast %cst_174 : f32 to vector<8x384xf32>
    %493 = arith.addf %491, %492 : vector<8x384xf32>
    %494 = arith.mulf %493, %483 : vector<8x384xf32>
    %cst_175 = arith.constant 0.254829586 : f32
    %495 = vector.broadcast %cst_175 : f32 to vector<8x384xf32>
    %496 = arith.addf %494, %495 : vector<8x384xf32>
    %497 = arith.mulf %496, %483 : vector<8x384xf32>
    %cst_176 = arith.constant 0.000000e+00 : f32
    %498 = vector.broadcast %cst_176 : f32 to vector<8x384xf32>
    %499 = arith.subf %498, %477 : vector<8x384xf32>
    %500 = arith.mulf %499, %477 : vector<8x384xf32>
    %501 = math.exp %500 : vector<8x384xf32>
    %502 = arith.mulf %497, %501 : vector<8x384xf32>
    %cst_177 = arith.constant 1.000000e+00 : f32
    %503 = vector.broadcast %cst_177 : f32 to vector<8x384xf32>
    %504 = arith.subf %503, %502 : vector<8x384xf32>
    %505 = arith.mulf %476, %504 : vector<8x384xf32>
    %cst_178 = arith.constant 1.000000e+00 : f32
    %506 = vector.broadcast %cst_178 : f32 to vector<8x384xf32>
    %507 = arith.addf %506, %505 : vector<8x384xf32>
    %508 = arith.mulf %469, %507 : vector<8x384xf32>
    %cst_179 = arith.constant dense<0.000000e+00> : vector<8x32xf32>
    %509 = tpu.matmul %508, %463, %cst_179 {dimension_numbers = #tpu.dot_dimension_numbers<[1], [0], [0], [1], [0, 0, 1, 1], [], []>} : vector<8x384xf32>, vector<384x32xf32>, vector<8x32xf32> -> vector<8x32xf32>
    %510 = vector.broadcast %464 : vector<1x32xf32> to vector<8x32xf32>
    %511 = arith.addf %509, %510 : vector<8x32xf32>
    %512 = arith.addf %436, %511 : vector<8x32xf32>
    %c11_180 = arith.constant 11 : index
    %c0_181 = arith.constant 0 : index
    %513 = vector.load %arg5[%c11_180, %c0_181] : memref<26x384xf32, #tpu.memory_space<vmem>>, vector<1x32xf32>
    %c12_182 = arith.constant 12 : index
    %c0_183 = arith.constant 0 : index
    %514 = vector.load %arg5[%c12_182, %c0_183] : memref<26x384xf32, #tpu.memory_space<vmem>>, vector<1x32xf32>
    %cst_184 = arith.constant dense<0.000000e+00> : vector<8xf32>
    %515 = vector.multi_reduction <add>, %512, %cst_184 [1] : vector<8x32xf32> to vector<8xf32>
    %516 = vector.shape_cast %515 : vector<8xf32> to vector<8x1xf32>
    %cst_185 = arith.constant 3.200000e+01 : f32
    %517 = vector.broadcast %cst_185 : f32 to vector<8x1xf32>
    %518 = arith.divf %516, %517 : vector<8x1xf32>
    %519 = vector.broadcast %518 : vector<8x1xf32> to vector<8x32xf32>
    %520 = arith.subf %512, %519 : vector<8x32xf32>
    %521 = arith.mulf %520, %520 : vector<8x32xf32>
    %cst_186 = arith.constant dense<0.000000e+00> : vector<8xf32>
    %522 = vector.multi_reduction <add>, %521, %cst_186 [1] : vector<8x32xf32> to vector<8xf32>
    %523 = vector.shape_cast %522 : vector<8xf32> to vector<8x1xf32>
    %cst_187 = arith.constant 3.200000e+01 : f32
    %524 = vector.broadcast %cst_187 : f32 to vector<8x1xf32>
    %525 = arith.divf %523, %524 : vector<8x1xf32>
    %526 = vector.broadcast %518 : vector<8x1xf32> to vector<8x32xf32>
    %527 = arith.subf %512, %526 : vector<8x32xf32>
    %cst_188 = arith.constant 9.99999974E-6 : f32
    %528 = vector.broadcast %cst_188 : f32 to vector<8x1xf32>
    %529 = arith.addf %525, %528 : vector<8x1xf32>
    %530 = math.rsqrt %529 : vector<8x1xf32>
    %531 = vector.broadcast %530 : vector<8x1xf32> to vector<8x32xf32>
    %532 = arith.mulf %527, %531 : vector<8x32xf32>
    %533 = vector.broadcast %513 : vector<1x32xf32> to vector<8x32xf32>
    %534 = arith.mulf %532, %533 : vector<8x32xf32>
    %535 = vector.broadcast %514 : vector<1x32xf32> to vector<8x32xf32>
    %536 = arith.addf %534, %535 : vector<8x32xf32>
    %c15 = arith.constant 15 : index
    %c0_189 = arith.constant 0 : index
    %537 = vector.load %arg5[%c15, %c0_189] : memref<26x384xf32, #tpu.memory_space<vmem>>, vector<1x32xf32>
    %c16 = arith.constant 16 : index
    %c0_190 = arith.constant 0 : index
    %538 = vector.load %arg5[%c16, %c0_190] : memref<26x384xf32, #tpu.memory_space<vmem>>, vector<1x32xf32>
    %cst_191 = arith.constant dense<0.000000e+00> : vector<8xf32>
    %539 = vector.multi_reduction <add>, %536, %cst_191 [1] : vector<8x32xf32> to vector<8xf32>
    %540 = vector.shape_cast %539 : vector<8xf32> to vector<8x1xf32>
    %cst_192 = arith.constant 3.200000e+01 : f32
    %541 = vector.broadcast %cst_192 : f32 to vector<8x1xf32>
    %542 = arith.divf %540, %541 : vector<8x1xf32>
    %543 = vector.broadcast %542 : vector<8x1xf32> to vector<8x32xf32>
    %544 = arith.subf %536, %543 : vector<8x32xf32>
    %545 = arith.mulf %544, %544 : vector<8x32xf32>
    %cst_193 = arith.constant dense<0.000000e+00> : vector<8xf32>
    %546 = vector.multi_reduction <add>, %545, %cst_193 [1] : vector<8x32xf32> to vector<8xf32>
    %547 = vector.shape_cast %546 : vector<8xf32> to vector<8x1xf32>
    %cst_194 = arith.constant 3.200000e+01 : f32
    %548 = vector.broadcast %cst_194 : f32 to vector<8x1xf32>
    %549 = arith.divf %547, %548 : vector<8x1xf32>
    %550 = vector.broadcast %542 : vector<8x1xf32> to vector<8x32xf32>
    %551 = arith.subf %536, %550 : vector<8x32xf32>
    %cst_195 = arith.constant 9.99999974E-6 : f32
    %552 = vector.broadcast %cst_195 : f32 to vector<8x1xf32>
    %553 = arith.addf %549, %552 : vector<8x1xf32>
    %554 = math.rsqrt %553 : vector<8x1xf32>
    %555 = vector.broadcast %554 : vector<8x1xf32> to vector<8x32xf32>
    %556 = arith.mulf %551, %555 : vector<8x32xf32>
    %557 = vector.broadcast %537 : vector<1x32xf32> to vector<8x32xf32>
    %558 = arith.mulf %556, %557 : vector<8x32xf32>
    %559 = vector.broadcast %538 : vector<1x32xf32> to vector<8x32xf32>
    %560 = arith.addf %558, %559 : vector<8x32xf32>
    %c0_196 = arith.constant 0 : index
    %c1280 = arith.constant 1280 : index
    %561 = vector.load %arg2[%c0_196, %c1280] : memref<32x1408xf32, #tpu.memory_space<vmem>>, vector<32x128xf32>
    %cst_197 = arith.constant dense<0.000000e+00> : vector<8x128xf32>
    %562 = tpu.matmul %560, %561, %cst_197 {dimension_numbers = #tpu.dot_dimension_numbers<[1], [0], [0], [1], [0, 0, 1, 1], [], []>} : vector<8x32xf32>, vector<32x128xf32>, vector<8x128xf32> -> vector<8x128xf32>
    %c17 = arith.constant 17 : index
    %c0_198 = arith.constant 0 : index
    %563 = vector.load %arg5[%c17, %c0_198] : memref<26x384xf32, #tpu.memory_space<vmem>>, vector<1x128xf32>
    %564 = vector.broadcast %563 : vector<1x128xf32> to vector<8x128xf32>
    %565 = arith.addf %562, %564 : vector<8x128xf32>
    %c0_199 = arith.constant 0 : index
    %c0_200 = arith.constant 0 : index
    %566 = vector.load %arg6[%c0_199, %c0_200] : memref<8x128xf32, #tpu.memory_space<vmem>>, vector<8x128xf32>
    tpu.vector_store %arg6[%c0_199, %c0_200], %565 {strides = array<i32>} : memref<8x128xf32, #tpu.memory_space<vmem>>, vector<8x128xf32>,
    return
  }
  func.func @transform_0(%arg0: i32) -> (i32, i32) {
    %c0_i32 = arith.constant 0 : i32
    %c0_i32_0 = arith.constant 0 : i32
    return %arg0, %c0_i32 : i32, i32
  }
  func.func @transform_1(%arg0: i32) -> (i32, i32) {
    %c0_i32 = arith.constant 0 : i32
    %c0_i32_0 = arith.constant 0 : i32
    %c0_i32_1 = arith.constant 0 : i32
    return %c0_i32, %c0_i32_0 : i32, i32
  }
  func.func @transform_2(%arg0: i32) -> (i32, i32) {
    %c0_i32 = arith.constant 0 : i32
    %c0_i32_0 = arith.constant 0 : i32
    %c0_i32_1 = arith.constant 0 : i32
    return %c0_i32, %c0_i32_0 : i32, i32
  }
  func.func @transform_3(%arg0: i32) -> (i32, i32, i32) {
    %c0_i32 = arith.constant 0 : i32
    %c0_i32_0 = arith.constant 0 : i32
    %c0_i32_1 = arith.constant 0 : i32
    %c0_i32_2 = arith.constant 0 : i32
    return %c0_i32, %c0_i32_0, %c0_i32_1 : i32, i32, i32
  }
  func.func @transform_4(%arg0: i32) -> (i32, i32) {
    %c0_i32 = arith.constant 0 : i32
    %c0_i32_0 = arith.constant 0 : i32
    %c0_i32_1 = arith.constant 0 : i32
    return %c0_i32, %c0_i32_0 : i32, i32
  }
  func.func @transform_5(%arg0: i32) -> (i32, i32) {
    %c0_i32 = arith.constant 0 : i32
    %c0_i32_0 = arith.constant 0 : i32
    return %arg0, %c0_i32 : i32, i32
  }
}

</mosaic_0001>

<llo_original>
// kernel: transformer_forward.1
$region0: #{transformer_forward.1}
  #allocation0 [shape = 'u32[]', space=smem, size = 0x4, offset = 0x4, fixed_abs, tag = 'smem constant byte address 0x4 - core index']
  #allocation1 [shape = 'u32[72,128]{1,0:T(1,128)}', space=vmem, size = 0x9000, scoped, tag = 'internal scratch']
  %s0 = inlined_call_operand.vmem [shape: f32[16,32], index: 0, kind: input, shape index: {}]
  %s1 = inlined_call_operand.vmem [shape: f32[32,1408], index: 1, kind: input, shape index: {}]
  %s2 = inlined_call_operand.vmem [shape: f32[768,32], index: 2, kind: input, shape index: {}]
  %s3 = inlined_call_operand.vmem [shape: f32[2,256,32], index: 3, kind: input, shape index: {}]
  %s4 = inlined_call_operand.vmem [shape: f32[26,384], index: 4, kind: input, shape index: {}]
  %s5 = inlined_call_operand.vmem [shape: f32[16,128], index: 5, kind: output, shape index: {}]
  %s6 = sld [smem:[#allocation0]]
  $region53: #{transformer_forward.1} parent=0
    _
  %s8 = ssub.s32 1, %s6
  %s9 = scalar_select 0, %s8, %s6
  loop: start=0, step=1, limit=4
  $region2: #{transformer_forward.1} parent=0 // loop_pre_header
    _
  $region3: #{transformer_forward.1} parent=0 // loop_header
    %s11 = sphi 0, %s15
    %p12 = scmp.ge.s32.totalorder %s11, 4
    %s21 = sphi 0, %s23
    %s24 = sphi 0, %s21
    %s25 = sphi 0, %s24
    %s41 = sphi 0, %s25
    %s45 = sphi 0, %s45
    %s47 = sphi 0, %s45
    %s48 = sphi 0, %s47
    %s62 = sphi 0, %s48
    %s66 = sphi 0, %s66
    %s68 = sphi 0, %s66
    %s69 = sphi 0, %s68
    %s83 = sphi 0, %s69
    %s87 = sphi 0, %s87
    %s89 = sphi 0, %s87
    %s90 = sphi 0, %s89
    %s104 = sphi 0, %s90
    %s108 = sphi 0, %s108
    %s110 = sphi 0, %s108
    %s111 = sphi 0, %s110
    %s125 = sphi 0, %s111
    %s131 = sphi 0, %s133
    %s134 = sphi 0, %s131
    %s135 = sphi 0, %s134
    %s151 = sphi 0, %s135
  $region4: #{transformer_forward.1} parent=0 // loop_header_branch
    %14 = sbr.rel (%p12) target = $region8
  $region5: #{transformer_forward.1} parent=0 // loop_body
    %s16 = ssub.s32 %s11, 1
    %s17 = ssub.s32 %s11, 2
    %s18 = sadd.s32 %s11, 1
    %s19 = ssub.s32 %s11, %s18
    %p20 = scmp.eq.s32.totalorder %s19, 0
    %s22 = sadd.s32 %s21, 1
    %s23 = scalar_select %p20, %s21, %s22
    %p26 = pneg %p20
    %p27 = scmp.eq.s32.totalorder %s11, 1
    %p28 = por %p26, %p27
    %p29 = scmp.ne.s32.totalorder %s21, %s24
    %p30 = scmp.eq.s32.totalorder %s11, 0
    %p31 = por %p29, %p30
    %p32 = scmp.ne.s32.totalorder %s21, %s24
    %p33 = scmp.eq.s32.totalorder %s16, 1
    %p34 = por %p32, %p33
    %p35 = scmp.ne.s32.totalorder %s24, %s25
    %p36 = scmp.eq.s32.totalorder %s16, 0
    %p37 = por %p35, %p36
    %p38 = scmp.ne.s32.totalorder %s24, %s25
    %p39 = scmp.eq.s32.totalorder %s17, 1
    %p40 = por %p38, %p39
    %p42 = scmp.ne.s32.totalorder %s25, %s41
    %p43 = scmp.eq.s32.totalorder %s17, 0
    %p44 = por %p42, %p43
    %s46 = sadd.s32 %s45, 1
    %p49 = scmp.eq.s32.totalorder %s11, 1
    %p50 = scmp.ne.s32.totalorder %s45, %s47
    %p51 = scmp.eq.s32.totalorder %s11, 0
    %p52 = por %p50, %p51
    %p53 = scmp.ne.s32.totalorder %s45, %s47
    %p54 = scmp.eq.s32.totalorder %s16, 1
    %p55 = por %p53, %p54
    %p56 = scmp.ne.s32.totalorder %s47, %s48
    %p57 = scmp.eq.s32.totalorder %s16, 0
    %p58 = por %p56, %p57
    %p59 = scmp.ne.s32.totalorder %s47, %s48
    %p60 = scmp.eq.s32.totalorder %s17, 1
    %p61 = por %p59, %p60
    %p63 = scmp.ne.s32.totalorder %s48, %s62
    %p64 = scmp.eq.s32.totalorder %s17, 0
    %p65 = por %p63, %p64
    %s67 = sadd.s32 %s66, 1
    %p70 = scmp.eq.s32.totalorder %s11, 1
    %p71 = scmp.ne.s32.totalorder %s66, %s68
    %p72 = scmp.eq.s32.totalorder %s11, 0
    %p73 = por %p71, %p72
    %p74 = scmp.ne.s32.totalorder %s66, %s68
    %p75 = scmp.eq.s32.totalorder %s16, 1
    %p76 = por %p74, %p75
    %p77 = scmp.ne.s32.totalorder %s68, %s69
    %p78 = scmp.eq.s32.totalorder %s16, 0
    %p79 = por %p77, %p78
    %p80 = scmp.ne.s32.totalorder %s68, %s69
    %p81 = scmp.eq.s32.totalorder %s17, 1
    %p82 = por %p80, %p81
    %p84 = scmp.ne.s32.totalorder %s69, %s83
    %p85 = scmp.eq.s32.totalorder %s17, 0
    %p86 = por %p84, %p85
    %s88 = sadd.s32 %s87, 1
    %p91 = scmp.eq.s32.totalorder %s11, 1
    %p92 = scmp.ne.s32.totalorder %s87, %s89
    %p93 = scmp.eq.s32.totalorder %s11, 0
    %p94 = por %p92, %p93
    %p95 = scmp.ne.s32.totalorder %s87, %s89
    %p96 = scmp.eq.s32.totalorder %s16, 1
    %p97 = por %p95, %p96
    %p98 = scmp.ne.s32.totalorder %s89, %s90
    %p99 = scmp.eq.s32.totalorder %s16, 0
    %p100 = por %p98, %p99
    %p101 = scmp.ne.s32.totalorder %s89, %s90
    %p102 = scmp.eq.s32.totalorder %s17, 1
    %p103 = por %p101, %p102
    %p105 = scmp.ne.s32.totalorder %s90, %s104
    %p106 = scmp.eq.s32.totalorder %s17, 0
    %p107 = por %p105, %p106
    %s109 = sadd.s32 %s108, 1
    %p112 = scmp.eq.s32.totalorder %s11, 1
    %p113 = scmp.ne.s32.totalorder %s108, %s110
    %p114 = scmp.eq.s32.totalorder %s11, 0
    %p115 = por %p113, %p114
    %p116 = scmp.ne.s32.totalorder %s108, %s110
    %p117 = scmp.eq.s32.totalorder %s16, 1
    %p118 = por %p116, %p117
    %p119 = scmp.ne.s32.totalorder %s110, %s111
    %p120 = scmp.eq.s32.totalorder %s16, 0
    %p121 = por %p119, %p120
    %p122 = scmp.ne.s32.totalorder %s110, %s111
    %p123 = scmp.eq.s32.totalorder %s17, 1
    %p124 = por %p122, %p123
    %p126 = scmp.ne.s32.totalorder %s111, %s125
    %p127 = scmp.eq.s32.totalorder %s17, 0
    %p128 = por %p126, %p127
    %s129 = ssub.s32 %s11, %s18
    %p130 = scmp.eq.s32.totalorder %s129, 0
    %s132 = sadd.s32 %s131, 1
    %s133 = scalar_select %p130, %s131, %s132
    %p136 = pneg %p130
    %p137 = scmp.eq.s32.totalorder %s11, 1
    %p138 = por %p136, %p137
    %p139 = scmp.ne.s32.totalorder %s131, %s134
    %p140 = scmp.eq.s32.totalorder %s11, 0
    %p141 = por %p139, %p140
    %p142 = scmp.ne.s32.totalorder %s131, %s134
    %p143 = scmp.eq.s32.totalorder %s16, 1
    %p144 = por %p142, %p143
    %p145 = scmp.ne.s32.totalorder %s134, %s135
    %p146 = scmp.eq.s32.totalorder %s16, 0
    %p147 = por %p145, %p146
    %p148 = scmp.ne.s32.totalorder %s134, %s135
    %p149 = scmp.eq.s32.totalorder %s17, 1
    %p150 = por %p148, %p149
    %p152 = scmp.ne.s32.totalorder %s135, %s151
    %p153 = scmp.eq.s32.totalorder %s17, 0
    %p154 = por %p152, %p153
    %p155 = scmp.le.s32.totalorder 1, %s11
    %p156 = scmp.lt.s32.totalorder %s11, 3
    %p157 = pnand %p155, %p156
    %p158 = pneg %p157
    // Predicated region
    $region9: #{transformer_forward.1} parent=5 // pred_check
      _
    $region10: #{transformer_forward.1} parent=5 // pred_check_branch
      %160 = sbr.rel (%p157) target = $region12
    $region11: #{transformer_forward.1} parent=5 // pred_region
      %s161 = ssub.s32 %s11, 1
      // Predicated region
      $region13: #{transformer_forward.1} parent=11 // pred_check
        %p162 = pneg %p58
      $region14: #{transformer_forward.1} parent=11 // pred_check_branch
        %164 = sbr.rel (%p162) target = $region16
      $region15: #{transformer_forward.1} parent=11 // pred_region
        _
      $region16: #{transformer_forward.1} parent=11 // pred_fallthru
        _
      // Predicated region
      $region17: #{transformer_forward.1} parent=11 // pred_check
        %p165 = pneg %p79
      $region18: #{transformer_forward.1} parent=11 // pred_check_branch
        %167 = sbr.rel (%p165) target = $region20
      $region19: #{transformer_forward.1} parent=11 // pred_region
        _
      $region20: #{transformer_forward.1} parent=11 // pred_fallthru
        _
      // Predicated region
      $region21: #{transformer_forward.1} parent=11 // pred_check
        %p168 = pneg %p100
      $region22: #{transformer_forward.1} parent=11 // pred_check_branch
        %170 = sbr.rel (%p168) target = $region24
      $region23: #{transformer_forward.1} parent=11 // pred_region
        _
      $region24: #{transformer_forward.1} parent=11 // pred_fallthru
        _
      // Predicated region
      $region25: #{transformer_forward.1} parent=11 // pred_check
        %p171 = pneg %p121
      $region26: #{transformer_forward.1} parent=11 // pred_check_branch
        %173 = sbr.rel (%p171) target = $region28
      $region27: #{transformer_forward.1} parent=11 // pred_region
        _
      $region28: #{transformer_forward.1} parent=11 // pred_fallthru
        _
    $region12: #{transformer_forward.1} parent=5 // pred_fallthru
      _
    %p174 = scmp.lt.s32.totalorder %s11, 2
    // Predicated region
    $region29: #{transformer_forward.1} parent=5 // pred_check
      %p175 = pneg %p174
    $region30: #{transformer_forward.1} parent=5 // pred_check_branch
      %177 = sbr.rel (%p175) target = $region32
    $region31: #{transformer_forward.1} parent=5 // pred_region
      // Predicated region
      $region33: #{transformer_forward.1} parent=31 // pred_check
        %p178 = pneg %p31
      $region34: #{transformer_forward.1} parent=31 // pred_check_branch
        %180 = sbr.rel (%p178) target = $region36
      $region35: #{transformer_forward.1} parent=31 // pred_region
        %p181 = scmp.lt.s32.totalorder %s11, 1
        %s182 = scalar_select %p181, %s11, 1
        %s183 = smul.addr %s182, 8
        %s184 = scalar_lea.vmem %s0, %s183
      $region36: #{transformer_forward.1} parent=31 // pred_fallthru
        _
    $region32: #{transformer_forward.1} parent=5 // pred_fallthru
      _
    %p185 = scmp.le.s32.totalorder 1, %s11
    %p186 = scmp.lt.s32.totalorder %s11, 3
    %p187 = pnand %p185, %p186
    %p188 = pneg %p187
    // Predicated region
    $region37: #{transformer_forward.1} parent=5 // pred_check
      _
    $region38: #{transformer_forward.1} parent=5 // pred_check_branch
      %190 = sbr.rel (%p187) target = $region40
    $region39: #{transformer_forward.1} parent=5 // pred_region
      %s191 = ssub.s32 %s11, 1
      %p192 = scmp.lt.s32.totalorder %s16, 1
      %s193 = scalar_select %p192, %s16, 1
      %s194 = smul.addr %s193, 8
      %s195 = scalar_lea.vmem %s0, %s194
      %p196 = pneg %p37
      %p197 = pneg %p34
      %p198 = pneg %p58
      %p199 = pneg %p55
      %p200 = pneg %p79
      %p201 = pneg %p76
      %p202 = pneg %p100
      %p203 = pneg %p97
      %p204 = pneg %p121
      %p205 = pneg %p118
      %p206 = pneg %p147
      %p207 = pneg %p144
      %p208 = scmp.lt.s32.totalorder %s16, 1
      %s209 = scalar_select %p208, %s16, 1
      %s210 = smul.addr %s209, 8
      %s211 = scalar_lea.vmem %s5, %s210
      %p212 = scmp.lt.s32.totalorder %s16, 1
      %s213 = scalar_select %p212, %s16, 1
      %s214 = smul.addr %s213, 8
      %s215 = scalar_lea.vmem %s0, %s214
      %p216 = scmp.lt.s32.totalorder %s16, 1
      %s217 = scalar_select %p216, %s16, 1
      %s218 = smul.addr %s217, 8
      %s219 = scalar_lea.vmem %s5, %s218
      %v220 = vld [vmem:[%s215] sm:$0xff]
      %v221 = vlaneseq
      %v222 = vshrl.u32 %v221, 7
      %v223 = vlaneseq
      %v224 = vand.u32 %v223, 127
      %vm225 = vcmp.le.s32.totalorder %v224, %v222
      %v226 = vld [vmem:[%s4 + $0x30] sm:$0xfc]
      %v227 = vld [vmem:[%s4 + $0x38] sm:$0xfc]
      %v228 = vld [vmem:[%s4 + $0x48] sm:$0x3]
      %v229 = vld [vmem:[%s4 + $0x50] sm:$0x3]
      %v230 = vld [vmem:[%s1] sm:$0xff]
      %v231 = vld [vmem:[%s1 + $0x8] sm:$0xff]
      %v232 = vld [vmem:[%s1 + $0x58] sm:$0xff]
      %v233 = vld [vmem:[%s1 + $0x60] sm:$0xff]
      %v234 = vld [vmem:[%s1 + $0xb0] sm:$0xff]
      %v235 = vld [vmem:[%s1 + $0xb8] sm:$0xff]
      %v236 = vld [vmem:[%s1 + $0x108] sm:$0xff]
      %v237 = vld [vmem:[%s1 + $0x110] sm:$0xff]
      %v238 = vld [vmem:[%s4] ss:$8 sm:$0x3]
      %v240 = vperm.slane %v238, 0
      %v241 = vperm.slane %v238, 1
      %vm244 = vcmask 261120
      %v246 = vsel %vm244, %v220, 0
      %248 = vmatpush.msra.mxu0 0.0
      %249 = vmatpush.msra.mxu0 0.0
      %250 = vmatpush.msra.mxu0 0.0
      %251 = vmatpush.msra.mxu0 0.0
      %252 = vmatpush.msra.mxu0 0.0
      %253 = vmatpush.msra.mxu0 0.0
      %254 = vmatpush.msra.mxu0 0.0
      %255 = vmatpush.msra.mxu0 0.0
      %256 = vmatpush.msra.mxu0 0.0
      %257 = vmatpush.msra.mxu0 0.0
      %258 = vmatpush.msra.mxu0 0.0
      %259 = vmatpush.msra.mxu0 0.0
      %260 = vmatpush.msra.mxu0 %v236
      %261 = vmatpush.msra.mxu0 %v234
      %262 = vmatpush.msra.mxu0 %v232
      %263 = vmatpush.msra.mxu0 %v230
      %264 = vmatmul.f32.gmra.mxu0 %v246
      %v265 = vpop.f32.mrf.mxu0
      %v266 = vadd.f32 %v240, %v265
      %267 = vdwg.mxu0
      %268 = vmatpush.msra.mxu0 0.0
      %269 = vmatpush.msra.mxu0 0.0
      %270 = vmatpush.msra.mxu0 0.0
      %271 = vmatpush.msra.mxu0 0.0
      %272 = vmatpush.msra.mxu0 0.0
      %273 = vmatpush.msra.mxu0 0.0
      %274 = vmatpush.msra.mxu0 0.0
      %275 = vmatpush.msra.mxu0 0.0
      %276 = vmatpush.msra.mxu0 0.0
      %277 = vmatpush.msra.mxu0 0.0
      %278 = vmatpush.msra.mxu0 0.0
      %279 = vmatpush.msra.mxu0 0.0
      %280 = vmatpush.msra.mxu0 %v237
      %281 = vmatpush.msra.mxu0 %v235
      %282 = vmatpush.msra.mxu0 %v233
      %283 = vmatpush.msra.mxu0 %v231
      %284 = vmatmul.f32.gmra.mxu0 %v246
      %v285 = vpop.f32.mrf.mxu0
      %v286 = vadd.f32 %v241, %v285
      %287 = vdwg.mxu0
      %v288 = vld [vmem:[%s3] sm:$0xff]
      %v289 = vld [vmem:[%s3 + $0x8] sm:$0xff]
      %v290 = vld [vmem:[%s3 + $0x10] sm:$0xff]
      %v291 = vld [vmem:[%s3 + $0x18] sm:$0xff]
      %v292 = vld [vmem:[%s3 + $0x20] sm:$0xff]
      %v293 = vld [vmem:[%s3 + $0x28] sm:$0xff]
      %v294 = vld [vmem:[%s3 + $0x30] sm:$0xff]
      %v295 = vld [vmem:[%s3 + $0x38] sm:$0xff]
      %v296 = vld [vmem:[%s3 + $0x40] sm:$0xff]
      %v297 = vld [vmem:[%s3 + $0x48] sm:$0xff]
      %v298 = vld [vmem:[%s3 + $0x50] sm:$0xff]
      %v299 = vld [vmem:[%s3 + $0x58] sm:$0xff]
      %v300 = vld [vmem:[%s3 + $0x60] sm:$0xff]
      %v301 = vld [vmem:[%s3 + $0x68] sm:$0xff]
      %v302 = vld [vmem:[%s3 + $0x70] sm:$0xff]
      %v303 = vld [vmem:[%s3 + $0x78] sm:$0xff]
      %v304 = vld [vmem:[%s3 + $0x80] sm:$0xff]
      %v305 = vld [vmem:[%s3 + $0x88] sm:$0xff]
      %v306 = vld [vmem:[%s3 + $0x90] sm:$0xff]
      %v307 = vld [vmem:[%s3 + $0x98] sm:$0xff]
      %v308 = vld [vmem:[%s3 + $0xa0] sm:$0xff]
      %v309 = vld [vmem:[%s3 + $0xa8] sm:$0xff]
      %v310 = vld [vmem:[%s3 + $0xb0] sm:$0xff]
      %v311 = vld [vmem:[%s3 + $0xb8] sm:$0xff]
      %v312 = vld [vmem:[%s3 + $0xc0] sm:$0xff]
      %v313 = vld [vmem:[%s3 + $0xc8] sm:$0xff]
      %v314 = vld [vmem:[%s3 + $0xd0] sm:$0xff]
      %v315 = vld [vmem:[%s3 + $0xd8] sm:$0xff]
      %v316 = vld [vmem:[%s3 + $0xe0] sm:$0xff]
      %v317 = vld [vmem:[%s3 + $0xe8] sm:$0xff]
      %v318 = vld [vmem:[%s3 + $0xf0] sm:$0xff]
      %v319 = vld [vmem:[%s3 + $0xf8] sm:$0xff]
      %v320 = vld [vmem:[%s1 + $0x10] sm:$0xff]
      %v321 = vld [vmem:[%s1 + $0x68] sm:$0xff]
      %v322 = vld [vmem:[%s1 + $0xc0] sm:$0xff]
      %v323 = vld [vmem:[%s1 + $0x118] sm:$0xff]
      %v324 = vld [vmem:[%s4 + $0x1] ss:$0 sm:$0xff]
      %326 = vrot.lane.b32.xlu0 %v266, 32
      %v327 = vpop.permute.xlu0 %326
      %329 = vrot.lane.b32.xlu0 %v266, 64
      %v330 = vpop.permute.xlu0 %329
      %332 = vrot.lane.b32.xlu0 %v266, 96
      %v333 = vpop.permute.xlu0 %332
      %v335 = vsel %vm244, %v266, %v327
      %vm336 = vcmask 523264
      %v337 = vsel %vm336, %v335, %v330
      %vm338 = vcmask 785408
      %v339 = vsel %vm338, %v337, %v333
      %vm344 = vcmask 1045504
      %v345 = vrot.slane %v226, 2
      %v346 = vrot.slane %v228, 2
      %v347 = vsel %vm344, %v345, %v346
      %v348 = vrot.slane %v227, 2
      %v349 = vrot.slane %v229, 2
      %v350 = vsel %vm344, %v348, %v349
      %v353 = vmul.f32 %v339, %v347
      %v354 = vmul.f32 %v339, %v350
      %355 = vmatpush.msra.mxu0 %v303
      %356 = vmatpush.msra.mxu0 %v302
      %357 = vmatpush.msra.mxu0 %v301
      %358 = vmatpush.msra.mxu0 %v300
      %359 = vmatpush.msra.mxu0 %v299
      %360 = vmatpush.msra.mxu0 %v298
      %361 = vmatpush.msra.mxu0 %v297
      %362 = vmatpush.msra.mxu0 %v296
      %363 = vmatpush.msra.mxu0 %v295
      %364 = vmatpush.msra.mxu0 %v294
      %365 = vmatpush.msra.mxu0 %v293
      %366 = vmatpush.msra.mxu0 %v292
      %367 = vmatpush.msra.mxu0 %v291
      %368 = vmatpush.msra.mxu0 %v290
      %369 = vmatpush.msra.mxu0 %v289
      %370 = vmatpush.msra.mxu0 %v288
      %371 = vmatmul.f32.gmra.mxu0 %v353
      %v372 = vpop.f32.mrf.mxu0
      %v373 = vadd.f32 0.0, %v372
      %374 = vdwg.mxu0
      %375 = vmatpush.msra.mxu0 %v319
      %376 = vmatpush.msra.mxu0 %v318
      %377 = vmatpush.msra.mxu0 %v317
      %378 = vmatpush.msra.mxu0 %v316
      %379 = vmatpush.msra.mxu0 %v315
      %380 = vmatpush.msra.mxu0 %v314
      %381 = vmatpush.msra.mxu0 %v313
      %382 = vmatpush.msra.mxu0 %v312
      %383 = vmatpush.msra.mxu0 %v311
      %384 = vmatpush.msra.mxu0 %v310
      %385 = vmatpush.msra.mxu0 %v309
      %386 = vmatpush.msra.mxu0 %v308
      %387 = vmatpush.msra.mxu0 %v307
      %388 = vmatpush.msra.mxu0 %v306
      %389 = vmatpush.msra.mxu0 %v305
      %390 = vmatpush.msra.mxu0 %v304
      %391 = vmatmul.f32.gmra.mxu0 %v354
      %v392 = vpop.f32.mrf.mxu0
      %v393 = vadd.f32 %v373, %v392
      %394 = vdwg.mxu0
      %vm395 = vcmask 64512
      %v396 = vsel %vm395, %v266, 0
      %v398 = vsel %vm395, %v333, 0
      %400 = vmatpush.xpose.msra.mxu0 0.0
      %401 = vmatpush.xpose.msra.mxu0 0.0
      %402 = vmatpush.xpose.msra.mxu0 0.0
      %403 = vmatpush.xpose.msra.mxu0 0.0
      %404 = vmatpush.xpose.msra.mxu0 0.0
      %405 = vmatpush.xpose.msra.mxu0 0.0
      %406 = vmatpush.xpose.msra.mxu0 0.0
      %407 = vmatpush.xpose.msra.mxu0 0.0
      %408 = vmatpush.xpose.msra.mxu0 0.0
      %409 = vmatpush.xpose.msra.mxu0 0.0
      %410 = vmatpush.xpose.msra.mxu0 0.0
      %411 = vmatpush.xpose.msra.mxu0 0.0
      %412 = vmatpush.xpose.msra.mxu0 0.0
      %413 = vmatpush.xpose.msra.mxu0 0.0
      %414 = vmatpush.xpose.msra.mxu0 0.0
      %415 = vmatpush.xpose.msra.mxu0 %v398
      %416 = vmatmul.f32.gmra.mxu0 %v396
      %v417 = vpop.f32.mrf.mxu0
      %v418 = vadd.f32 0.0, %v417
      %419 = vdwg.mxu0
      %v420 = vmul.f32 %v418, 2.828427
      %v421 = vadd.f32 %v420, %v393
      %v422 = vsel %vm395, %v421, -inf
      %423 = vmax.xlane.f32.xlu0 %v422
      %v424 = vpop.xlane.xlu0 %423
      %v425 = vsub.f32 %v421, %v424
      %v426 = vmul.f32 %v425, 1.442695
      %v427 = vpow.pop %v426
      %v428 = vsel %vm395, %v427, 0.0
      %429 = vadd.xlane.f32.xlu0 %v428
      %v430 = vpop.xlane.xlu0 %429
      %v431 = vrcp.pop %v430
      %v432 = vmul.f32 %v430, %v431
      %v433 = vsub.f32 1.0, %v432
      %v434 = vmul.f32 %v431, %v433
      %v435 = vadd.f32 %v431, %v434
      %vm436 = vweird.f32 %v430
      %vm437 = vweird.f32 %v431
      %vm438 = vmor %vm436, %vm437
      %v439 = vsel %vm438, %v431, %v435
      %v440 = vand.u32 2147483647, %v430
      %vm441 = vcmp.eq.f32.partialorder %v440, 8.507059e+37
      %v442 = vand.u32 %v430, 2147483648
      %v443 = vor.u32 1.1754944e-38, %v442
      %v444 = vsel %vm441, %v443, %v439
      %v445 = vmul.f32 %v427, %v444
      %v447 = vsel %vm395, %v445, 0
      %449 = vmatpush.msra.mxu0 0.0
      %450 = vmatpush.msra.mxu0 0.0
      %451 = vmatpush.msra.mxu0 0.0
      %452 = vmatpush.msra.mxu0 0.0
      %453 = vmatpush.msra.mxu0 0.0
      %454 = vmatpush.msra.mxu0 0.0
      %455 = vmatpush.msra.mxu0 0.0
      %456 = vmatpush.msra.mxu0 0.0
      %457 = vmatpush.msra.mxu0 0.0
      %458 = vmatpush.msra.mxu0 0.0
      %459 = vmatpush.msra.mxu0 0.0
      %460 = vmatpush.msra.mxu0 0.0
      %461 = vmatpush.msra.mxu0 0.0
      %462 = vmatpush.msra.mxu0 0.0
      %463 = vmatpush.msra.mxu0 0.0
      %464 = vmatpush.msra.mxu0 %v330
      %465 = vmatmul.f32.gmra.mxu0 %v447
      %v466 = vpop.f32.mrf.mxu0
      %v467 = vadd.f32 0.0, %v466
      %468 = vdwg.mxu0
      %469 = vrot.lane.b32.xlu0 %v266, 120
      %v470 = vpop.permute.xlu0 %469
      %471 = vrot.lane.b32.xlu0 %v266, 88
      %v472 = vpop.permute.xlu0 %471
      %v473 = vsel %vm395, %v470, 0
      %v475 = vsel %vm395, %v472, 0
      %477 = vmatpush.xpose.msra.mxu0 0.0
      %478 = vmatpush.xpose.msra.mxu0 0.0
      %479 = vmatpush.xpose.msra.mxu0 0.0
      %480 = vmatpush.xpose.msra.mxu0 0.0
      %481 = vmatpush.xpose.msra.mxu0 0.0
      %482 = vmatpush.xpose.msra.mxu0 0.0
      %483 = vmatpush.xpose.msra.mxu0 0.0
      %484 = vmatpush.xpose.msra.mxu0 0.0
      %485 = vmatpush.xpose.msra.mxu0 0.0
      %486 = vmatpush.xpose.msra.mxu0 0.0
      %487 = vmatpush.xpose.msra.mxu0 0.0
      %488 = vmatpush.xpose.msra.mxu0 0.0
      %489 = vmatpush.xpose.msra.mxu0 0.0
      %490 = vmatpush.xpose.msra.mxu0 0.0
      %491 = vmatpush.xpose.msra.mxu0 0.0
      %492 = vmatpush.xpose.msra.mxu0 %v475
      %493 = vmatmul.f32.gmra.mxu0 %v473
      %v494 = vpop.f32.mrf.mxu0
      %v495 = vadd.f32 0.0, %v494
      %496 = vdwg.mxu0
      %v497 = vmul.f32 %v495, 2.828427
      %499 = vrot.lane.b32.xlu0 %v393, 120
      %v500 = vpop.permute.xlu0 %499
      %v502 = vadd.f32 %v497, %v500
      %v503 = vsel %vm395, %v502, -inf
      %504 = vmax.xlane.f32.xlu0 %v503
      %v505 = vpop.xlane.xlu0 %504
      %v506 = vsub.f32 %v502, %v505
      %v507 = vmul.f32 %v506, 1.442695
      %v508 = vpow.pop %v507
      %v509 = vsel %vm395, %v508, 0.0
      %510 = vadd.xlane.f32.xlu0 %v509
      %v511 = vpop.xlane.xlu0 %510
      %v512 = vrcp.pop %v511
      %v513 = vmul.f32 %v511, %v512
      %v514 = vsub.f32 1.0, %v513
      %v515 = vmul.f32 %v512, %v514
      %v516 = vadd.f32 %v512, %v515
      %vm517 = vweird.f32 %v511
      %vm518 = vweird.f32 %v512
      %vm519 = vmor %vm517, %vm518
      %v520 = vsel %vm519, %v512, %v516
      %v521 = vand.u32 2147483647, %v511
      %vm522 = vcmp.eq.f32.partialorder %v521, 8.507059e+37
      %v523 = vand.u32 %v511, 2147483648
      %v524 = vor.u32 1.1754944e-38, %v523
      %v525 = vsel %vm522, %v524, %v520
      %v526 = vmul.f32 %v508, %v525
      %527 = vrot.lane.b32.xlu0 %v266, 56
      %v528 = vpop.permute.xlu0 %527
      %v531 = vsel %vm395, %v526, 0
      %533 = vmatpush.msra.mxu0 0.0
      %534 = vmatpush.msra.mxu0 0.0
      %535 = vmatpush.msra.mxu0 0.0
      %536 = vmatpush.msra.mxu0 0.0
      %537 = vmatpush.msra.mxu0 0.0
      %538 = vmatpush.msra.mxu0 0.0
      %539 = vmatpush.msra.mxu0 0.0
      %540 = vmatpush.msra.mxu0 0.0
      %541 = vmatpush.msra.mxu0 0.0
      %542 = vmatpush.msra.mxu0 0.0
      %543 = vmatpush.msra.mxu0 0.0
      %544 = vmatpush.msra.mxu0 0.0
      %545 = vmatpush.msra.mxu0 0.0
      %546 = vmatpush.msra.mxu0 0.0
      %547 = vmatpush.msra.mxu0 0.0
      %548 = vmatpush.msra.mxu0 %v528
      %549 = vmatmul.f32.gmra.mxu0 %v531
      %v550 = vpop.f32.mrf.mxu0
      %v551 = vadd.f32 0.0, %v550
      %552 = vdwg.mxu0
      %553 = vrot.lane.b32.xlu0 %v266, 112
      %v554 = vpop.permute.xlu0 %553
      %555 = vrot.lane.b32.xlu0 %v266, 80
      %v556 = vpop.permute.xlu0 %555
      %v557 = vsel %vm395, %v554, 0
      %v559 = vsel %vm395, %v556, 0
      %561 = vmatpush.xpose.msra.mxu0 0.0
      %562 = vmatpush.xpose.msra.mxu0 0.0
      %563 = vmatpush.xpose.msra.mxu0 0.0
      %564 = vmatpush.xpose.msra.mxu0 0.0
      %565 = vmatpush.xpose.msra.mxu0 0.0
      %566 = vmatpush.xpose.msra.mxu0 0.0
      %567 = vmatpush.xpose.msra.mxu0 0.0
      %568 = vmatpush.xpose.msra.mxu0 0.0
      %569 = vmatpush.xpose.msra.mxu0 0.0
      %570 = vmatpush.xpose.msra.mxu0 0.0
      %571 = vmatpush.xpose.msra.mxu0 0.0
      %572 = vmatpush.xpose.msra.mxu0 0.0
      %573 = vmatpush.xpose.msra.mxu0 0.0
      %574 = vmatpush.xpose.msra.mxu0 0.0
      %575 = vmatpush.xpose.msra.mxu0 0.0
      %576 = vmatpush.xpose.msra.mxu0 %v559
      %577 = vmatmul.f32.gmra.mxu0 %v557
      %v578 = vpop.f32.mrf.mxu0
      %v579 = vadd.f32 0.0, %v578
      %580 = vdwg.mxu0
      %v581 = vmul.f32 %v579, 2.828427
      %582 = vrot.lane.b32.xlu0 %v393, 112
      %v583 = vpop.permute.xlu0 %582
      %v585 = vadd.f32 %v581, %v583
      %v586 = vsel %vm395, %v585, -inf
      %587 = vmax.xlane.f32.xlu0 %v586
      %v588 = vpop.xlane.xlu0 %587
      %v589 = vsub.f32 %v585, %v588
      %v590 = vmul.f32 %v589, 1.442695
      %v591 = vpow.pop %v590
      %v592 = vsel %vm395, %v591, 0.0
      %593 = vadd.xlane.f32.xlu0 %v592
      %v594 = vpop.xlane.xlu0 %593
      %v595 = vrcp.pop %v594
      %v596 = vmul.f32 %v594, %v595
      %v597 = vsub.f32 1.0, %v596
      %v598 = vmul.f32 %v595, %v597
      %v599 = vadd.f32 %v595, %v598
      %vm600 = vweird.f32 %v594
      %vm601 = vweird.f32 %v595
      %vm602 = vmor %vm600, %vm601
      %v603 = vsel %vm602, %v595, %v599
      %v604 = vand.u32 2147483647, %v594
      %vm605 = vcmp.eq.f32.partialorder %v604, 8.507059e+37
      %v606 = vand.u32 %v594, 2147483648
      %v607 = vor.u32 1.1754944e-38, %v606
      %v608 = vsel %vm605, %v607, %v603
      %v609 = vmul.f32 %v591, %v608
      %610 = vrot.lane.b32.xlu0 %v266, 48
      %v611 = vpop.permute.xlu0 %610
      %v614 = vsel %vm395, %v609, 0
      %616 = vmatpush.msra.mxu0 0.0
      %617 = vmatpush.msra.mxu0 0.0
      %618 = vmatpush.msra.mxu0 0.0
      %619 = vmatpush.msra.mxu0 0.0
      %620 = vmatpush.msra.mxu0 0.0
      %621 = vmatpush.msra.mxu0 0.0
      %622 = vmatpush.msra.mxu0 0.0
      %623 = vmatpush.msra.mxu0 0.0
      %624 = vmatpush.msra.mxu0 0.0
      %625 = vmatpush.msra.mxu0 0.0
      %626 = vmatpush.msra.mxu0 0.0
      %627 = vmatpush.msra.mxu0 0.0
      %628 = vmatpush.msra.mxu0 0.0
      %629 = vmatpush.msra.mxu0 0.0
      %630 = vmatpush.msra.mxu0 0.0
      %631 = vmatpush.msra.mxu0 %v611
      %632 = vmatmul.f32.gmra.mxu0 %v614
      %v633 = vpop.f32.mrf.mxu0
      %v634 = vadd.f32 0.0, %v633
      %635 = vdwg.mxu0
      %636 = vrot.lane.b32.xlu0 %v266, 104
      %v637 = vpop.permute.xlu0 %636
      %638 = vrot.lane.b32.xlu0 %v266, 72
      %v639 = vpop.permute.xlu0 %638
      %v640 = vsel %vm395, %v637, 0
      %v642 = vsel %vm395, %v639, 0
      %644 = vmatpush.xpose.msra.mxu0 0.0
      %645 = vmatpush.xpose.msra.mxu0 0.0
      %646 = vmatpush.xpose.msra.mxu0 0.0
      %647 = vmatpush.xpose.msra.mxu0 0.0
      %648 = vmatpush.xpose.msra.mxu0 0.0
      %649 = vmatpush.xpose.msra.mxu0 0.0
      %650 = vmatpush.xpose.msra.mxu0 0.0
      %651 = vmatpush.xpose.msra.mxu0 0.0
      %652 = vmatpush.xpose.msra.mxu0 0.0
      %653 = vmatpush.xpose.msra.mxu0 0.0
      %654 = vmatpush.xpose.msra.mxu0 0.0
      %655 = vmatpush.xpose.msra.mxu0 0.0
      %656 = vmatpush.xpose.msra.mxu0 0.0
      %657 = vmatpush.xpose.msra.mxu0 0.0
      %658 = vmatpush.xpose.msra.mxu0 0.0
      %659 = vmatpush.xpose.msra.mxu0 %v642
      %660 = vmatmul.f32.gmra.mxu0 %v640
      %v661 = vpop.f32.mrf.mxu0
      %v662 = vadd.f32 0.0, %v661
      %663 = vdwg.mxu0
      %v664 = vmul.f32 %v662, 2.828427
      %665 = vrot.lane.b32.xlu0 %v393, 104
      %v666 = vpop.permute.xlu0 %665
      %v668 = vadd.f32 %v664, %v666
      %v669 = vsel %vm395, %v668, -inf
      %670 = vmax.xlane.f32.xlu0 %v669
      %v671 = vpop.xlane.xlu0 %670
      %v672 = vsub.f32 %v668, %v671
      %v673 = vmul.f32 %v672, 1.442695
      %v674 = vpow.pop %v673
      %v675 = vsel %vm395, %v674, 0.0
      %676 = vadd.xlane.f32.xlu0 %v675
      %v677 = vpop.xlane.xlu0 %676
      %v678 = vrcp.pop %v677
      %v679 = vmul.f32 %v677, %v678
      %v680 = vsub.f32 1.0, %v679
      %v681 = vmul.f32 %v678, %v680
      %v682 = vadd.f32 %v678, %v681
      %vm683 = vweird.f32 %v677
      %vm684 = vweird.f32 %v678
      %vm685 = vmor %vm683, %vm684
      %v686 = vsel %vm685, %v678, %v682
      %v687 = vand.u32 2147483647, %v677
      %vm688 = vcmp.eq.f32.partialorder %v687, 8.507059e+37
      %v689 = vand.u32 %v677, 2147483648
      %v690 = vor.u32 1.1754944e-38, %v689
      %v691 = vsel %vm688, %v690, %v686
      %v692 = vmul.f32 %v674, %v691
      %693 = vrot.lane.b32.xlu0 %v266, 40
      %v694 = vpop.permute.xlu0 %693
      %v697 = vsel %vm395, %v692, 0
      %699 = vmatpush.msra.mxu0 0.0
      %700 = vmatpush.msra.mxu0 0.0
      %701 = vmatpush.msra.mxu0 0.0
      %702 = vmatpush.msra.mxu0 0.0
      %703 = vmatpush.msra.mxu0 0.0
      %704 = vmatpush.msra.mxu0 0.0
      %705 = vmatpush.msra.mxu0 0.0
      %706 = vmatpush.msra.mxu0 0.0
      %707 = vmatpush.msra.mxu0 0.0
      %708 = vmatpush.msra.mxu0 0.0
      %709 = vmatpush.msra.mxu0 0.0
      %710 = vmatpush.msra.mxu0 0.0
      %711 = vmatpush.msra.mxu0 0.0
      %712 = vmatpush.msra.mxu0 0.0
      %713 = vmatpush.msra.mxu0 0.0
      %714 = vmatpush.msra.mxu0 %v694
      %715 = vmatmul.f32.gmra.mxu0 %v697
      %v716 = vpop.f32.mrf.mxu0
      %v717 = vadd.f32 0.0, %v716
      %718 = vdwg.mxu0
      %720 = vrot.lane.b32.xlu0 %v551, 8
      %v721 = vpop.permute.xlu0 %720
      %724 = vrot.lane.b32.xlu0 %v634, 16
      %v725 = vpop.permute.xlu0 %724
      %728 = vrot.lane.b32.xlu0 %v717, 24
      %v729 = vpop.permute.xlu0 %728
      %v731 = vsel %vm395, %v467, %v721
      %vm732 = vcmask 130048
      %v733 = vsel %vm732, %v731, %v725
      %vm734 = vcmask 195584
      %v735 = vsel %vm734, %v733, %v729
      %v737 = vsel %vm244, %v735, 0
      %739 = vmatpush.msra.mxu0 0.0
      %740 = vmatpush.msra.mxu0 0.0
      %741 = vmatpush.msra.mxu0 0.0
      %742 = vmatpush.msra.mxu0 0.0
      %743 = vmatpush.msra.mxu0 0.0
      %744 = vmatpush.msra.mxu0 0.0
      %745 = vmatpush.msra.mxu0 0.0
      %746 = vmatpush.msra.mxu0 0.0
      %747 = vmatpush.msra.mxu0 0.0
      %748 = vmatpush.msra.mxu0 0.0
      %749 = vmatpush.msra.mxu0 0.0
      %750 = vmatpush.msra.mxu0 0.0
      %751 = vmatpush.msra.mxu0 %v323
      %752 = vmatpush.msra.mxu0 %v322
      %753 = vmatpush.msra.mxu0 %v321
      %754 = vmatpush.msra.mxu0 %v320
      %755 = vmatmul.f32.gmra.mxu0 %v737
      %v756 = vpop.f32.mrf.mxu0
      %v757 = vadd.f32 %v324, %v756
      %758 = vdwg.mxu0
      %v759 = vadd.f32 %v220, %v757
      %v760 = vld [vmem:[%s4 + $0x2] ss:$0 sm:$0xff]
      %v761 = vld [vmem:[%s4 + $0x3] ss:$0 sm:$0xff]
      %v762 = vsel %vm244, %v759, 0.0
      %763 = vadd.xlane.f32.xlu0 %v762
      %v764 = vpop.xlane.xlu0 %763
      %v765 = vrcp.pop 32.0
      %v766 = vmul.f32 32.0, %v765
      %v767 = vsub.f32 1.0, %v766
      %v768 = vmul.f32 %v765, %v767
      %v769 = vadd.f32 %v765, %v768
      %vm770 = vweird.f32 %v765
      %v771 = vsel %vm770, %v765, %v769
      %v772 = vmul.f32 %v764, %v771
      %v773 = vsub.f32 %v759, %v772
      %v774 = vmul.f32 %v773, %v773
      %v775 = vsel %vm244, %v774, 0.0
      %776 = vadd.xlane.f32.xlu0 %v775
      %v777 = vpop.xlane.xlu0 %776
      %v778 = vmul.f32 %v777, %v771
      %v779 = vadd.f32 %v778, 1e-05
      %v780 = vrsqrt.pop %v779
      %v781 = vmul.f32 %v780, %v779
      %v782 = vmul.f32 %v781, %v780
      %v783 = vmul.f32 0.5, %v782
      %v784 = vsub.f32 1.5, %v783
      %v785 = vmul.f32 %v780, %v784
      %vm786 = vweird.f32 %v779
      %vm787 = vweird.f32 %v780
      %vm788 = vmor %vm786, %vm787
      %v789 = vsel %vm788, %v780, %v785
      %v790 = vmul.f32 %v773, %v789
      %v791 = vmul.f32 %v790, %v760
      %v792 = vadd.f32 %v791, %v761
      %v793 = vld [vmem:[%s1 + $0x20] sm:$0xff]
      %v794 = vld [vmem:[%s1 + $0x28] sm:$0xff]
      %v795 = vld [vmem:[%s1 + $0x30] sm:$0xff]
      %v796 = vld [vmem:[%s1 + $0x78] sm:$0xff]
      %v797 = vld [vmem:[%s1 + $0x80] sm:$0xff]
      %v798 = vld [vmem:[%s1 + $0x88] sm:$0xff]
      %v799 = vld [vmem:[%s1 + $0xd0] sm:$0xff]
      %v800 = vld [vmem:[%s1 + $0xd8] sm:$0xff]
      %v801 = vld [vmem:[%s1 + $0xe0] sm:$0xff]
      %v802 = vld [vmem:[%s1 + $0x128] sm:$0xff]
      %v803 = vld [vmem:[%s1 + $0x130] sm:$0xff]
      %v804 = vld [vmem:[%s1 + $0x138] sm:$0xff]
      %s805 = scalar_lea.vmem %s4, 6
      %v806 = vld [vmem:[%s805] ss:$8 sm:$0x7]
      %v807 = vld [vmem:[%s2] sm:$0xff]
      %v808 = vld [vmem:[%s2 + $0x8] sm:$0xff]
      %v809 = vld [vmem:[%s2 + $0x10] sm:$0xff]
      %v810 = vld [vmem:[%s2 + $0x18] sm:$0xff]
      %v811 = vld [vmem:[%s2 + $0x20] sm:$0xff]
      %v812 = vld [vmem:[%s2 + $0x28] sm:$0xff]
      %v813 = vld [vmem:[%s2 + $0x30] sm:$0xff]
      %v814 = vld [vmem:[%s2 + $0x38] sm:$0xff]
      %v815 = vld [vmem:[%s2 + $0x40] sm:$0xff]
      %v816 = vld [vmem:[%s2 + $0x48] sm:$0xff]
      %v817 = vld [vmem:[%s2 + $0x50] sm:$0xff]
      %v818 = vld [vmem:[%s2 + $0x58] sm:$0xff]
      %v819 = vld [vmem:[%s2 + $0x60] sm:$0xff]
      %v820 = vld [vmem:[%s2 + $0x68] sm:$0xff]
      %v821 = vld [vmem:[%s2 + $0x70] sm:$0xff]
      %v822 = vld [vmem:[%s2 + $0x78] sm:$0xff]
      %v823 = vld [vmem:[%s2 + $0x80] sm:$0xff]
      %v824 = vld [vmem:[%s2 + $0x88] sm:$0xff]
      %v825 = vld [vmem:[%s2 + $0x90] sm:$0xff]
      %v826 = vld [vmem:[%s2 + $0x98] sm:$0xff]
      %v827 = vld [vmem:[%s2 + $0xa0] sm:$0xff]
      %v828 = vld [vmem:[%s2 + $0xa8] sm:$0xff]
      %v829 = vld [vmem:[%s2 + $0xb0] sm:$0xff]
      %v830 = vld [vmem:[%s2 + $0xb8] sm:$0xff]
      %v831 = vld [vmem:[%s2 + $0xc0] sm:$0xff]
      %v832 = vld [vmem:[%s2 + $0xc8] sm:$0xff]
      %v833 = vld [vmem:[%s2 + $0xd0] sm:$0xff]
      %v834 = vld [vmem:[%s2 + $0xd8] sm:$0xff]
      %v835 = vld [vmem:[%s2 + $0xe0] sm:$0xff]
      %v836 = vld [vmem:[%s2 + $0xe8] sm:$0xff]
      %v837 = vld [vmem:[%s2 + $0xf0] sm:$0xff]
      %v838 = vld [vmem:[%s2 + $0xf8] sm:$0xff]
      %v839 = vld [vmem:[%s2 + $0x100] sm:$0xff]
      %v840 = vld [vmem:[%s2 + $0x108] sm:$0xff]
      %v841 = vld [vmem:[%s2 + $0x110] sm:$0xff]
      %v842 = vld [vmem:[%s2 + $0x118] sm:$0xff]
      %v843 = vld [vmem:[%s2 + $0x120] sm:$0xff]
      %v844 = vld [vmem:[%s2 + $0x128] sm:$0xff]
      %v845 = vld [vmem:[%s2 + $0x130] sm:$0xff]
      %v846 = vld [vmem:[%s2 + $0x138] sm:$0xff]
      %v847 = vld [vmem:[%s2 + $0x140] sm:$0xff]
      %v848 = vld [vmem:[%s2 + $0x148] sm:$0xff]
      %v849 = vld [vmem:[%s2 + $0x150] sm:$0xff]
      %v850 = vld [vmem:[%s2 + $0x158] sm:$0xff]
      %v851 = vld [vmem:[%s2 + $0x160] sm:$0xff]
      %v852 = vld [vmem:[%s2 + $0x168] sm:$0xff]
      %v853 = vld [vmem:[%s2 + $0x170] sm:$0xff]
      %v854 = vld [vmem:[%s2 + $0x178] sm:$0xff]
      %v855 = vld [vmem:[%s4 + $0x7] ss:$0 sm:$0xff]
      %v857 = vperm.slane %v806, 0
      %v858 = vperm.slane %v806, 1
      %v859 = vperm.slane %v806, 2
      %v864 = vsel %vm244, %v792, 0
      %866 = vmatpush.msra.mxu0 0.0
      %867 = vmatpush.msra.mxu0 0.0
      %868 = vmatpush.msra.mxu0 0.0
      %869 = vmatpush.msra.mxu0 0.0
      %870 = vmatpush.msra.mxu0 0.0
      %871 = vmatpush.msra.mxu0 0.0
      %872 = vmatpush.msra.mxu0 0.0
      %873 = vmatpush.msra.mxu0 0.0
      %874 = vmatpush.msra.mxu0 0.0
      %875 = vmatpush.msra.mxu0 0.0
      %876 = vmatpush.msra.mxu0 0.0
      %877 = vmatpush.msra.mxu0 0.0
      %878 = vmatpush.msra.mxu0 %v802
      %879 = vmatpush.msra.mxu0 %v799
      %880 = vmatpush.msra.mxu0 %v796
      %881 = vmatpush.msra.mxu0 %v793
      %882 = vmatmul.f32.gmra.mxu0 %v864
      %v883 = vpop.f32.mrf.mxu0
      %v884 = vadd.f32 %v857, %v883
      %885 = vdwg.mxu0
      %886 = vmatpush.msra.mxu0 0.0
      %887 = vmatpush.msra.mxu0 0.0
      %888 = vmatpush.msra.mxu0 0.0
      %889 = vmatpush.msra.mxu0 0.0
      %890 = vmatpush.msra.mxu0 0.0
      %891 = vmatpush.msra.mxu0 0.0
      %892 = vmatpush.msra.mxu0 0.0
      %893 = vmatpush.msra.mxu0 0.0
      %894 = vmatpush.msra.mxu0 0.0
      %895 = vmatpush.msra.mxu0 0.0
      %896 = vmatpush.msra.mxu0 0.0
      %897 = vmatpush.msra.mxu0 0.0
      %898 = vmatpush.msra.mxu0 %v803
      %899 = vmatpush.msra.mxu0 %v800
      %900 = vmatpush.msra.mxu0 %v797
      %901 = vmatpush.msra.mxu0 %v794
      %902 = vmatmul.f32.gmra.mxu0 %v864
      %v903 = vpop.f32.mrf.mxu0
      %v904 = vadd.f32 %v858, %v903
      %905 = vdwg.mxu0
      %906 = vmatpush.msra.mxu0 0.0
      %907 = vmatpush.msra.mxu0 0.0
      %908 = vmatpush.msra.mxu0 0.0
      %909 = vmatpush.msra.mxu0 0.0
      %910 = vmatpush.msra.mxu0 0.0
      %911 = vmatpush.msra.mxu0 0.0
      %912 = vmatpush.msra.mxu0 0.0
      %913 = vmatpush.msra.mxu0 0.0
      %914 = vmatpush.msra.mxu0 0.0
      %915 = vmatpush.msra.mxu0 0.0
      %916 = vmatpush.msra.mxu0 0.0
      %917 = vmatpush.msra.mxu0 0.0
      %918 = vmatpush.msra.mxu0 %v804
      %919 = vmatpush.msra.mxu0 %v801
      %920 = vmatpush.msra.mxu0 %v798
      %921 = vmatpush.msra.mxu0 %v795
      %922 = vmatmul.f32.gmra.mxu0 %v864
      %v923 = vpop.f32.mrf.mxu0
      %v924 = vadd.f32 %v859, %v923
      %925 = vdwg.mxu0
      %v926 = vmul.f32 %v884, 0.5
      %v927 = vmul.f32 %v904, 0.5
      %v928 = vmul.f32 %v924, 0.5
      %v929 = vmul.f32 %v884, 0.70710677
      %v930 = vmul.f32 %v904, 0.70710677
      %v931 = vmul.f32 %v924, 0.70710677
      %vm932 = vcmp.ge.f32.partialorder %v929, 0.0
      %vm933 = vcmp.ge.f32.partialorder %v930, 0.0
      %vm934 = vcmp.ge.f32.partialorder %v931, 0.0
      %v935 = vsel %vm932, 1.0, -1.0
      %v936 = vsel %vm933, 1.0, -1.0
      %v937 = vsel %vm934, 1.0, -1.0
      %v938 = vand.u32 2147483647, %v929
      %v939 = vand.u32 2147483647, %v930
      %v940 = vand.u32 2147483647, %v931
      %v941 = vmul.f32 %v938, 0.3275911
      %v942 = vmul.f32 %v939, 0.3275911
      %v943 = vmul.f32 %v940, 0.3275911
      %v944 = vadd.f32 %v941, 1.0
      %v945 = vadd.f32 %v942, 1.0
      %v946 = vadd.f32 %v943, 1.0
      %v947 = vrcp.pop %v944
      %v948 = vmul.f32 %v944, %v947
      %v949 = vsub.f32 1.0, %v948
      %v950 = vmul.f32 %v947, %v949
      %v951 = vadd.f32 %v947, %v950
      %vm952 = vweird.f32 %v944
      %vm953 = vweird.f32 %v947
      %vm954 = vmor %vm952, %vm953
      %v955 = vsel %vm954, %v947, %v951
      %v956 = vand.u32 2147483647, %v944
      %vm957 = vcmp.eq.f32.partialorder %v956, 8.507059e+37
      %v958 = vand.u32 %v944, 2147483648
      %v959 = vor.u32 1.1754944e-38, %v958
      %v960 = vsel %vm957, %v959, %v955
      %v961 = vmul.f32 1.0, %v960
      %v962 = vrcp.pop %v945
      %v963 = vmul.f32 %v945, %v962
      %v964 = vsub.f32 1.0, %v963
      %v965 = vmul.f32 %v962, %v964
      %v966 = vadd.f32 %v962, %v965
      %vm967 = vweird.f32 %v945
      %vm968 = vweird.f32 %v962
      %vm969 = vmor %vm967, %vm968
      %v970 = vsel %vm969, %v962, %v966
      %v971 = vand.u32 2147483647, %v945
      %vm972 = vcmp.eq.f32.partialorder %v971, 8.507059e+37
      %v973 = vand.u32 %v945, 2147483648
      %v974 = vor.u32 1.1754944e-38, %v973
      %v975 = vsel %vm972, %v974, %v970
      %v976 = vmul.f32 1.0, %v975
      %v977 = vrcp.pop %v946
      %v978 = vmul.f32 %v946, %v977
      %v979 = vsub.f32 1.0, %v978
      %v980 = vmul.f32 %v977, %v979
      %v981 = vadd.f32 %v977, %v980
      %vm982 = vweird.f32 %v946
      %vm983 = vweird.f32 %v977
      %vm984 = vmor %vm982, %vm983
      %v985 = vsel %vm984, %v977, %v981
      %v986 = vand.u32 2147483647, %v946
      %vm987 = vcmp.eq.f32.partialorder %v986, 8.507059e+37
      %v988 = vand.u32 %v946, 2147483648
      %v989 = vor.u32 1.1754944e-38, %v988
      %v990 = vsel %vm987, %v989, %v985
      %v991 = vmul.f32 1.0, %v990
      %v992 = vmul.f32 %v961, 1.0614054
      %v993 = vmul.f32 %v976, 1.0614054
      %v994 = vmul.f32 %v991, 1.0614054
      %v995 = vadd.f32 %v992, -1.4531521
      %v996 = vadd.f32 %v993, -1.4531521
      %v997 = vadd.f32 %v994, -1.4531521
      %v998 = vmul.f32 %v995, %v961
      %v999 = vmul.f32 %v996, %v976
      %v1000 = vmul.f32 %v997, %v991
      %v1001 = vadd.f32 %v998, 1.4214138
      %v1002 = vadd.f32 %v999, 1.4214138
      %v1003 = vadd.f32 %v1000, 1.4214138
      %v1004 = vmul.f32 %v1001, %v961
      %v1005 = vmul.f32 %v1002, %v976
      %v1006 = vmul.f32 %v1003, %v991
      %v1007 = vadd.f32 %v1004, -0.28449672
      %v1008 = vadd.f32 %v1005, -0.28449672
      %v1009 = vadd.f32 %v1006, -0.28449672
      %v1010 = vmul.f32 %v1007, %v961
      %v1011 = vmul.f32 %v1008, %v976
      %v1012 = vmul.f32 %v1009, %v991
      %v1013 = vadd.f32 %v1010, 0.2548296
      %v1014 = vadd.f32 %v1011, 0.2548296
      %v1015 = vadd.f32 %v1012, 0.2548296
      %v1016 = vmul.f32 %v1013, %v961
      %v1017 = vmul.f32 %v1014, %v976
      %v1018 = vmul.f32 %v1015, %v991
      %v1019 = vsub.f32 0.0, %v938
      %v1020 = vsub.f32 0.0, %v939
      %v1021 = vsub.f32 0.0, %v940
      %v1022 = vmul.f32 %v1019, %v938
      %v1023 = vmul.f32 %v1020, %v939
      %v1024 = vmul.f32 %v1021, %v940
      %v1025 = vmul.f32 %v1022, 1.442695
      %v1026 = vpow.pop %v1025
      %v1027 = vmul.f32 %v1023, 1.442695
      %v1028 = vpow.pop %v1027
      %v1029 = vmul.f32 %v1024, 1.442695
      %v1030 = vpow.pop %v1029
      %v1031 = vmul.f32 %v1016, %v1026
      %v1032 = vmul.f32 %v1017, %v1028
      %v1033 = vmul.f32 %v1018, %v1030
      %v1034 = vsub.f32 1.0, %v1031
      %v1035 = vsub.f32 1.0, %v1032
      %v1036 = vsub.f32 1.0, %v1033
      %v1037 = vmul.f32 %v935, %v1034
      %v1038 = vmul.f32 %v936, %v1035
      %v1039 = vmul.f32 %v937, %v1036
      %v1040 = vadd.f32 %v1037, 1.0
      %v1041 = vadd.f32 %v1038, 1.0
      %v1042 = vadd.f32 %v1039, 1.0
      %v1043 = vmul.f32 %v926, %v1040
      %v1044 = vmul.f32 %v927, %v1041
      %v1045 = vmul.f32 %v928, %v1042
      %1046 = vmatpush.msra.mxu0 %v822
      %1047 = vmatpush.msra.mxu0 %v821
      %1048 = vmatpush.msra.mxu0 %v820
      %1049 = vmatpush.msra.mxu0 %v819
      %1050 = vmatpush.msra.mxu0 %v818
      %1051 = vmatpush.msra.mxu0 %v817
      %1052 = vmatpush.msra.mxu0 %v816
      %1053 = vmatpush.msra.mxu0 %v815
      %1054 = vmatpush.msra.mxu0 %v814
      %1055 = vmatpush.msra.mxu0 %v813
      %1056 = vmatpush.msra.mxu0 %v812
      %1057 = vmatpush.msra.mxu0 %v811
      %1058 = vmatpush.msra.mxu0 %v810
      %1059 = vmatpush.msra.mxu0 %v809
      %1060 = vmatpush.msra.mxu0 %v808
      %1061 = vmatpush.msra.mxu0 %v807
      %1062 = vmatmul.f32.gmra.mxu0 %v1043
      %v1063 = vpop.f32.mrf.mxu0
      %v1064 = vadd.f32 %v855, %v1063
      %1065 = vdwg.mxu0
      %1066 = vmatpush.msra.mxu0 %v838
      %1067 = vmatpush.msra.mxu0 %v837
      %1068 = vmatpush.msra.mxu0 %v836
      %1069 = vmatpush.msra.mxu0 %v835
      %1070 = vmatpush.msra.mxu0 %v834
      %1071 = vmatpush.msra.mxu0 %v833
      %1072 = vmatpush.msra.mxu0 %v832
      %1073 = vmatpush.msra.mxu0 %v831
      %1074 = vmatpush.msra.mxu0 %v830
      %1075 = vmatpush.msra.mxu0 %v829
      %1076 = vmatpush.msra.mxu0 %v828
      %1077 = vmatpush.msra.mxu0 %v827
      %1078 = vmatpush.msra.mxu0 %v826
      %1079 = vmatpush.msra.mxu0 %v825
      %1080 = vmatpush.msra.mxu0 %v824
      %1081 = vmatpush.msra.mxu0 %v823
      %1082 = vmatmul.f32.gmra.mxu0 %v1044
      %v1083 = vpop.f32.mrf.mxu0
      %v1084 = vadd.f32 %v1064, %v1083
      %1085 = vdwg.mxu0
      %1086 = vmatpush.msra.mxu0 %v854
      %1087 = vmatpush.msra.mxu0 %v853
      %1088 = vmatpush.msra.mxu0 %v852
      %1089 = vmatpush.msra.mxu0 %v851
      %1090 = vmatpush.msra.mxu0 %v850
      %1091 = vmatpush.msra.mxu0 %v849
      %1092 = vmatpush.msra.mxu0 %v848
      %1093 = vmatpush.msra.mxu0 %v847
      %1094 = vmatpush.msra.mxu0 %v846
      %1095 = vmatpush.msra.mxu0 %v845
      %1096 = vmatpush.msra.mxu0 %v844
      %1097 = vmatpush.msra.mxu0 %v843
      %1098 = vmatpush.msra.mxu0 %v842
      %1099 = vmatpush.msra.mxu0 %v841
      %1100 = vmatpush.msra.mxu0 %v840
      %1101 = vmatpush.msra.mxu0 %v839
      %1102 = vmatmul.f32.gmra.mxu0 %v1045
      %v1103 = vpop.f32.mrf.mxu0
      %v1104 = vadd.f32 %v1084, %v1103
      %1105 = vdwg.mxu0
      %v1106 = vadd.f32 %v792, %v1104
      %v1107 = vld [vmem:[%s4 + $0x4] ss:$0 sm:$0xff]
      %v1108 = vld [vmem:[%s4 + $0x5] ss:$0 sm:$0xff]
      %v1109 = vsel %vm244, %v1106, 0.0
      %1110 = vadd.xlane.f32.xlu0 %v1109
      %v1111 = vpop.xlane.xlu0 %1110
      %v1112 = vmul.f32 %v1111, %v771
      %v1113 = vsub.f32 %v1106, %v1112
      %v1114 = vmul.f32 %v1113, %v1113
      %v1115 = vsel %vm244, %v1114, 0.0
      %1116 = vadd.xlane.f32.xlu0 %v1115
      %v1117 = vpop.xlane.xlu0 %1116
      %v1118 = vmul.f32 %v1117, %v771
      %v1119 = vadd.f32 %v1118, 1e-05
      %v1120 = vrsqrt.pop %v1119
      %v1121 = vmul.f32 %v1120, %v1119
      %v1122 = vmul.f32 %v1121, %v1120
      %v1123 = vmul.f32 0.5, %v1122
      %v1124 = vsub.f32 1.5, %v1123
      %v1125 = vmul.f32 %v1120, %v1124
      %vm1126 = vweird.f32 %v1119
      %vm1127 = vweird.f32 %v1120
      %vm1128 = vmor %vm1126, %vm1127
      %v1129 = vsel %vm1128, %v1120, %v1125
      %v1130 = vmul.f32 %v1113, %v1129
      %v1131 = vmul.f32 %v1130, %v1107
      %v1132 = vadd.f32 %v1131, %v1108
      %s1133 = scalar_lea.vmem %s3, 256
      %v1134 = vld [vmem:[%s1133] sm:$0xff]
      %v1135 = vld [vmem:[%s1133 + $0x8] sm:$0xff]
      %v1136 = vld [vmem:[%s1133 + $0x10] sm:$0xff]
      %v1137 = vld [vmem:[%s1133 + $0x18] sm:$0xff]
      %v1138 = vld [vmem:[%s1133 + $0x20] sm:$0xff]
      %v1139 = vld [vmem:[%s1133 + $0x28] sm:$0xff]
      %v1140 = vld [vmem:[%s1133 + $0x30] sm:$0xff]
      %v1141 = vld [vmem:[%s1133 + $0x38] sm:$0xff]
      %v1142 = vld [vmem:[%s1133 + $0x40] sm:$0xff]
      %v1143 = vld [vmem:[%s1133 + $0x48] sm:$0xff]
      %v1144 = vld [vmem:[%s1133 + $0x50] sm:$0xff]
      %v1145 = vld [vmem:[%s1133 + $0x58] sm:$0xff]
      %v1146 = vld [vmem:[%s1133 + $0x60] sm:$0xff]
      %v1147 = vld [vmem:[%s1133 + $0x68] sm:$0xff]
      %v1148 = vld [vmem:[%s1133 + $0x70] sm:$0xff]
      %v1149 = vld [vmem:[%s1133 + $0x78] sm:$0xff]
      %v1150 = vld [vmem:[%s1133 + $0x80] sm:$0xff]
      %v1151 = vld [vmem:[%s1133 + $0x88] sm:$0xff]
      %v1152 = vld [vmem:[%s1133 + $0x90] sm:$0xff]
      %v1153 = vld [vmem:[%s1133 + $0x98] sm:$0xff]
      %v1154 = vld [vmem:[%s1133 + $0xa0] sm:$0xff]
      %v1155 = vld [vmem:[%s1133 + $0xa8] sm:$0xff]
      %v1156 = vld [vmem:[%s1133 + $0xb0] sm:$0xff]
      %v1157 = vld [vmem:[%s1133 + $0xb8] sm:$0xff]
      %v1158 = vld [vmem:[%s1133 + $0xc0] sm:$0xff]
      %v1159 = vld [vmem:[%s1133 + $0xc8] sm:$0xff]
      %v1160 = vld [vmem:[%s1133 + $0xd0] sm:$0xff]
      %v1161 = vld [vmem:[%s1133 + $0xd8] sm:$0xff]
      %v1162 = vld [vmem:[%s1133 + $0xe0] sm:$0xff]
      %v1163 = vld [vmem:[%s1133 + $0xe8] sm:$0xff]
      %v1164 = vld [vmem:[%s1133 + $0xf0] sm:$0xff]
      %v1165 = vld [vmem:[%s1133 + $0xf8] sm:$0xff]
      %v1166 = vld [vmem:[%s1 + $0x18] sm:$0xff]
      %v1167 = vld [vmem:[%s1 + $0x70] sm:$0xff]
      %v1168 = vld [vmem:[%s1 + $0xc8] sm:$0xff]
      %v1169 = vld [vmem:[%s1 + $0x120] sm:$0xff]
      %v1170 = vld [vmem:[%s4 + $0x18] ss:$0 sm:$0xff]
      %1172 = vrot.lane.b32.xlu0 %v286, 32
      %v1173 = vpop.permute.xlu0 %1172
      %1175 = vrot.lane.b32.xlu0 %v286, 64
      %v1176 = vpop.permute.xlu0 %1175
      %1178 = vrot.lane.b32.xlu0 %v286, 96
      %v1179 = vpop.permute.xlu0 %1178
      %v1181 = vsel %vm244, %v286, %v1173
      %v1182 = vsel %vm336, %v1181, %v1176
      %v1183 = vsel %vm338, %v1182, %v1179
      %v1184 = vmul.f32 %v1183, %v347
      %v1185 = vmul.f32 %v1183, %v350
      %1186 = vmatpush.msra.mxu0 %v1149
      %1187 = vmatpush.msra.mxu0 %v1148
      %1188 = vmatpush.msra.mxu0 %v1147
      %1189 = vmatpush.msra.mxu0 %v1146
      %1190 = vmatpush.msra.mxu0 %v1145
      %1191 = vmatpush.msra.mxu0 %v1144
      %1192 = vmatpush.msra.mxu0 %v1143
      %1193 = vmatpush.msra.mxu0 %v1142
      %1194 = vmatpush.msra.mxu0 %v1141
      %1195 = vmatpush.msra.mxu0 %v1140
      %1196 = vmatpush.msra.mxu0 %v1139
      %1197 = vmatpush.msra.mxu0 %v1138
      %1198 = vmatpush.msra.mxu0 %v1137
      %1199 = vmatpush.msra.mxu0 %v1136
      %1200 = vmatpush.msra.mxu0 %v1135
      %1201 = vmatpush.msra.mxu0 %v1134
      %1202 = vmatmul.f32.gmra.mxu0 %v1184
      %v1203 = vpop.f32.mrf.mxu0
      %v1204 = vadd.f32 0.0, %v1203
      %1205 = vdwg.mxu0
      %1206 = vmatpush.msra.mxu0 %v1165
      %1207 = vmatpush.msra.mxu0 %v1164
      %1208 = vmatpush.msra.mxu0 %v1163
      %1209 = vmatpush.msra.mxu0 %v1162
      %1210 = vmatpush.msra.mxu0 %v1161
      %1211 = vmatpush.msra.mxu0 %v1160
      %1212 = vmatpush.msra.mxu0 %v1159
      %1213 = vmatpush.msra.mxu0 %v1158
      %1214 = vmatpush.msra.mxu0 %v1157
      %1215 = vmatpush.msra.mxu0 %v1156
      %1216 = vmatpush.msra.mxu0 %v1155
      %1217 = vmatpush.msra.mxu0 %v1154
      %1218 = vmatpush.msra.mxu0 %v1153
      %1219 = vmatpush.msra.mxu0 %v1152
      %1220 = vmatpush.msra.mxu0 %v1151
      %1221 = vmatpush.msra.mxu0 %v1150
      %1222 = vmatmul.f32.gmra.mxu0 %v1185
      %v1223 = vpop.f32.mrf.mxu0
      %v1224 = vadd.f32 %v1204, %v1223
      %1225 = vdwg.mxu0
      %v1226 = vsel %vm395, %v286, 0
      %v1228 = vsel %vm395, %v1179, 0
      %1230 = vmatpush.xpose.msra.mxu0 0.0
      %1231 = vmatpush.xpose.msra.mxu0 0.0
      %1232 = vmatpush.xpose.msra.mxu0 0.0
      %1233 = vmatpush.xpose.msra.mxu0 0.0
      %1234 = vmatpush.xpose.msra.mxu0 0.0
      %1235 = vmatpush.xpose.msra.mxu0 0.0
      %1236 = vmatpush.xpose.msra.mxu0 0.0
      %1237 = vmatpush.xpose.msra.mxu0 0.0
      %1238 = vmatpush.xpose.msra.mxu0 0.0
      %1239 = vmatpush.xpose.msra.mxu0 0.0
      %1240 = vmatpush.xpose.msra.mxu0 0.0
      %1241 = vmatpush.xpose.msra.mxu0 0.0
      %1242 = vmatpush.xpose.msra.mxu0 0.0
      %1243 = vmatpush.xpose.msra.mxu0 0.0
      %1244 = vmatpush.xpose.msra.mxu0 0.0
      %1245 = vmatpush.xpose.msra.mxu0 %v1228
      %1246 = vmatmul.f32.gmra.mxu0 %v1226
      %v1247 = vpop.f32.mrf.mxu0
      %v1248 = vadd.f32 0.0, %v1247
      %1249 = vdwg.mxu0
      %v1250 = vmul.f32 %v1248, 2.828427
      %v1251 = vadd.f32 %v1250, %v1224
      %v1252 = vsel %vm225, %v1251, -1e+30
      %v1253 = vsel %vm395, %v1252, -inf
      %1254 = vmax.xlane.f32.xlu0 %v1253
      %v1255 = vpop.xlane.xlu0 %1254
      %v1256 = vsub.f32 %v1252, %v1255
      %v1257 = vmul.f32 %v1256, 1.442695
      %v1258 = vpow.pop %v1257
      %v1259 = vsel %vm395, %v1258, 0.0
      %1260 = vadd.xlane.f32.xlu0 %v1259
      %v1261 = vpop.xlane.xlu0 %1260
      %v1262 = vrcp.pop %v1261
      %v1263 = vmul.f32 %v1261, %v1262
      %v1264 = vsub.f32 1.0, %v1263
      %v1265 = vmul.f32 %v1262, %v1264
      %v1266 = vadd.f32 %v1262, %v1265
      %vm1267 = vweird.f32 %v1261
      %vm1268 = vweird.f32 %v1262
      %vm1269 = vmor %vm1267, %vm1268
      %v1270 = vsel %vm1269, %v1262, %v1266
      %v1271 = vand.u32 2147483647, %v1261
      %vm1272 = vcmp.eq.f32.partialorder %v1271, 8.507059e+37
      %v1273 = vand.u32 %v1261, 2147483648
      %v1274 = vor.u32 1.1754944e-38, %v1273
      %v1275 = vsel %vm1272, %v1274, %v1270
      %v1276 = vmul.f32 %v1258, %v1275
      %v1278 = vsel %vm395, %v1276, 0
      %1280 = vmatpush.msra.mxu0 0.0
      %1281 = vmatpush.msra.mxu0 0.0
      %1282 = vmatpush.msra.mxu0 0.0
      %1283 = vmatpush.msra.mxu0 0.0
      %1284 = vmatpush.msra.mxu0 0.0
      %1285 = vmatpush.msra.mxu0 0.0
      %1286 = vmatpush.msra.mxu0 0.0
      %1287 = vmatpush.msra.mxu0 0.0
      %1288 = vmatpush.msra.mxu0 0.0
      %1289 = vmatpush.msra.mxu0 0.0
      %1290 = vmatpush.msra.mxu0 0.0
      %1291 = vmatpush.msra.mxu0 0.0
      %1292 = vmatpush.msra.mxu0 0.0
      %1293 = vmatpush.msra.mxu0 0.0
      %1294 = vmatpush.msra.mxu0 0.0
      %1295 = vmatpush.msra.mxu0 %v1176
      %1296 = vmatmul.f32.gmra.mxu0 %v1278
      %v1297 = vpop.f32.mrf.mxu0
      %v1298 = vadd.f32 0.0, %v1297
      %1299 = vdwg.mxu0
      %1300 = vrot.lane.b32.xlu0 %v286, 120
      %v1301 = vpop.permute.xlu0 %1300
      %1302 = vrot.lane.b32.xlu0 %v286, 88
      %v1303 = vpop.permute.xlu0 %1302
      %v1304 = vsel %vm395, %v1301, 0
      %v1306 = vsel %vm395, %v1303, 0
      %1308 = vmatpush.xpose.msra.mxu0 0.0
      %1309 = vmatpush.xpose.msra.mxu0 0.0
      %1310 = vmatpush.xpose.msra.mxu0 0.0
      %1311 = vmatpush.xpose.msra.mxu0 0.0
      %1312 = vmatpush.xpose.msra.mxu0 0.0
      %1313 = vmatpush.xpose.msra.mxu0 0.0
      %1314 = vmatpush.xpose.msra.mxu0 0.0
      %1315 = vmatpush.xpose.msra.mxu0 0.0
      %1316 = vmatpush.xpose.msra.mxu0 0.0
      %1317 = vmatpush.xpose.msra.mxu0 0.0
      %1318 = vmatpush.xpose.msra.mxu0 0.0
      %1319 = vmatpush.xpose.msra.mxu0 0.0
      %1320 = vmatpush.xpose.msra.mxu0 0.0
      %1321 = vmatpush.xpose.msra.mxu0 0.0
      %1322 = vmatpush.xpose.msra.mxu0 0.0
      %1323 = vmatpush.xpose.msra.mxu0 %v1306
      %1324 = vmatmul.f32.gmra.mxu0 %v1304
      %v1325 = vpop.f32.mrf.mxu0
      %v1326 = vadd.f32 0.0, %v1325
      %1327 = vdwg.mxu0
      %v1328 = vmul.f32 %v1326, 2.828427
      %1330 = vrot.lane.b32.xlu0 %v1224, 120
      %v1331 = vpop.permute.xlu0 %1330
      %v1333 = vadd.f32 %v1328, %v1331
      %v1334 = vsel %vm225, %v1333, -1e+30
      %v1335 = vsel %vm395, %v1334, -inf
      %1336 = vmax.xlane.f32.xlu0 %v1335
      %v1337 = vpop.xlane.xlu0 %1336
      %v1338 = vsub.f32 %v1334, %v1337
      %v1339 = vmul.f32 %v1338, 1.442695
      %v1340 = vpow.pop %v1339
      %v1341 = vsel %vm395, %v1340, 0.0
      %1342 = vadd.xlane.f32.xlu0 %v1341
      %v1343 = vpop.xlane.xlu0 %1342
      %v1344 = vrcp.pop %v1343
      %v1345 = vmul.f32 %v1343, %v1344
      %v1346 = vsub.f32 1.0, %v1345
      %v1347 = vmul.f32 %v1344, %v1346
      %v1348 = vadd.f32 %v1344, %v1347
      %vm1349 = vweird.f32 %v1343
      %vm1350 = vweird.f32 %v1344
      %vm1351 = vmor %vm1349, %vm1350
      %v1352 = vsel %vm1351, %v1344, %v1348
      %v1353 = vand.u32 2147483647, %v1343
      %vm1354 = vcmp.eq.f32.partialorder %v1353, 8.507059e+37
      %v1355 = vand.u32 %v1343, 2147483648
      %v1356 = vor.u32 1.1754944e-38, %v1355
      %v1357 = vsel %vm1354, %v1356, %v1352
      %v1358 = vmul.f32 %v1340, %v1357
      %1359 = vrot.lane.b32.xlu0 %v286, 56
      %v1360 = vpop.permute.xlu0 %1359
      %v1363 = vsel %vm395, %v1358, 0
      %1365 = vmatpush.msra.mxu0 0.0
      %1366 = vmatpush.msra.mxu0 0.0
      %1367 = vmatpush.msra.mxu0 0.0
      %1368 = vmatpush.msra.mxu0 0.0
      %1369 = vmatpush.msra.mxu0 0.0
      %1370 = vmatpush.msra.mxu0 0.0
      %1371 = vmatpush.msra.mxu0 0.0
      %1372 = vmatpush.msra.mxu0 0.0
      %1373 = vmatpush.msra.mxu0 0.0
      %1374 = vmatpush.msra.mxu0 0.0
      %1375 = vmatpush.msra.mxu0 0.0
      %1376 = vmatpush.msra.mxu0 0.0
      %1377 = vmatpush.msra.mxu0 0.0
      %1378 = vmatpush.msra.mxu0 0.0
      %1379 = vmatpush.msra.mxu0 0.0
      %1380 = vmatpush.msra.mxu0 %v1360
      %1381 = vmatmul.f32.gmra.mxu0 %v1363
      %v1382 = vpop.f32.mrf.mxu0
      %v1383 = vadd.f32 0.0, %v1382
      %1384 = vdwg.mxu0
      %1385 = vrot.lane.b32.xlu0 %v286, 112
      %v1386 = vpop.permute.xlu0 %1385
      %1387 = vrot.lane.b32.xlu0 %v286, 80
      %v1388 = vpop.permute.xlu0 %1387
      %v1389 = vsel %vm395, %v1386, 0
      %v1391 = vsel %vm395, %v1388, 0
      %1393 = vmatpush.xpose.msra.mxu0 0.0
      %1394 = vmatpush.xpose.msra.mxu0 0.0
      %1395 = vmatpush.xpose.msra.mxu0 0.0
      %1396 = vmatpush.xpose.msra.mxu0 0.0
      %1397 = vmatpush.xpose.msra.mxu0 0.0
      %1398 = vmatpush.xpose.msra.mxu0 0.0
      %1399 = vmatpush.xpose.msra.mxu0 0.0
      %1400 = vmatpush.xpose.msra.mxu0 0.0
      %1401 = vmatpush.xpose.msra.mxu0 0.0
      %1402 = vmatpush.xpose.msra.mxu0 0.0
      %1403 = vmatpush.xpose.msra.mxu0 0.0
      %1404 = vmatpush.xpose.msra.mxu0 0.0
      %1405 = vmatpush.xpose.msra.mxu0 0.0
      %1406 = vmatpush.xpose.msra.mxu0 0.0
      %1407 = vmatpush.xpose.msra.mxu0 0.0
      %1408 = vmatpush.xpose.msra.mxu0 %v1391
      %1409 = vmatmul.f32.gmra.mxu0 %v1389
      %v1410 = vpop.f32.mrf.mxu0
      %v1411 = vadd.f32 0.0, %v1410
      %1412 = vdwg.mxu0
      %v1413 = vmul.f32 %v1411, 2.828427
      %1414 = vrot.lane.b32.xlu0 %v1224, 112
      %v1415 = vpop.permute.xlu0 %1414
      %v1417 = vadd.f32 %v1413, %v1415
      %v1418 = vsel %vm225, %v1417, -1e+30
      %v1419 = vsel %vm395, %v1418, -inf
      %1420 = vmax.xlane.f32.xlu0 %v1419
      %v1421 = vpop.xlane.xlu0 %1420
      %v1422 = vsub.f32 %v1418, %v1421
      %v1423 = vmul.f32 %v1422, 1.442695
      %v1424 = vpow.pop %v1423
      %v1425 = vsel %vm395, %v1424, 0.0
      %1426 = vadd.xlane.f32.xlu0 %v1425
      %v1427 = vpop.xlane.xlu0 %1426
      %v1428 = vrcp.pop %v1427
      %v1429 = vmul.f32 %v1427, %v1428
      %v1430 = vsub.f32 1.0, %v1429
      %v1431 = vmul.f32 %v1428, %v1430
      %v1432 = vadd.f32 %v1428, %v1431
      %vm1433 = vweird.f32 %v1427
      %vm1434 = vweird.f32 %v1428
      %vm1435 = vmor %vm1433, %vm1434
      %v1436 = vsel %vm1435, %v1428, %v1432
      %v1437 = vand.u32 2147483647, %v1427
      %vm1438 = vcmp.eq.f32.partialorder %v1437, 8.507059e+37
      %v1439 = vand.u32 %v1427, 2147483648
      %v1440 = vor.u32 1.1754944e-38, %v1439
      %v1441 = vsel %vm1438, %v1440, %v1436
      %v1442 = vmul.f32 %v1424, %v1441
      %1443 = vrot.lane.b32.xlu0 %v286, 48
      %v1444 = vpop.permute.xlu0 %1443
      %v1447 = vsel %vm395, %v1442, 0
      %1449 = vmatpush.msra.mxu0 0.0
      %1450 = vmatpush.msra.mxu0 0.0
      %1451 = vmatpush.msra.mxu0 0.0
      %1452 = vmatpush.msra.mxu0 0.0
      %1453 = vmatpush.msra.mxu0 0.0
      %1454 = vmatpush.msra.mxu0 0.0
      %1455 = vmatpush.msra.mxu0 0.0
      %1456 = vmatpush.msra.mxu0 0.0
      %1457 = vmatpush.msra.mxu0 0.0
      %1458 = vmatpush.msra.mxu0 0.0
      %1459 = vmatpush.msra.mxu0 0.0
      %1460 = vmatpush.msra.mxu0 0.0
      %1461 = vmatpush.msra.mxu0 0.0
      %1462 = vmatpush.msra.mxu0 0.0
      %1463 = vmatpush.msra.mxu0 0.0
      %1464 = vmatpush.msra.mxu0 %v1444
      %1465 = vmatmul.f32.gmra.mxu0 %v1447
      %v1466 = vpop.f32.mrf.mxu0
      %v1467 = vadd.f32 0.0, %v1466
      %1468 = vdwg.mxu0
      %1469 = vrot.lane.b32.xlu0 %v286, 104
      %v1470 = vpop.permute.xlu0 %1469
      %1471 = vrot.lane.b32.xlu0 %v286, 72
      %v1472 = vpop.permute.xlu0 %1471
      %v1473 = vsel %vm395, %v1470, 0
      %v1475 = vsel %vm395, %v1472, 0
      %1477 = vmatpush.xpose.msra.mxu0 0.0
      %1478 = vmatpush.xpose.msra.mxu0 0.0
      %1479 = vmatpush.xpose.msra.mxu0 0.0
      %1480 = vmatpush.xpose.msra.mxu0 0.0
      %1481 = vmatpush.xpose.msra.mxu0 0.0
      %1482 = vmatpush.xpose.msra.mxu0 0.0
      %1483 = vmatpush.xpose.msra.mxu0 0.0
      %1484 = vmatpush.xpose.msra.mxu0 0.0
      %1485 = vmatpush.xpose.msra.mxu0 0.0
      %1486 = vmatpush.xpose.msra.mxu0 0.0
      %1487 = vmatpush.xpose.msra.mxu0 0.0
      %1488 = vmatpush.xpose.msra.mxu0 0.0
      %1489 = vmatpush.xpose.msra.mxu0 0.0
      %1490 = vmatpush.xpose.msra.mxu0 0.0
      %1491 = vmatpush.xpose.msra.mxu0 0.0
      %1492 = vmatpush.xpose.msra.mxu0 %v1475
      %1493 = vmatmul.f32.gmra.mxu0 %v1473
      %v1494 = vpop.f32.mrf.mxu0
      %v1495 = vadd.f32 0.0, %v1494
      %1496 = vdwg.mxu0
      %v1497 = vmul.f32 %v1495, 2.828427
      %1498 = vrot.lane.b32.xlu0 %v1224, 104
      %v1499 = vpop.permute.xlu0 %1498
      %v1501 = vadd.f32 %v1497, %v1499
      %v1502 = vsel %vm225, %v1501, -1e+30
      %v1503 = vsel %vm395, %v1502, -inf
      %1504 = vmax.xlane.f32.xlu0 %v1503
      %v1505 = vpop.xlane.xlu0 %1504
      %v1506 = vsub.f32 %v1502, %v1505
      %v1507 = vmul.f32 %v1506, 1.442695
      %v1508 = vpow.pop %v1507
      %v1509 = vsel %vm395, %v1508, 0.0
      %1510 = vadd.xlane.f32.xlu0 %v1509
      %v1511 = vpop.xlane.xlu0 %1510
      %v1512 = vrcp.pop %v1511
      %v1513 = vmul.f32 %v1511, %v1512
      %v1514 = vsub.f32 1.0, %v1513
      %v1515 = vmul.f32 %v1512, %v1514
      %v1516 = vadd.f32 %v1512, %v1515
      %vm1517 = vweird.f32 %v1511
      %vm1518 = vweird.f32 %v1512
      %vm1519 = vmor %vm1517, %vm1518
      %v1520 = vsel %vm1519, %v1512, %v1516
      %v1521 = vand.u32 2147483647, %v1511
      %vm1522 = vcmp.eq.f32.partialorder %v1521, 8.507059e+37
      %v1523 = vand.u32 %v1511, 2147483648
      %v1524 = vor.u32 1.1754944e-38, %v1523
      %v1525 = vsel %vm1522, %v1524, %v1520
      %v1526 = vmul.f32 %v1508, %v1525
      %1527 = vrot.lane.b32.xlu0 %v286, 40
      %v1528 = vpop.permute.xlu0 %1527
      %v1531 = vsel %vm395, %v1526, 0
      %1533 = vmatpush.msra.mxu0 0.0
      %1534 = vmatpush.msra.mxu0 0.0
      %1535 = vmatpush.msra.mxu0 0.0
      %1536 = vmatpush.msra.mxu0 0.0
      %1537 = vmatpush.msra.mxu0 0.0
      %1538 = vmatpush.msra.mxu0 0.0
      %1539 = vmatpush.msra.mxu0 0.0
      %1540 = vmatpush.msra.mxu0 0.0
      %1541 = vmatpush.msra.mxu0 0.0
      %1542 = vmatpush.msra.mxu0 0.0
      %1543 = vmatpush.msra.mxu0 0.0
      %1544 = vmatpush.msra.mxu0 0.0
      %1545 = vmatpush.msra.mxu0 0.0
      %1546 = vmatpush.msra.mxu0 0.0
      %1547 = vmatpush.msra.mxu0 0.0
      %1548 = vmatpush.msra.mxu0 %v1528
      %1549 = vmatmul.f32.gmra.mxu0 %v1531
      %v1550 = vpop.f32.mrf.mxu0
      %v1551 = vadd.f32 0.0, %v1550
      %1552 = vdwg.mxu0
      %1554 = vrot.lane.b32.xlu0 %v1383, 8
      %v1555 = vpop.permute.xlu0 %1554
      %1558 = vrot.lane.b32.xlu0 %v1467, 16
      %v1559 = vpop.permute.xlu0 %1558
      %1562 = vrot.lane.b32.xlu0 %v1551, 24
      %v1563 = vpop.permute.xlu0 %1562
      %v1565 = vsel %vm395, %v1298, %v1555
      %v1566 = vsel %vm732, %v1565, %v1559
      %v1567 = vsel %vm734, %v1566, %v1563
      %v1569 = vsel %vm244, %v1567, 0
      %1571 = vmatpush.msra.mxu0 0.0
      %1572 = vmatpush.msra.mxu0 0.0
      %1573 = vmatpush.msra.mxu0 0.0
      %1574 = vmatpush.msra.mxu0 0.0
      %1575 = vmatpush.msra.mxu0 0.0
      %1576 = vmatpush.msra.mxu0 0.0
      %1577 = vmatpush.msra.mxu0 0.0
      %1578 = vmatpush.msra.mxu0 0.0
      %1579 = vmatpush.msra.mxu0 0.0
      %1580 = vmatpush.msra.mxu0 0.0
      %1581 = vmatpush.msra.mxu0 0.0
      %1582 = vmatpush.msra.mxu0 0.0
      %1583 = vmatpush.msra.mxu0 %v1169
      %1584 = vmatpush.msra.mxu0 %v1168
      %1585 = vmatpush.msra.mxu0 %v1167
      %1586 = vmatpush.msra.mxu0 %v1166
      %1587 = vmatmul.f32.gmra.mxu0 %v1569
      %v1588 = vpop.f32.mrf.mxu0
      %v1589 = vadd.f32 %v1170, %v1588
      %1590 = vdwg.mxu0
      %v1591 = vadd.f32 %v220, %v1589
      %v1592 = vld [vmem:[%s4 + $0x19] ss:$0 sm:$0xff]
      %v1593 = vld [vmem:[%s4 + $0x1a] ss:$0 sm:$0xff]
      %v1594 = vsel %vm244, %v1591, 0.0
      %1595 = vadd.xlane.f32.xlu0 %v1594
      %v1596 = vpop.xlane.xlu0 %1595
      %v1597 = vmul.f32 %v1596, %v771
      %v1598 = vsub.f32 %v1591, %v1597
      %v1599 = vmul.f32 %v1598, %v1598
      %v1600 = vsel %vm244, %v1599, 0.0
      %1601 = vadd.xlane.f32.xlu0 %v1600
      %v1602 = vpop.xlane.xlu0 %1601
      %v1603 = vmul.f32 %v1602, %v771
      %v1604 = vadd.f32 %v1603, 1e-05
      %v1605 = vrsqrt.pop %v1604
      %v1606 = vmul.f32 %v1605, %v1604
      %v1607 = vmul.f32 %v1606, %v1605
      %v1608 = vmul.f32 0.5, %v1607
      %v1609 = vsub.f32 1.5, %v1608
      %v1610 = vmul.f32 %v1605, %v1609
      %vm1611 = vweird.f32 %v1604
      %vm1612 = vweird.f32 %v1605
      %vm1613 = vmor %vm1611, %vm1612
      %v1614 = vsel %vm1613, %v1605, %v1610
      %v1615 = vmul.f32 %v1598, %v1614
      %v1616 = vmul.f32 %v1615, %v1592
      %v1617 = vadd.f32 %v1616, %v1593
      %v1618 = vadd.f32 %v1591, %v1617
      %v1619 = vadd.f32 %v1618, %v1132
      %v1620 = vld [vmem:[%s4 + $0x8] ss:$0 sm:$0xff]
      %v1622 = vsel %vm244, %v1619, 0
      %1624 = vmatpush.msra.mxu0 0.0
      %1625 = vmatpush.msra.mxu0 0.0
      %1626 = vmatpush.msra.mxu0 0.0
      %1627 = vmatpush.msra.mxu0 0.0
      %1628 = vmatpush.msra.mxu0 0.0
      %1629 = vmatpush.msra.mxu0 0.0
      %1630 = vmatpush.msra.mxu0 0.0
      %1631 = vmatpush.msra.mxu0 0.0
      %1632 = vmatpush.msra.mxu0 0.0
      %1633 = vmatpush.msra.mxu0 0.0
      %1634 = vmatpush.msra.mxu0 0.0
      %1635 = vmatpush.msra.mxu0 0.0
      %1636 = vmatpush.msra.mxu0 %v237
      %1637 = vmatpush.msra.mxu0 %v235
      %1638 = vmatpush.msra.mxu0 %v233
      %1639 = vmatpush.msra.mxu0 %v231
      %1640 = vmatmul.f32.gmra.mxu0 %v1622
      %v1641 = vpop.f32.mrf.mxu0
      %v1642 = vadd.f32 %v1620, %v1641
      %1643 = vdwg.mxu0
      %1645 = vrot.lane.b32.xlu0 %v1642, 32
      %v1646 = vpop.permute.xlu0 %1645
      %1648 = vrot.lane.b32.xlu0 %v1642, 64
      %v1649 = vpop.permute.xlu0 %1648
      %1651 = vrot.lane.b32.xlu0 %v1642, 96
      %v1652 = vpop.permute.xlu0 %1651
      %v1654 = vsel %vm244, %v1642, %v1646
      %v1655 = vsel %vm336, %v1654, %v1649
      %v1656 = vsel %vm338, %v1655, %v1652
      %v1657 = vmul.f32 %v1656, %v347
      %v1658 = vmul.f32 %v1656, %v350
      %1659 = vmatpush.msra.mxu0 %v1149
      %1660 = vmatpush.msra.mxu0 %v1148
      %1661 = vmatpush.msra.mxu0 %v1147
      %1662 = vmatpush.msra.mxu0 %v1146
      %1663 = vmatpush.msra.mxu0 %v1145
      %1664 = vmatpush.msra.mxu0 %v1144
      %1665 = vmatpush.msra.mxu0 %v1143
      %1666 = vmatpush.msra.mxu0 %v1142
      %1667 = vmatpush.msra.mxu0 %v1141
      %1668 = vmatpush.msra.mxu0 %v1140
      %1669 = vmatpush.msra.mxu0 %v1139
      %1670 = vmatpush.msra.mxu0 %v1138
      %1671 = vmatpush.msra.mxu0 %v1137
      %1672 = vmatpush.msra.mxu0 %v1136
      %1673 = vmatpush.msra.mxu0 %v1135
      %1674 = vmatpush.msra.mxu0 %v1134
      %1675 = vmatmul.f32.gmra.mxu0 %v1657
      %v1676 = vpop.f32.mrf.mxu0
      %v1677 = vadd.f32 0.0, %v1676
      %1678 = vdwg.mxu0
      %1679 = vmatpush.msra.mxu0 %v1165
      %1680 = vmatpush.msra.mxu0 %v1164
      %1681 = vmatpush.msra.mxu0 %v1163
      %1682 = vmatpush.msra.mxu0 %v1162
      %1683 = vmatpush.msra.mxu0 %v1161
      %1684 = vmatpush.msra.mxu0 %v1160
      %1685 = vmatpush.msra.mxu0 %v1159
      %1686 = vmatpush.msra.mxu0 %v1158
      %1687 = vmatpush.msra.mxu0 %v1157
      %1688 = vmatpush.msra.mxu0 %v1156
      %1689 = vmatpush.msra.mxu0 %v1155
      %1690 = vmatpush.msra.mxu0 %v1154
      %1691 = vmatpush.msra.mxu0 %v1153
      %1692 = vmatpush.msra.mxu0 %v1152
      %1693 = vmatpush.msra.mxu0 %v1151
      %1694 = vmatpush.msra.mxu0 %v1150
      %1695 = vmatmul.f32.gmra.mxu0 %v1658
      %v1696 = vpop.f32.mrf.mxu0
      %v1697 = vadd.f32 %v1677, %v1696
      %1698 = vdwg.mxu0
      %v1699 = vsel %vm395, %v1642, 0
      %v1701 = vsel %vm395, %v1652, 0
      %1703 = vmatpush.xpose.msra.mxu0 0.0
      %1704 = vmatpush.xpose.msra.mxu0 0.0
      %1705 = vmatpush.xpose.msra.mxu0 0.0
      %1706 = vmatpush.xpose.msra.mxu0 0.0
      %1707 = vmatpush.xpose.msra.mxu0 0.0
      %1708 = vmatpush.xpose.msra.mxu0 0.0
      %1709 = vmatpush.xpose.msra.mxu0 0.0
      %1710 = vmatpush.xpose.msra.mxu0 0.0
      %1711 = vmatpush.xpose.msra.mxu0 0.0
      %1712 = vmatpush.xpose.msra.mxu0 0.0
      %1713 = vmatpush.xpose.msra.mxu0 0.0
      %1714 = vmatpush.xpose.msra.mxu0 0.0
      %1715 = vmatpush.xpose.msra.mxu0 0.0
      %1716 = vmatpush.xpose.msra.mxu0 0.0
      %1717 = vmatpush.xpose.msra.mxu0 0.0
      %1718 = vmatpush.xpose.msra.mxu0 %v1701
      %1719 = vmatmul.f32.gmra.mxu0 %v1699
      %v1720 = vpop.f32.mrf.mxu0
      %v1721 = vadd.f32 0.0, %v1720
      %1722 = vdwg.mxu0
      %v1723 = vmul.f32 %v1721, 2.828427
      %v1724 = vadd.f32 %v1723, %v1697
      %v1725 = vsel %vm395, %v1724, -inf
      %1726 = vmax.xlane.f32.xlu0 %v1725
      %v1727 = vpop.xlane.xlu0 %1726
      %v1728 = vsub.f32 %v1724, %v1727
      %v1729 = vmul.f32 %v1728, 1.442695
      %v1730 = vpow.pop %v1729
      %v1731 = vsel %vm395, %v1730, 0.0
      %1732 = vadd.xlane.f32.xlu0 %v1731
      %v1733 = vpop.xlane.xlu0 %1732
      %v1734 = vrcp.pop %v1733
      %v1735 = vmul.f32 %v1733, %v1734
      %v1736 = vsub.f32 1.0, %v1735
      %v1737 = vmul.f32 %v1734, %v1736
      %v1738 = vadd.f32 %v1734, %v1737
      %vm1739 = vweird.f32 %v1733
      %vm1740 = vweird.f32 %v1734
      %vm1741 = vmor %vm1739, %vm1740
      %v1742 = vsel %vm1741, %v1734, %v1738
      %v1743 = vand.u32 2147483647, %v1733
      %vm1744 = vcmp.eq.f32.partialorder %v1743, 8.507059e+37
      %v1745 = vand.u32 %v1733, 2147483648
      %v1746 = vor.u32 1.1754944e-38, %v1745
      %v1747 = vsel %vm1744, %v1746, %v1742
      %v1748 = vmul.f32 %v1730, %v1747
      %v1750 = vsel %vm395, %v1748, 0
      %1752 = vmatpush.msra.mxu0 0.0
      %1753 = vmatpush.msra.mxu0 0.0
      %1754 = vmatpush.msra.mxu0 0.0
      %1755 = vmatpush.msra.mxu0 0.0
      %1756 = vmatpush.msra.mxu0 0.0
      %1757 = vmatpush.msra.mxu0 0.0
      %1758 = vmatpush.msra.mxu0 0.0
      %1759 = vmatpush.msra.mxu0 0.0
      %1760 = vmatpush.msra.mxu0 0.0
      %1761 = vmatpush.msra.mxu0 0.0
      %1762 = vmatpush.msra.mxu0 0.0
      %1763 = vmatpush.msra.mxu0 0.0
      %1764 = vmatpush.msra.mxu0 0.0
      %1765 = vmatpush.msra.mxu0 0.0
      %1766 = vmatpush.msra.mxu0 0.0
      %1767 = vmatpush.msra.mxu0 %v1649
      %1768 = vmatmul.f32.gmra.mxu0 %v1750
      %v1769 = vpop.f32.mrf.mxu0
      %v1770 = vadd.f32 0.0, %v1769
      %1771 = vdwg.mxu0
      %1772 = vrot.lane.b32.xlu0 %v1642, 120
      %v1773 = vpop.permute.xlu0 %1772
      %1774 = vrot.lane.b32.xlu0 %v1642, 88
      %v1775 = vpop.permute.xlu0 %1774
      %v1776 = vsel %vm395, %v1773, 0
      %v1778 = vsel %vm395, %v1775, 0
      %1780 = vmatpush.xpose.msra.mxu0 0.0
      %1781 = vmatpush.xpose.msra.mxu0 0.0
      %1782 = vmatpush.xpose.msra.mxu0 0.0
      %1783 = vmatpush.xpose.msra.mxu0 0.0
      %1784 = vmatpush.xpose.msra.mxu0 0.0
      %1785 = vmatpush.xpose.msra.mxu0 0.0
      %1786 = vmatpush.xpose.msra.mxu0 0.0
      %1787 = vmatpush.xpose.msra.mxu0 0.0
      %1788 = vmatpush.xpose.msra.mxu0 0.0
      %1789 = vmatpush.xpose.msra.mxu0 0.0
      %1790 = vmatpush.xpose.msra.mxu0 0.0
      %1791 = vmatpush.xpose.msra.mxu0 0.0
      %1792 = vmatpush.xpose.msra.mxu0 0.0
      %1793 = vmatpush.xpose.msra.mxu0 0.0
      %1794 = vmatpush.xpose.msra.mxu0 0.0
      %1795 = vmatpush.xpose.msra.mxu0 %v1778
      %1796 = vmatmul.f32.gmra.mxu0 %v1776
      %v1797 = vpop.f32.mrf.mxu0
      %v1798 = vadd.f32 0.0, %v1797
      %1799 = vdwg.mxu0
      %v1800 = vmul.f32 %v1798, 2.828427
      %1802 = vrot.lane.b32.xlu0 %v1697, 120
      %v1803 = vpop.permute.xlu0 %1802
      %v1805 = vadd.f32 %v1800, %v1803
      %v1806 = vsel %vm395, %v1805, -inf
      %1807 = vmax.xlane.f32.xlu0 %v1806
      %v1808 = vpop.xlane.xlu0 %1807
      %v1809 = vsub.f32 %v1805, %v1808
      %v1810 = vmul.f32 %v1809, 1.442695
      %v1811 = vpow.pop %v1810
      %v1812 = vsel %vm395, %v1811, 0.0
      %1813 = vadd.xlane.f32.xlu0 %v1812
      %v1814 = vpop.xlane.xlu0 %1813
      %v1815 = vrcp.pop %v1814
      %v1816 = vmul.f32 %v1814, %v1815
      %v1817 = vsub.f32 1.0, %v1816
      %v1818 = vmul.f32 %v1815, %v1817
      %v1819 = vadd.f32 %v1815, %v1818
      %vm1820 = vweird.f32 %v1814
      %vm1821 = vweird.f32 %v1815
      %vm1822 = vmor %vm1820, %vm1821
      %v1823 = vsel %vm1822, %v1815, %v1819
      %v1824 = vand.u32 2147483647, %v1814
      %vm1825 = vcmp.eq.f32.partialorder %v1824, 8.507059e+37
      %v1826 = vand.u32 %v1814, 2147483648
      %v1827 = vor.u32 1.1754944e-38, %v1826
      %v1828 = vsel %vm1825, %v1827, %v1823
      %v1829 = vmul.f32 %v1811, %v1828
      %1830 = vrot.lane.b32.xlu0 %v1642, 56
      %v1831 = vpop.permute.xlu0 %1830
      %v1834 = vsel %vm395, %v1829, 0
      %1836 = vmatpush.msra.mxu0 0.0
      %1837 = vmatpush.msra.mxu0 0.0
      %1838 = vmatpush.msra.mxu0 0.0
      %1839 = vmatpush.msra.mxu0 0.0
      %1840 = vmatpush.msra.mxu0 0.0
      %1841 = vmatpush.msra.mxu0 0.0
      %1842 = vmatpush.msra.mxu0 0.0
      %1843 = vmatpush.msra.mxu0 0.0
      %1844 = vmatpush.msra.mxu0 0.0
      %1845 = vmatpush.msra.mxu0 0.0
      %1846 = vmatpush.msra.mxu0 0.0
      %1847 = vmatpush.msra.mxu0 0.0
      %1848 = vmatpush.msra.mxu0 0.0
      %1849 = vmatpush.msra.mxu0 0.0
      %1850 = vmatpush.msra.mxu0 0.0
      %1851 = vmatpush.msra.mxu0 %v1831
      %1852 = vmatmul.f32.gmra.mxu0 %v1834
      %v1853 = vpop.f32.mrf.mxu0
      %v1854 = vadd.f32 0.0, %v1853
      %1855 = vdwg.mxu0
      %1856 = vrot.lane.b32.xlu0 %v1642, 112
      %v1857 = vpop.permute.xlu0 %1856
      %1858 = vrot.lane.b32.xlu0 %v1642, 80
      %v1859 = vpop.permute.xlu0 %1858
      %v1860 = vsel %vm395, %v1857, 0
      %v1862 = vsel %vm395, %v1859, 0
      %1864 = vmatpush.xpose.msra.mxu0 0.0
      %1865 = vmatpush.xpose.msra.mxu0 0.0
      %1866 = vmatpush.xpose.msra.mxu0 0.0
      %1867 = vmatpush.xpose.msra.mxu0 0.0
      %1868 = vmatpush.xpose.msra.mxu0 0.0
      %1869 = vmatpush.xpose.msra.mxu0 0.0
      %1870 = vmatpush.xpose.msra.mxu0 0.0
      %1871 = vmatpush.xpose.msra.mxu0 0.0
      %1872 = vmatpush.xpose.msra.mxu0 0.0
      %1873 = vmatpush.xpose.msra.mxu0 0.0
      %1874 = vmatpush.xpose.msra.mxu0 0.0
      %1875 = vmatpush.xpose.msra.mxu0 0.0
      %1876 = vmatpush.xpose.msra.mxu0 0.0
      %1877 = vmatpush.xpose.msra.mxu0 0.0
      %1878 = vmatpush.xpose.msra.mxu0 0.0
      %1879 = vmatpush.xpose.msra.mxu0 %v1862
      %1880 = vmatmul.f32.gmra.mxu0 %v1860
      %v1881 = vpop.f32.mrf.mxu0
      %v1882 = vadd.f32 0.0, %v1881
      %1883 = vdwg.mxu0
      %v1884 = vmul.f32 %v1882, 2.828427
      %1885 = vrot.lane.b32.xlu0 %v1697, 112
      %v1886 = vpop.permute.xlu0 %1885
      %v1888 = vadd.f32 %v1884, %v1886
      %v1889 = vsel %vm395, %v1888, -inf
      %1890 = vmax.xlane.f32.xlu0 %v1889
      %v1891 = vpop.xlane.xlu0 %1890
      %v1892 = vsub.f32 %v1888, %v1891
      %v1893 = vmul.f32 %v1892, 1.442695
      %v1894 = vpow.pop %v1893
      %v1895 = vsel %vm395, %v1894, 0.0
      %1896 = vadd.xlane.f32.xlu0 %v1895
      %v1897 = vpop.xlane.xlu0 %1896
      %v1898 = vrcp.pop %v1897
      %v1899 = vmul.f32 %v1897, %v1898
      %v1900 = vsub.f32 1.0, %v1899
      %v1901 = vmul.f32 %v1898, %v1900
      %v1902 = vadd.f32 %v1898, %v1901
      %vm1903 = vweird.f32 %v1897
      %vm1904 = vweird.f32 %v1898
      %vm1905 = vmor %vm1903, %vm1904
      %v1906 = vsel %vm1905, %v1898, %v1902
      %v1907 = vand.u32 2147483647, %v1897
      %vm1908 = vcmp.eq.f32.partialorder %v1907, 8.507059e+37
      %v1909 = vand.u32 %v1897, 2147483648
      %v1910 = vor.u32 1.1754944e-38, %v1909
      %v1911 = vsel %vm1908, %v1910, %v1906
      %v1912 = vmul.f32 %v1894, %v1911
      %1913 = vrot.lane.b32.xlu0 %v1642, 48
      %v1914 = vpop.permute.xlu0 %1913
      %v1917 = vsel %vm395, %v1912, 0
      %1919 = vmatpush.msra.mxu0 0.0
      %1920 = vmatpush.msra.mxu0 0.0
      %1921 = vmatpush.msra.mxu0 0.0
      %1922 = vmatpush.msra.mxu0 0.0
      %1923 = vmatpush.msra.mxu0 0.0
      %1924 = vmatpush.msra.mxu0 0.0
      %1925 = vmatpush.msra.mxu0 0.0
      %1926 = vmatpush.msra.mxu0 0.0
      %1927 = vmatpush.msra.mxu0 0.0
      %1928 = vmatpush.msra.mxu0 0.0
      %1929 = vmatpush.msra.mxu0 0.0
      %1930 = vmatpush.msra.mxu0 0.0
      %1931 = vmatpush.msra.mxu0 0.0
      %1932 = vmatpush.msra.mxu0 0.0
      %1933 = vmatpush.msra.mxu0 0.0
      %1934 = vmatpush.msra.mxu0 %v1914
      %1935 = vmatmul.f32.gmra.mxu0 %v1917
      %v1936 = vpop.f32.mrf.mxu0
      %v1937 = vadd.f32 0.0, %v1936
      %1938 = vdwg.mxu0
      %1939 = vrot.lane.b32.xlu0 %v1642, 104
      %v1940 = vpop.permute.xlu0 %1939
      %1941 = vrot.lane.b32.xlu0 %v1642, 72
      %v1942 = vpop.permute.xlu0 %1941
      %v1943 = vsel %vm395, %v1940, 0
      %v1945 = vsel %vm395, %v1942, 0
      %1947 = vmatpush.xpose.msra.mxu0 0.0
      %1948 = vmatpush.xpose.msra.mxu0 0.0
      %1949 = vmatpush.xpose.msra.mxu0 0.0
      %1950 = vmatpush.xpose.msra.mxu0 0.0
      %1951 = vmatpush.xpose.msra.mxu0 0.0
      %1952 = vmatpush.xpose.msra.mxu0 0.0
      %1953 = vmatpush.xpose.msra.mxu0 0.0
      %1954 = vmatpush.xpose.msra.mxu0 0.0
      %1955 = vmatpush.xpose.msra.mxu0 0.0
      %1956 = vmatpush.xpose.msra.mxu0 0.0
      %1957 = vmatpush.xpose.msra.mxu0 0.0
      %1958 = vmatpush.xpose.msra.mxu0 0.0
      %1959 = vmatpush.xpose.msra.mxu0 0.0
      %1960 = vmatpush.xpose.msra.mxu0 0.0
      %1961 = vmatpush.xpose.msra.mxu0 0.0
      %1962 = vmatpush.xpose.msra.mxu0 %v1945
      %1963 = vmatmul.f32.gmra.mxu0 %v1943
      %v1964 = vpop.f32.mrf.mxu0
      %v1965 = vadd.f32 0.0, %v1964
      %1966 = vdwg.mxu0
      %v1967 = vmul.f32 %v1965, 2.828427
      %1968 = vrot.lane.b32.xlu0 %v1697, 104
      %v1969 = vpop.permute.xlu0 %1968
      %v1971 = vadd.f32 %v1967, %v1969
      %v1972 = vsel %vm395, %v1971, -inf
      %1973 = vmax.xlane.f32.xlu0 %v1972
      %v1974 = vpop.xlane.xlu0 %1973
      %v1975 = vsub.f32 %v1971, %v1974
      %v1976 = vmul.f32 %v1975, 1.442695
      %v1977 = vpow.pop %v1976
      %v1978 = vsel %vm395, %v1977, 0.0
      %1979 = vadd.xlane.f32.xlu0 %v1978
      %v1980 = vpop.xlane.xlu0 %1979
      %v1981 = vrcp.pop %v1980
      %v1982 = vmul.f32 %v1980, %v1981
      %v1983 = vsub.f32 1.0, %v1982
      %v1984 = vmul.f32 %v1981, %v1983
      %v1985 = vadd.f32 %v1981, %v1984
      %vm1986 = vweird.f32 %v1980
      %vm1987 = vweird.f32 %v1981
      %vm1988 = vmor %vm1986, %vm1987
      %v1989 = vsel %vm1988, %v1981, %v1985
      %v1990 = vand.u32 2147483647, %v1980
      %vm1991 = vcmp.eq.f32.partialorder %v1990, 8.507059e+37
      %v1992 = vand.u32 %v1980, 2147483648
      %v1993 = vor.u32 1.1754944e-38, %v1992
      %v1994 = vsel %vm1991, %v1993, %v1989
      %v1995 = vmul.f32 %v1977, %v1994
      %1996 = vrot.lane.b32.xlu0 %v1642, 40
      %v1997 = vpop.permute.xlu0 %1996
      %v2000 = vsel %vm395, %v1995, 0
      %2002 = vmatpush.msra.mxu0 0.0
      %2003 = vmatpush.msra.mxu0 0.0
      %2004 = vmatpush.msra.mxu0 0.0
      %2005 = vmatpush.msra.mxu0 0.0
      %2006 = vmatpush.msra.mxu0 0.0
      %2007 = vmatpush.msra.mxu0 0.0
      %2008 = vmatpush.msra.mxu0 0.0
      %2009 = vmatpush.msra.mxu0 0.0
      %2010 = vmatpush.msra.mxu0 0.0
      %2011 = vmatpush.msra.mxu0 0.0
      %2012 = vmatpush.msra.mxu0 0.0
      %2013 = vmatpush.msra.mxu0 0.0
      %2014 = vmatpush.msra.mxu0 0.0
      %2015 = vmatpush.msra.mxu0 0.0
      %2016 = vmatpush.msra.mxu0 0.0
      %2017 = vmatpush.msra.mxu0 %v1997
      %2018 = vmatmul.f32.gmra.mxu0 %v2000
      %v2019 = vpop.f32.mrf.mxu0
      %v2020 = vadd.f32 0.0, %v2019
      %2021 = vdwg.mxu0
      %2023 = vrot.lane.b32.xlu0 %v1854, 8
      %v2024 = vpop.permute.xlu0 %2023
      %2027 = vrot.lane.b32.xlu0 %v1937, 16
      %v2028 = vpop.permute.xlu0 %2027
      %2031 = vrot.lane.b32.xlu0 %v2020, 24
      %v2032 = vpop.permute.xlu0 %2031
      %v2034 = vsel %vm395, %v1770, %v2024
      %v2035 = vsel %vm732, %v2034, %v2028
      %v2036 = vsel %vm734, %v2035, %v2032
      %v2038 = vsel %vm244, %v2036, 0
      %2040 = vmatpush.msra.mxu0 0.0
      %2041 = vmatpush.msra.mxu0 0.0
      %2042 = vmatpush.msra.mxu0 0.0
      %2043 = vmatpush.msra.mxu0 0.0
      %2044 = vmatpush.msra.mxu0 0.0
      %2045 = vmatpush.msra.mxu0 0.0
      %2046 = vmatpush.msra.mxu0 0.0
      %2047 = vmatpush.msra.mxu0 0.0
      %2048 = vmatpush.msra.mxu0 0.0
      %2049 = vmatpush.msra.mxu0 0.0
      %2050 = vmatpush.msra.mxu0 0.0
      %2051 = vmatpush.msra.mxu0 0.0
      %2052 = vmatpush.msra.mxu0 %v1169
      %2053 = vmatpush.msra.mxu0 %v1168
      %2054 = vmatpush.msra.mxu0 %v1167
      %2055 = vmatpush.msra.mxu0 %v1166
      %2056 = vmatmul.f32.gmra.mxu0 %v2038
      %v2057 = vpop.f32.mrf.mxu0
      %v2058 = vadd.f32 %v1170, %v2057
      %2059 = vdwg.mxu0
      %v2060 = vadd.f32 %v1619, %v2058
      %v2061 = vsel %vm244, %v2060, 0.0
      %2062 = vadd.xlane.f32.xlu0 %v2061
      %v2063 = vpop.xlane.xlu0 %2062
      %v2064 = vmul.f32 %v2063, %v771
      %v2065 = vsub.f32 %v2060, %v2064
      %v2066 = vmul.f32 %v2065, %v2065
      %v2067 = vsel %vm244, %v2066, 0.0
      %2068 = vadd.xlane.f32.xlu0 %v2067
      %v2069 = vpop.xlane.xlu0 %2068
      %v2070 = vmul.f32 %v2069, %v771
      %v2071 = vadd.f32 %v2070, 1e-05
      %v2072 = vrsqrt.pop %v2071
      %v2073 = vmul.f32 %v2072, %v2071
      %v2074 = vmul.f32 %v2073, %v2072
      %v2075 = vmul.f32 0.5, %v2074
      %v2076 = vsub.f32 1.5, %v2075
      %v2077 = vmul.f32 %v2072, %v2076
      %vm2078 = vweird.f32 %v2071
      %vm2079 = vweird.f32 %v2072
      %vm2080 = vmor %vm2078, %vm2079
      %v2081 = vsel %vm2080, %v2072, %v2077
      %v2082 = vmul.f32 %v2065, %v2081
      %v2083 = vmul.f32 %v2082, %v1592
      %v2084 = vadd.f32 %v2083, %v1593
      %v2085 = vadd.f32 %v2060, %v2084
      %v2086 = vld [vmem:[%s4 + $0x1b] ss:$0 sm:$0xff]
      %v2087 = vld [vmem:[%s4 + $0x1c] ss:$0 sm:$0xff]
      %v2088 = vsel %vm244, %v2085, 0.0
      %2089 = vadd.xlane.f32.xlu0 %v2088
      %v2090 = vpop.xlane.xlu0 %2089
      %v2091 = vmul.f32 %v2090, %v771
      %v2092 = vsub.f32 %v2085, %v2091
      %v2093 = vmul.f32 %v2092, %v2092
      %v2094 = vsel %vm244, %v2093, 0.0
      %2095 = vadd.xlane.f32.xlu0 %v2094
      %v2096 = vpop.xlane.xlu0 %2095
      %v2097 = vmul.f32 %v2096, %v771
      %v2098 = vadd.f32 %v2097, 1e-05
      %v2099 = vrsqrt.pop %v2098
      %v2100 = vmul.f32 %v2099, %v2098
      %v2101 = vmul.f32 %v2100, %v2099
      %v2102 = vmul.f32 0.5, %v2101
      %v2103 = vsub.f32 1.5, %v2102
      %v2104 = vmul.f32 %v2099, %v2103
      %vm2105 = vweird.f32 %v2098
      %vm2106 = vweird.f32 %v2099
      %vm2107 = vmor %vm2105, %vm2106
      %v2108 = vsel %vm2107, %v2099, %v2104
      %v2109 = vmul.f32 %v2092, %v2108
      %v2110 = vmul.f32 %v2109, %v2086
      %v2111 = vadd.f32 %v2110, %v2087
      %v2112 = vld [vmem:[%s1 + $0x38] sm:$0xff]
      %v2113 = vld [vmem:[%s1 + $0x40] sm:$0xff]
      %v2114 = vld [vmem:[%s1 + $0x48] sm:$0xff]
      %v2115 = vld [vmem:[%s1 + $0x90] sm:$0xff]
      %v2116 = vld [vmem:[%s1 + $0x98] sm:$0xff]
      %v2117 = vld [vmem:[%s1 + $0xa0] sm:$0xff]
      %v2118 = vld [vmem:[%s1 + $0xe8] sm:$0xff]
      %v2119 = vld [vmem:[%s1 + $0xf0] sm:$0xff]
      %v2120 = vld [vmem:[%s1 + $0xf8] sm:$0xff]
      %v2121 = vld [vmem:[%s1 + $0x140] sm:$0xff]
      %v2122 = vld [vmem:[%s1 + $0x148] sm:$0xff]
      %v2123 = vld [vmem:[%s1 + $0x150] sm:$0xff]
      %s2124 = scalar_lea.vmem %s4, 29
      %v2125 = vld [vmem:[%s2124] ss:$8 sm:$0x7]
      %v2126 = vld [vmem:[%s2 + $0x180] sm:$0xff]
      %v2127 = vld [vmem:[%s2 + $0x188] sm:$0xff]
      %v2128 = vld [vmem:[%s2 + $0x190] sm:$0xff]
      %v2129 = vld [vmem:[%s2 + $0x198] sm:$0xff]
      %v2130 = vld [vmem:[%s2 + $0x1a0] sm:$0xff]
      %v2131 = vld [vmem:[%s2 + $0x1a8] sm:$0xff]
      %v2132 = vld [vmem:[%s2 + $0x1b0] sm:$0xff]
      %v2133 = vld [vmem:[%s2 + $0x1b8] sm:$0xff]
      %v2134 = vld [vmem:[%s2 + $0x1c0] sm:$0xff]
      %v2135 = vld [vmem:[%s2 + $0x1c8] sm:$0xff]
      %v2136 = vld [vmem:[%s2 + $0x1d0] sm:$0xff]
      %v2137 = vld [vmem:[%s2 + $0x1d8] sm:$0xff]
      %v2138 = vld [vmem:[%s2 + $0x1e0] sm:$0xff]
      %v2139 = vld [vmem:[%s2 + $0x1e8] sm:$0xff]
      %v2140 = vld [vmem:[%s2 + $0x1f0] sm:$0xff]
      %v2141 = vld [vmem:[%s2 + $0x1f8] sm:$0xff]
      %v2142 = vld [vmem:[%s2 + $0x200] sm:$0xff]
      %v2143 = vld [vmem:[%s2 + $0x208] sm:$0xff]
      %v2144 = vld [vmem:[%s2 + $0x210] sm:$0xff]
      %v2145 = vld [vmem:[%s2 + $0x218] sm:$0xff]
      %v2146 = vld [vmem:[%s2 + $0x220] sm:$0xff]
      %v2147 = vld [vmem:[%s2 + $0x228] sm:$0xff]
      %v2148 = vld [vmem:[%s2 + $0x230] sm:$0xff]
      %v2149 = vld [vmem:[%s2 + $0x238] sm:$0xff]
      %v2150 = vld [vmem:[%s2 + $0x240] sm:$0xff]
      %v2151 = vld [vmem:[%s2 + $0x248] sm:$0xff]
      %v2152 = vld [vmem:[%s2 + $0x250] sm:$0xff]
      %v2153 = vld [vmem:[%s2 + $0x258] sm:$0xff]
      %v2154 = vld [vmem:[%s2 + $0x260] sm:$0xff]
      %v2155 = vld [vmem:[%s2 + $0x268] sm:$0xff]
      %v2156 = vld [vmem:[%s2 + $0x270] sm:$0xff]
      %v2157 = vld [vmem:[%s2 + $0x278] sm:$0xff]
      %v2158 = vld [vmem:[%s2 + $0x280] sm:$0xff]
      %v2159 = vld [vmem:[%s2 + $0x288] sm:$0xff]
      %v2160 = vld [vmem:[%s2 + $0x290] sm:$0xff]
      %v2161 = vld [vmem:[%s2 + $0x298] sm:$0xff]
      %v2162 = vld [vmem:[%s2 + $0x2a0] sm:$0xff]
      %v2163 = vld [vmem:[%s2 + $0x2a8] sm:$0xff]
      %v2164 = vld [vmem:[%s2 + $0x2b0] sm:$0xff]
      %v2165 = vld [vmem:[%s2 + $0x2b8] sm:$0xff]
      %v2166 = vld [vmem:[%s2 + $0x2c0] sm:$0xff]
      %v2167 = vld [vmem:[%s2 + $0x2c8] sm:$0xff]
      %v2168 = vld [vmem:[%s2 + $0x2d0] sm:$0xff]
      %v2169 = vld [vmem:[%s2 + $0x2d8] sm:$0xff]
      %v2170 = vld [vmem:[%s2 + $0x2e0] sm:$0xff]
      %v2171 = vld [vmem:[%s2 + $0x2e8] sm:$0xff]
      %v2172 = vld [vmem:[%s2 + $0x2f0] sm:$0xff]
      %v2173 = vld [vmem:[%s2 + $0x2f8] sm:$0xff]
      %v2174 = vld [vmem:[%s4 + $0x1e] ss:$0 sm:$0xff]
      %v2176 = vperm.slane %v2125, 0
      %v2177 = vperm.slane %v2125, 1
      %v2178 = vperm.slane %v2125, 2
      %v2183 = vsel %vm244, %v2111, 0
      %2185 = vmatpush.msra.mxu0 0.0
      %2186 = vmatpush.msra.mxu0 0.0
      %2187 = vmatpush.msra.mxu0 0.0
      %2188 = vmatpush.msra.mxu0 0.0
      %2189 = vmatpush.msra.mxu0 0.0
      %2190 = vmatpush.msra.mxu0 0.0
      %2191 = vmatpush.msra.mxu0 0.0
      %2192 = vmatpush.msra.mxu0 0.0
      %2193 = vmatpush.msra.mxu0 0.0
      %2194 = vmatpush.msra.mxu0 0.0
      %2195 = vmatpush.msra.mxu0 0.0
      %2196 = vmatpush.msra.mxu0 0.0
      %2197 = vmatpush.msra.mxu0 %v2121
      %2198 = vmatpush.msra.mxu0 %v2118
      %2199 = vmatpush.msra.mxu0 %v2115
      %2200 = vmatpush.msra.mxu0 %v2112
      %2201 = vmatmul.f32.gmra.mxu0 %v2183
      %v2202 = vpop.f32.mrf.mxu0
      %v2203 = vadd.f32 %v2176, %v2202
      %2204 = vdwg.mxu0
      %2205 = vmatpush.msra.mxu0 0.0
      %2206 = vmatpush.msra.mxu0 0.0
      %2207 = vmatpush.msra.mxu0 0.0
      %2208 = vmatpush.msra.mxu0 0.0
      %2209 = vmatpush.msra.mxu0 0.0
      %2210 = vmatpush.msra.mxu0 0.0
      %2211 = vmatpush.msra.mxu0 0.0
      %2212 = vmatpush.msra.mxu0 0.0
      %2213 = vmatpush.msra.mxu0 0.0
      %2214 = vmatpush.msra.mxu0 0.0
      %2215 = vmatpush.msra.mxu0 0.0
      %2216 = vmatpush.msra.mxu0 0.0
      %2217 = vmatpush.msra.mxu0 %v2122
      %2218 = vmatpush.msra.mxu0 %v2119
      %2219 = vmatpush.msra.mxu0 %v2116
      %2220 = vmatpush.msra.mxu0 %v2113
      %2221 = vmatmul.f32.gmra.mxu0 %v2183
      %v2222 = vpop.f32.mrf.mxu0
      %v2223 = vadd.f32 %v2177, %v2222
      %2224 = vdwg.mxu0
      %2225 = vmatpush.msra.mxu0 0.0
      %2226 = vmatpush.msra.mxu0 0.0
      %2227 = vmatpush.msra.mxu0 0.0
      %2228 = vmatpush.msra.mxu0 0.0
      %2229 = vmatpush.msra.mxu0 0.0
      %2230 = vmatpush.msra.mxu0 0.0
      %2231 = vmatpush.msra.mxu0 0.0
      %2232 = vmatpush.msra.mxu0 0.0
      %2233 = vmatpush.msra.mxu0 0.0
      %2234 = vmatpush.msra.mxu0 0.0
      %2235 = vmatpush.msra.mxu0 0.0
      %2236 = vmatpush.msra.mxu0 0.0
      %2237 = vmatpush.msra.mxu0 %v2123
      %2238 = vmatpush.msra.mxu0 %v2120
      %2239 = vmatpush.msra.mxu0 %v2117
      %2240 = vmatpush.msra.mxu0 %v2114
      %2241 = vmatmul.f32.gmra.mxu0 %v2183
      %v2242 = vpop.f32.mrf.mxu0
      %v2243 = vadd.f32 %v2178, %v2242
      %2244 = vdwg.mxu0
      %v2245 = vmul.f32 %v2203, 0.5
      %v2246 = vmul.f32 %v2223, 0.5
      %v2247 = vmul.f32 %v2243, 0.5
      %v2248 = vmul.f32 %v2203, 0.70710677
      %v2249 = vmul.f32 %v2223, 0.70710677
      %v2250 = vmul.f32 %v2243, 0.70710677
      %vm2251 = vcmp.ge.f32.partialorder %v2248, 0.0
      %vm2252 = vcmp.ge.f32.partialorder %v2249, 0.0
      %vm2253 = vcmp.ge.f32.partialorder %v2250, 0.0
      %v2254 = vsel %vm2251, 1.0, -1.0
      %v2255 = vsel %vm2252, 1.0, -1.0
      %v2256 = vsel %vm2253, 1.0, -1.0
      %v2257 = vand.u32 2147483647, %v2248
      %v2258 = vand.u32 2147483647, %v2249
      %v2259 = vand.u32 2147483647, %v2250
      %v2260 = vmul.f32 %v2257, 0.3275911
      %v2261 = vmul.f32 %v2258, 0.3275911
      %v2262 = vmul.f32 %v2259, 0.3275911
      %v2263 = vadd.f32 %v2260, 1.0
      %v2264 = vadd.f32 %v2261, 1.0
      %v2265 = vadd.f32 %v2262, 1.0
      %v2266 = vrcp.pop %v2263
      %v2267 = vmul.f32 %v2263, %v2266
      %v2268 = vsub.f32 1.0, %v2267
      %v2269 = vmul.f32 %v2266, %v2268
      %v2270 = vadd.f32 %v2266, %v2269
      %vm2271 = vweird.f32 %v2263
      %vm2272 = vweird.f32 %v2266
      %vm2273 = vmor %vm2271, %vm2272
      %v2274 = vsel %vm2273, %v2266, %v2270
      %v2275 = vand.u32 2147483647, %v2263
      %vm2276 = vcmp.eq.f32.partialorder %v2275, 8.507059e+37
      %v2277 = vand.u32 %v2263, 2147483648
      %v2278 = vor.u32 1.1754944e-38, %v2277
      %v2279 = vsel %vm2276, %v2278, %v2274
      %v2280 = vmul.f32 1.0, %v2279
      %v2281 = vrcp.pop %v2264
      %v2282 = vmul.f32 %v2264, %v2281
      %v2283 = vsub.f32 1.0, %v2282
      %v2284 = vmul.f32 %v2281, %v2283
      %v2285 = vadd.f32 %v2281, %v2284
      %vm2286 = vweird.f32 %v2264
      %vm2287 = vweird.f32 %v2281
      %vm2288 = vmor %vm2286, %vm2287
      %v2289 = vsel %vm2288, %v2281, %v2285
      %v2290 = vand.u32 2147483647, %v2264
      %vm2291 = vcmp.eq.f32.partialorder %v2290, 8.507059e+37
      %v2292 = vand.u32 %v2264, 2147483648
      %v2293 = vor.u32 1.1754944e-38, %v2292
      %v2294 = vsel %vm2291, %v2293, %v2289
      %v2295 = vmul.f32 1.0, %v2294
      %v2296 = vrcp.pop %v2265
      %v2297 = vmul.f32 %v2265, %v2296
      %v2298 = vsub.f32 1.0, %v2297
      %v2299 = vmul.f32 %v2296, %v2298
      %v2300 = vadd.f32 %v2296, %v2299
      %vm2301 = vweird.f32 %v2265
      %vm2302 = vweird.f32 %v2296
      %vm2303 = vmor %vm2301, %vm2302
      %v2304 = vsel %vm2303, %v2296, %v2300
      %v2305 = vand.u32 2147483647, %v2265
      %vm2306 = vcmp.eq.f32.partialorder %v2305, 8.507059e+37
      %v2307 = vand.u32 %v2265, 2147483648
      %v2308 = vor.u32 1.1754944e-38, %v2307
      %v2309 = vsel %vm2306, %v2308, %v2304
      %v2310 = vmul.f32 1.0, %v2309
      %v2311 = vmul.f32 %v2280, 1.0614054
      %v2312 = vmul.f32 %v2295, 1.0614054
      %v2313 = vmul.f32 %v2310, 1.0614054
      %v2314 = vadd.f32 %v2311, -1.4531521
      %v2315 = vadd.f32 %v2312, -1.4531521
      %v2316 = vadd.f32 %v2313, -1.4531521
      %v2317 = vmul.f32 %v2314, %v2280
      %v2318 = vmul.f32 %v2315, %v2295
      %v2319 = vmul.f32 %v2316, %v2310
      %v2320 = vadd.f32 %v2317, 1.4214138
      %v2321 = vadd.f32 %v2318, 1.4214138
      %v2322 = vadd.f32 %v2319, 1.4214138
      %v2323 = vmul.f32 %v2320, %v2280
      %v2324 = vmul.f32 %v2321, %v2295
      %v2325 = vmul.f32 %v2322, %v2310
      %v2326 = vadd.f32 %v2323, -0.28449672
      %v2327 = vadd.f32 %v2324, -0.28449672
      %v2328 = vadd.f32 %v2325, -0.28449672
      %v2329 = vmul.f32 %v2326, %v2280
      %v2330 = vmul.f32 %v2327, %v2295
      %v2331 = vmul.f32 %v2328, %v2310
      %v2332 = vadd.f32 %v2329, 0.2548296
      %v2333 = vadd.f32 %v2330, 0.2548296
      %v2334 = vadd.f32 %v2331, 0.2548296
      %v2335 = vmul.f32 %v2332, %v2280
      %v2336 = vmul.f32 %v2333, %v2295
      %v2337 = vmul.f32 %v2334, %v2310
      %v2338 = vsub.f32 0.0, %v2257
      %v2339 = vsub.f32 0.0, %v2258
      %v2340 = vsub.f32 0.0, %v2259
      %v2341 = vmul.f32 %v2338, %v2257
      %v2342 = vmul.f32 %v2339, %v2258
      %v2343 = vmul.f32 %v2340, %v2259
      %v2344 = vmul.f32 %v2341, 1.442695
      %v2345 = vpow.pop %v2344
      %v2346 = vmul.f32 %v2342, 1.442695
      %v2347 = vpow.pop %v2346
      %v2348 = vmul.f32 %v2343, 1.442695
      %v2349 = vpow.pop %v2348
      %v2350 = vmul.f32 %v2335, %v2345
      %v2351 = vmul.f32 %v2336, %v2347
      %v2352 = vmul.f32 %v2337, %v2349
      %v2353 = vsub.f32 1.0, %v2350
      %v2354 = vsub.f32 1.0, %v2351
      %v2355 = vsub.f32 1.0, %v2352
      %v2356 = vmul.f32 %v2254, %v2353
      %v2357 = vmul.f32 %v2255, %v2354
      %v2358 = vmul.f32 %v2256, %v2355
      %v2359 = vadd.f32 %v2356, 1.0
      %v2360 = vadd.f32 %v2357, 1.0
      %v2361 = vadd.f32 %v2358, 1.0
      %v2362 = vmul.f32 %v2245, %v2359
      %v2363 = vmul.f32 %v2246, %v2360
      %v2364 = vmul.f32 %v2247, %v2361
      %2365 = vmatpush.msra.mxu0 %v2141
      %2366 = vmatpush.msra.mxu0 %v2140
      %2367 = vmatpush.msra.mxu0 %v2139
      %2368 = vmatpush.msra.mxu0 %v2138
      %2369 = vmatpush.msra.mxu0 %v2137
      %2370 = vmatpush.msra.mxu0 %v2136
      %2371 = vmatpush.msra.mxu0 %v2135
      %2372 = vmatpush.msra.mxu0 %v2134
      %2373 = vmatpush.msra.mxu0 %v2133
      %2374 = vmatpush.msra.mxu0 %v2132
      %2375 = vmatpush.msra.mxu0 %v2131
      %2376 = vmatpush.msra.mxu0 %v2130
      %2377 = vmatpush.msra.mxu0 %v2129
      %2378 = vmatpush.msra.mxu0 %v2128
      %2379 = vmatpush.msra.mxu0 %v2127
      %2380 = vmatpush.msra.mxu0 %v2126
      %2381 = vmatmul.f32.gmra.mxu0 %v2362
      %v2382 = vpop.f32.mrf.mxu0
      %v2383 = vadd.f32 %v2174, %v2382
      %2384 = vdwg.mxu0
      %2385 = vmatpush.msra.mxu0 %v2157
      %2386 = vmatpush.msra.mxu0 %v2156
      %2387 = vmatpush.msra.mxu0 %v2155
      %2388 = vmatpush.msra.mxu0 %v2154
      %2389 = vmatpush.msra.mxu0 %v2153
      %2390 = vmatpush.msra.mxu0 %v2152
      %2391 = vmatpush.msra.mxu0 %v2151
      %2392 = vmatpush.msra.mxu0 %v2150
      %2393 = vmatpush.msra.mxu0 %v2149
      %2394 = vmatpush.msra.mxu0 %v2148
      %2395 = vmatpush.msra.mxu0 %v2147
      %2396 = vmatpush.msra.mxu0 %v2146
      %2397 = vmatpush.msra.mxu0 %v2145
      %2398 = vmatpush.msra.mxu0 %v2144
      %2399 = vmatpush.msra.mxu0 %v2143
      %2400 = vmatpush.msra.mxu0 %v2142
      %2401 = vmatmul.f32.gmra.mxu0 %v2363
      %v2402 = vpop.f32.mrf.mxu0
      %v2403 = vadd.f32 %v2383, %v2402
      %2404 = vdwg.mxu0
      %2405 = vmatpush.msra.mxu0 %v2173
      %2406 = vmatpush.msra.mxu0 %v2172
      %2407 = vmatpush.msra.mxu0 %v2171
      %2408 = vmatpush.msra.mxu0 %v2170
      %2409 = vmatpush.msra.mxu0 %v2169
      %2410 = vmatpush.msra.mxu0 %v2168
      %2411 = vmatpush.msra.mxu0 %v2167
      %2412 = vmatpush.msra.mxu0 %v2166
      %2413 = vmatpush.msra.mxu0 %v2165
      %2414 = vmatpush.msra.mxu0 %v2164
      %2415 = vmatpush.msra.mxu0 %v2163
      %2416 = vmatpush.msra.mxu0 %v2162
      %2417 = vmatpush.msra.mxu0 %v2161
      %2418 = vmatpush.msra.mxu0 %v2160
      %2419 = vmatpush.msra.mxu0 %v2159
      %2420 = vmatpush.msra.mxu0 %v2158
      %2421 = vmatmul.f32.gmra.mxu0 %v2364
      %v2422 = vpop.f32.mrf.mxu0
      %v2423 = vadd.f32 %v2403, %v2422
      %2424 = vdwg.mxu0
      %v2425 = vadd.f32 %v2085, %v2423
      %v2426 = vsel %vm244, %v2425, 0.0
      %2427 = vadd.xlane.f32.xlu0 %v2426
      %v2428 = vpop.xlane.xlu0 %2427
      %v2429 = vmul.f32 %v2428, %v771
      %v2430 = vsub.f32 %v2425, %v2429
      %v2431 = vmul.f32 %v2430, %v2430
      %v2432 = vsel %vm244, %v2431, 0.0
      %2433 = vadd.xlane.f32.xlu0 %v2432
      %v2434 = vpop.xlane.xlu0 %2433
      %v2435 = vmul.f32 %v2434, %v771
      %v2436 = vadd.f32 %v2435, 1e-05
      %v2437 = vrsqrt.pop %v2436
      %v2438 = vmul.f32 %v2437, %v2436
      %v2439 = vmul.f32 %v2438, %v2437
      %v2440 = vmul.f32 0.5, %v2439
      %v2441 = vsub.f32 1.5, %v2440
      %v2442 = vmul.f32 %v2437, %v2441
      %vm2443 = vweird.f32 %v2436
      %vm2444 = vweird.f32 %v2437
      %vm2445 = vmor %vm2443, %vm2444
      %v2446 = vsel %vm2445, %v2437, %v2442
      %v2447 = vmul.f32 %v2430, %v2446
      %v2448 = vmul.f32 %v2447, %v2086
      %v2449 = vadd.f32 %v2448, %v2087
      %v2450 = vld [vmem:[%s4 + $0x1f] ss:$0 sm:$0xff]
      %v2451 = vld [vmem:[%s4 + $0x30] ss:$0 sm:$0xff]
      %v2452 = vsel %vm244, %v2449, 0.0
      %2453 = vadd.xlane.f32.xlu0 %v2452
      %v2454 = vpop.xlane.xlu0 %2453
      %v2455 = vmul.f32 %v2454, %v771
      %v2456 = vsub.f32 %v2449, %v2455
      %v2457 = vmul.f32 %v2456, %v2456
      %v2458 = vsel %vm244, %v2457, 0.0
      %2459 = vadd.xlane.f32.xlu0 %v2458
      %v2460 = vpop.xlane.xlu0 %2459
      %v2461 = vmul.f32 %v2460, %v771
      %v2462 = vadd.f32 %v2461, 1e-05
      %v2463 = vrsqrt.pop %v2462
      %v2464 = vmul.f32 %v2463, %v2462
      %v2465 = vmul.f32 %v2464, %v2463
      %v2466 = vmul.f32 0.5, %v2465
      %v2467 = vsub.f32 1.5, %v2466
      %v2468 = vmul.f32 %v2463, %v2467
      %vm2469 = vweird.f32 %v2462
      %vm2470 = vweird.f32 %v2463
      %vm2471 = vmor %vm2469, %vm2470
      %v2472 = vsel %vm2471, %v2463, %v2468
      %v2473 = vmul.f32 %v2456, %v2472
      %v2474 = vmul.f32 %v2473, %v2450
      %v2475 = vadd.f32 %v2474, %v2451
      %v2476 = vld [vmem:[%s1 + $0x50] sm:$0xff]
      %v2477 = vld [vmem:[%s1 + $0xa8] sm:$0xff]
      %v2478 = vld [vmem:[%s1 + $0x100] sm:$0xff]
      %v2479 = vld [vmem:[%s1 + $0x158] sm:$0xff]
      %v2480 = vld [vmem:[%s4 + $0x31] ss:$0 sm:$0xff]
      %v2482 = vsel %vm244, %v2475, 0
      %2484 = vmatpush.msra.mxu0 0.0
      %2485 = vmatpush.msra.mxu0 0.0
      %2486 = vmatpush.msra.mxu0 0.0
      %2487 = vmatpush.msra.mxu0 0.0
      %2488 = vmatpush.msra.mxu0 0.0
      %2489 = vmatpush.msra.mxu0 0.0
      %2490 = vmatpush.msra.mxu0 0.0
      %2491 = vmatpush.msra.mxu0 0.0
      %2492 = vmatpush.msra.mxu0 0.0
      %2493 = vmatpush.msra.mxu0 0.0
      %2494 = vmatpush.msra.mxu0 0.0
      %2495 = vmatpush.msra.mxu0 0.0
      %2496 = vmatpush.msra.mxu0 %v2479
      %2497 = vmatpush.msra.mxu0 %v2478
      %2498 = vmatpush.msra.mxu0 %v2477
      %2499 = vmatpush.msra.mxu0 %v2476
      %2500 = vmatmul.f32.gmra.mxu0 %v2482
      %v2501 = vpop.f32.mrf.mxu0
      %v2502 = vadd.f32 %v2480, %v2501
      %2503 = vdwg.mxu0
      %2504 = vst [vmem:[%s219] sm:$0xff] %v2502
      %p2505 = scmp.lt.s32.totalorder %s16, 1
      %s2506 = scalar_select %p2505, %s16, 1
      %s2507 = smul.addr %s2506, 8
      %s2508 = scalar_lea.vmem %s5, %s2507
      // Predicated region
      $region41: #{transformer_forward.1} parent=39 // pred_check
        %p2509 = pneg %p144
      $region42: #{transformer_forward.1} parent=39 // pred_check_branch
        %2511 = sbr.rel (%p2509) target = $region44
      $region43: #{transformer_forward.1} parent=39 // pred_region
        _
      $region44: #{transformer_forward.1} parent=39 // pred_fallthru
        _
    $region40: #{transformer_forward.1} parent=5 // pred_fallthru
      _
    %p2512 = scmp.le.s32.totalorder 2, %s11
    // Predicated region
    $region45: #{transformer_forward.1} parent=5 // pred_check
      %p2513 = pneg %p2512
    $region46: #{transformer_forward.1} parent=5 // pred_check_branch
      %2515 = sbr.rel (%p2513) target = $region48
    $region47: #{transformer_forward.1} parent=5 // pred_region
      %s2516 = ssub.s32 %s11, 2
      // Predicated region
      $region49: #{transformer_forward.1} parent=47 // pred_check
        %p2517 = pneg %p150
      $region50: #{transformer_forward.1} parent=47 // pred_check_branch
        %2519 = sbr.rel (%p2517) target = $region52
      $region51: #{transformer_forward.1} parent=47 // pred_region
        %p2520 = scmp.lt.s32.totalorder %s17, 1
        %s2521 = scalar_select %p2520, %s17, 1
        %s2522 = smul.addr %s2521, 8
        %s2523 = scalar_lea.vmem %s5, %s2522
      $region52: #{transformer_forward.1} parent=47 // pred_fallthru
        _
    $region48: #{transformer_forward.1} parent=5 // pred_fallthru
      _
  $region6: #{transformer_forward.1} parent=0 // loop_footer
    %s15 = sadd.s32 1, %s11
  $region7: #{transformer_forward.1} parent=0 // loop_footer_branch
    %10 = sbr.rel target = $region3
  $region8: #{transformer_forward.1} parent=0 // loop_exit
    _

</llo_original>
